<compile_context>
chip_gen: v6e
topology: v6e:2x2x1
jax: 0.10.0
libtpu: 0.0.40
codegen_flags: <defaults>
</compile_context>

<pallas_src>
import functools
import math

import jax
import jax.numpy as jnp
from jax.experimental import pallas as pl
from jax.experimental.pallas import tpu as pltpu

_INV_SQRT2 = 1.0 / math.sqrt(2.0)
_LN_EPS = 1e-5


def _gelu_exact(x):
    # erf-based GELU == torch.nn.functional.gelu default / nn.GELU()
    return 0.5 * x * (1.0 + jax.lax.erf(x * _INV_SQRT2))


# ----------------------------- hardware-derived knobs -----------------------------------

@functools.lru_cache()
def _vmem_cap_bytes():
    try:
        return int(pltpu.get_tpu_info().vmem_capacity_bytes)
    except Exception:
        return 64 * 1024 * 1024          # v7x (smallest per-TC VMEM across generations)


def _vmem_budget_bytes():
    return int(_vmem_cap_bytes() * 7 // 10)


def _row_cap():
    # bigger row tiles on the 128 MiB-VMEM chips (v5e/v6e); keep 512 on v7x (64 MiB).
    return 1024 if _vmem_budget_bytes() >= 80 * 1024 * 1024 else 512


def _probe_buffered_one():
    """Probe pipeline_mode=pl.Buffered(1) (single-buffered constant operands) support."""
    try:
        def _k(x_ref, w_ref, b_ref, o_ref):
            o_ref[...] = (jnp.dot(x_ref[...], w_ref[...],
                                  preferred_element_type=jnp.float32)
                          + b_ref[...]).astype(o_ref.dtype)

        const = {"pipeline_mode": pl.Buffered(1)}
        fn = pl.pallas_call(
            _k,
            out_shape=jax.ShapeDtypeStruct((16, 128), jnp.float32),
            grid=(2, 1),
            in_specs=[
                pl.BlockSpec((8, 128), lambda i, j: (i, 0)),
                pl.BlockSpec((128, 128), lambda i, j: (0, j), **const),
                pl.BlockSpec((1, 128), lambda i, j: (0, j), **const),
            ],
            out_specs=pl.BlockSpec((8, 128), lambda i, j: (i, j)),
        )
        x = jnp.ones((16, 128), jnp.float32)
        w = jnp.eye(128, dtype=jnp.float32)
        b = jnp.ones((1, 128), jnp.float32)
        res = jax.block_until_ready(fn(x, w, b))
        if bool(jnp.allclose(res, 2.0)):
            return const
    except Exception:
        pass
    return {}


_BUFFERED_ONE = _probe_buffered_one()


def _spec(shape, index_map, constant=False):
    """BlockSpec; constant-index operands are single-buffered when supported."""
    if constant and _BUFFERED_ONE:
        return pl.BlockSpec(shape, index_map, **_BUFFERED_ONE)
    return pl.BlockSpec(shape, index_map)


def _compiler_params(dims, vmem_needed_bytes=0):
    limit = None
    if vmem_needed_bytes > 30 * 1024 * 1024:
        cap = _vmem_cap_bytes()
        # never clamp the limit below the actual working set (tiles are chosen from
        # a budget that is well under the cap, so this always fits).
        limit = int(min(max(vmem_needed_bytes * 13 // 10, 32 * 1024 * 1024),
                        cap - 2 * 1024 * 1024))
    return pltpu.CompilerParams(dimension_semantics=dims, vmem_limit_bytes=limit)


def _pick_block_rows(rows, requested=None):
    if requested is not None:
        br = min(requested, rows)
    else:
        br = min(_row_cap(), rows)
        if br == rows and rows >= 16:
            br = pl.cdiv(rows, 2)          # >=2 row tiles feeds both v7x TensorCores
    if br != rows and br % 8 != 0:
        br = max(8, (br // 8) * 8)
    return br


# --------------------------- generic linear: y = x @ W^T + b ----------------------------

def _linear_kernel(x_ref, wt_ref, b_ref, o_ref):
    y = jnp.dot(x_ref[...], wt_ref[...], preferred_element_type=jnp.float32)
    o_ref[...] = (y + b_ref[...].astype(jnp.float32)).astype(o_ref.dtype)


def linear(x2d, w, b, *, block_rows=None):
    """x2d: [rows, din]; w: [dout, din] (PyTorch layout); b: [dout]."""
    rows, din = x2d.shape
    dout = w.shape[0]
    wt = w.T                                   # one-time layout change outside the kernel
    b2 = b.reshape(1, dout)

    budget = _vmem_budget_bytes()
    itm = x2d.dtype.itemsize
    witm = wt.dtype.itemsize
    br = _pick_block_rows(rows, block_rows)

    w_mult = 1 if _BUFFERED_ONE else 2
    if (din * dout + dout) * witm * w_mult <= budget * 6 // 10:
        bn = dout                              # full weight residency, single-buffered
    else:
        bn = max(128, (((budget // 2) // max(din * witm * 2, 1)) // 128) * 128)
        bn = min(bn, dout)                     # stream lane-aligned dout tiles
    n_const = bn == dout

    vmem_needed = (2 * br * (din + bn) * itm
                   + (din * bn + bn) * witm * (w_mult if n_const else 2))
    cost = pl.CostEstimate(
        flops=2 * rows * din * dout,
        transcendentals=0,
        bytes_accessed=rows * (din + dout) * itm + (din * dout + dout) * witm)
    return pl.pallas_call(
        _linear_kernel,
        out_shape=jax.ShapeDtypeStruct((rows, dout), x2d.dtype),
        grid_spec=pltpu.PrefetchScalarGridSpec(
            num_scalar_prefetch=0,
            grid=(pl.cdiv(rows, br), pl.cdiv(dout, bn)),
            in_specs=[
                _spec((br, din), lambda i, j: (i, 0)),
                _spec((din, bn), lambda i, j: (0, j), constant=n_const),
                _spec((1, bn), lambda i, j: (0, j), constant=n_const),
            ],
            out_specs=pl.BlockSpec((br, bn), lambda i, j: (i, j)),
        ),
        compiler_params=_compiler_params(("parallel", "parallel"), vmem_needed),
        cost_estimate=cost,
    )(x2d, wt, b2)


# --------------- out-projection fused with residual add + LayerNorm (norm1) -------------

def _linear_res_ln_kernel(x_ref, wt_ref, b_ref, res_ref, g_ref, beta_ref, o_ref, acc_ref):
    k = pl.program_id(1)

    @pl.when(k == 0)
    def _init():
        acc_ref[...] = jnp.zeros_like(acc_ref)

    acc_ref[...] += jnp.dot(x_ref[...], wt_ref[...], preferred_element_type=jnp.float32)

    @pl.when(k == pl.num_programs(1) - 1)
    def _finish():
        y = acc_ref[...] + b_ref[...].astype(jnp.float32) + res_ref[...].astype(jnp.float32)
        mu = jnp.mean(y, axis=-1, keepdims=True)
        yc = y - mu
        var = jnp.mean(yc * yc, axis=-1, keepdims=True)
        y = yc * jax.lax.rsqrt(var + _LN_EPS)
        y = y * g_ref[...].astype(jnp.float32) + beta_ref[...].astype(jnp.float32)
        o_ref[...] = y.astype(o_ref.dtype)


def linear_residual_layernorm(x2d, w, b, res2d, gamma, beta, *, block_rows=None):
    """LayerNorm(res + x @ W^T + b) in one kernel (K-tiled contraction, f32 accumulator)."""
    rows, din = x2d.shape
    dout = w.shape[0]
    wt = w.T

    budget = _vmem_budget_bytes()
    itm = x2d.dtype.itemsize
    witm = wt.dtype.itemsize
    br = _pick_block_rows(rows, block_rows)

    w_mult = 1 if _BUFFERED_ONE else 2
    if din * dout * witm * w_mult <= budget * 6 // 10:
        bk = din
    else:
        bk = None
        cand = 128
        while cand < din:
            if din % cand == 0 and cand * dout * witm * 2 <= budget * 6 // 10:
                bk = cand
            cand += 128
        if bk is None:
            bk = din     # TODO(synk): ragged din falls back to a fully resident weight.
    k_const = bk == din

    vmem_needed = (2 * br * (bk + 2 * dout) * itm + br * dout * 4
                   + (bk * dout + dout) * witm * (w_mult if k_const else 2))
    cost = pl.CostEstimate(
        flops=2 * rows * din * dout, transcendentals=0,
        bytes_accessed=rows * (din + 2 * dout) * itm + din * dout * witm)
    return pl.pallas_call(
        _linear_res_ln_kernel,
        out_shape=jax.ShapeDtypeStruct((rows, dout), x2d.dtype),
        grid_spec=pltpu.PrefetchScalarGridSpec(
            num_scalar_prefetch=0,
            grid=(pl.cdiv(rows, br), pl.cdiv(din, bk)),
            in_specs=[
                _spec((br, bk), lambda i, k: (i, k)),
                _spec((bk, dout), lambda i, k: (k, 0), constant=k_const),
                _spec((1, dout), lambda i, k: (0, 0), constant=True),
                _spec((br, dout), lambda i, k: (i, 0)),
                _spec((1, dout), lambda i, k: (0, 0), constant=True),
                _spec((1, dout), lambda i, k: (0, 0), constant=True),
            ],
            out_specs=pl.BlockSpec((br, dout), lambda i, k: (i, 0)),
            scratch_shapes=[pltpu.VMEM((br, dout), jnp.float32)],
        ),
        compiler_params=_compiler_params(("parallel", "arbitrary"), vmem_needed),
        cost_estimate=cost,
    )(x2d, wt, b.reshape(1, dout), res2d, gamma.reshape(1, dout), beta.reshape(1, dout))


# --------- fused FeedForward: lin1 -> GELU -> lin2 [-> GELU] [-> residual + LN] ----------

def _ff_kernel(*refs, out_act, fuse_ln):
    if fuse_ln:
        (x_ref, w1t_ref, b1_ref, w2t_ref, b2_ref,
         res_ref, g_ref, beta_ref, o_ref, acc_ref) = refs
    else:
        (x_ref, w1t_ref, b1_ref, w2t_ref, b2_ref, o_ref, acc_ref) = refs
        res_ref = g_ref = beta_ref = None

    k = pl.program_id(1)

    @pl.when(k == 0)
    def _init():
        acc_ref[...] = jnp.zeros_like(acc_ref)

    # lin1 on this hidden-dim tile; operands stay in native dtype for the MXU.
    h = jnp.dot(x_ref[...], w1t_ref[...], preferred_element_type=jnp.float32)
    h = _gelu_exact(h + b1_ref[...].astype(jnp.float32))
    # dropout(p=0) is the identity.
    # TODO(synk): dropout with p>0 would need pltpu.prng_seed/prng_random_bits + masking.
    acc_ref[...] += jnp.dot(h.astype(x_ref.dtype), w2t_ref[...],
                            preferred_element_type=jnp.float32)

    @pl.when(k == pl.num_programs(1) - 1)
    def _finish():
        out = acc_ref[...] + b2_ref[...].astype(jnp.float32)
        if out_act:                                # the block's `self.act` GELU, fused in
            out = _gelu_exact(out)
        if fuse_ln:                                # residual + LayerNorm (norm2), fused in
            out = out + res_ref[...].astype(jnp.float32)
            mu = jnp.mean(out, axis=-1, keepdims=True)
            xc = out - mu
            var = jnp.mean(xc * xc, axis=-1, keepdims=True)
            out = xc * jax.lax.rsqrt(var + _LN_EPS)
            out = out * g_ref[...].astype(jnp.float32) + beta_ref[...].astype(jnp.float32)
        o_ref[...] = out.astype(o_ref.dtype)


def feed_forward(x2d, w1, b1, w2, b2, *, out_act=False,
                 residual=None, gamma=None, beta=None, block_rows=None):
    """x2d: [rows, d_in]; w1: [d_hidden, d_in]; w2: [d_out, d_hidden] (PyTorch layout)."""
    rows, d_in = x2d.shape
    d_hidden = w1.shape[0]
    d_out = w2.shape[0]
    fuse_ln = residual is not None
    w1t, w2t = w1.T, w2.T
    b1_2d, b2_2d = b1.reshape(1, d_hidden), b2.reshape(1, d_out)

    budget = _vmem_budget_bytes()
    itm = x2d.dtype.itemsize
    witm = w1.dtype.itemsize
    br = _pick_block_rows(rows, block_rows)

    w_mult = 1 if _BUFFERED_ONE else 2
    if (d_in * d_hidden + d_hidden * d_out) * witm * w_mult <= budget * 6 // 10:
        bk = d_hidden                     # both weights VMEM-resident (best on v5e/v6e)
    else:
        bk = None
        cand = 128
        while cand < d_hidden:
            if (d_hidden % cand == 0
                    and (d_in * cand + cand * d_out) * witm * 2 <= budget * 6 // 10):
                bk = cand
            cand += 128
        if bk is None:
            bk = d_hidden   # TODO(synk): ragged hidden dims fall back to full residency.
    k_const = bk == d_hidden

    in_specs = [
        _spec((br, d_in), lambda i, k: (i, 0)),
        _spec((d_in, bk), lambda i, k: (0, k), constant=k_const),
        _spec((1, bk), lambda i, k: (0, k), constant=k_const),
        _spec((bk, d_out), lambda i, k: (k, 0), constant=k_const),
        _spec((1, d_out), lambda i, k: (0, 0), constant=True),
    ]
    args = [x2d, w1t, b1_2d, w2t, b2_2d]
    if fuse_ln:
        in_specs += [
            _spec((br, d_out), lambda i, k: (i, 0)),
            _spec((1, d_out), lambda i, k: (0, 0), constant=True),
            _spec((1, d_out), lambda i, k: (0, 0), constant=True),
        ]
        args += [residual, gamma.reshape(1, d_out), beta.reshape(1, d_out)]

    vmem_needed = (2 * br * (d_in + d_out * (2 if fuse_ln else 1)) * itm + br * d_out * 4
                   + (d_in * bk + bk * d_out + bk + d_out) * witm
                   * (w_mult if k_const else 2))
    cost = pl.CostEstimate(
        flops=2 * rows * d_hidden * (d_in + d_out),
        transcendentals=rows * d_hidden + (rows * d_out if out_act else 0),
        bytes_accessed=rows * (d_in + d_out) * itm
        + (d_in * d_hidden + d_hidden * d_out) * witm)
    return pl.pallas_call(
        functools.partial(_ff_kernel, out_act=out_act, fuse_ln=fuse_ln),
        out_shape=jax.ShapeDtypeStruct((rows, d_out), x2d.dtype),
        grid_spec=pltpu.PrefetchScalarGridSpec(
            num_scalar_prefetch=0,
            grid=(pl.cdiv(rows, br), pl.cdiv(d_hidden, bk)),
            in_specs=in_specs,
            out_specs=pl.BlockSpec((br, d_out), lambda i, k: (i, 0)),
            scratch_shapes=[pltpu.VMEM((br, d_out), jnp.float32)],
        ),
        compiler_params=_compiler_params(("parallel", "arbitrary"), vmem_needed),
        cost_estimate=cost,
    )(*args)


# ------------------------------ positional-encoding add ---------------------------------

def _add_pe_kernel(u_ref, pe_ref, o_ref):
    o_ref[...] = (u_ref[...].astype(jnp.float32)
                  + pe_ref[...].astype(jnp.float32)).astype(o_ref.dtype)


def add_positional_encoding(u, pe_slice):
    """u: [A0, A1, D]; pe_slice: [A1, D] (added along axis 1, per the module)."""
    a0, a1, d = u.shape
    ba0 = max(1, min(a0, max(1, 1024 // max(a1, 1))))
    if ba0 == a0 and a0 >= 2:
        ba0 = pl.cdiv(a0, 2)               # >=2 grid steps for the v7x megacore
    return pl.pallas_call(
        _add_pe_kernel,
        out_shape=jax.ShapeDtypeStruct(u.shape, u.dtype),
        grid_spec=pltpu.PrefetchScalarGridSpec(
            num_scalar_prefetch=0,
            grid=(pl.cdiv(a0, ba0),),
            in_specs=[
                _spec((ba0, a1, d), lambda i: (i, 0, 0)),
                _spec((a1, d), lambda i: (0, 0), constant=True),
            ],
            out_specs=pl.BlockSpec((ba0, a1, d), lambda i: (i, 0, 0)),
        ),
        compiler_params=_compiler_params(("parallel",)),
    )(u, pe_slice)


# --------------------- scaled-dot-product attention, G heads per step -------------------

def _sdpa_kernel(q_ref, k_ref, v_ref, o_ref, *, scale):
    q = q_ref[...]                                   # (G, L, hd) native dtype -> MXU
    k = k_ref[...]                                   # (G, S, hd)
    v = v_ref[...]                                   # (G, S, hd)
    s = jnp.einsum("bqd,bkd->bqk", q, k,
                   preferred_element_type=jnp.float32) * scale      # f32 scores
    m = jnp.max(s, axis=-1, keepdims=True)
    p = jnp.exp(s - m)
    denom = jnp.sum(p, axis=-1, keepdims=True)
    ctx = jnp.einsum("bqk,bkd->bqd", p.astype(v.dtype), v,
                     preferred_element_type=jnp.float32)
    o_ref[...] = (ctx * pl.reciprocal(denom, approx=True)).astype(o_ref.dtype)


def sdpa(qh, kh, vh, *, scale):
    """qh: [BH, L, hd]; kh/vh: [BH, S, hd]; softmax attention, G batch-heads per step."""
    bh, l, hd = qh.shape
    s = kh.shape[1]
    itm = qh.dtype.itemsize
    budget = _vmem_budget_bytes()
    # per-slice VMEM: double-buffered q/k/v/out + f32 scores + f32 context
    per = 2 * itm * (2 * l * hd + 2 * s * hd) + 4 * (l * s + l * hd)
    max_g = max(1, (budget // 2) // max(per, 1))
    if bh >= 2:
        max_g = min(max_g, bh // 2)          # >=2 grid steps (v7x megacore)
    g = 1
    for cand in range(1, bh + 1):
        if bh % cand == 0 and cand <= max_g:
            g = cand
    # TODO(synk): for very long sequences the (G, L, S) score block should be flash-tiled
    # along S with online-softmax m/l/acc scratch instead of being materialized.
    cost = pl.CostEstimate(
        flops=4 * bh * l * s * hd,
        transcendentals=bh * l * s,
        bytes_accessed=itm * bh * (2 * l * hd + 2 * s * hd))
    return pl.pallas_call(
        functools.partial(_sdpa_kernel, scale=scale),
        out_shape=jax.ShapeDtypeStruct((bh, l, hd), qh.dtype),
        grid_spec=pltpu.PrefetchScalarGridSpec(
            num_scalar_prefetch=0,
            grid=(bh // g,),
            in_specs=[
                _spec((g, l, hd), lambda b: (b, 0, 0)),
                _spec((g, s, hd), lambda b: (b, 0, 0)),
                _spec((g, s, hd), lambda b: (b, 0, 0)),
            ],
            out_specs=pl.BlockSpec((g, l, hd), lambda b: (b, 0, 0)),
        ),
        compiler_params=_compiler_params(("parallel",), per * g * 2),
        cost_estimate=cost,
    )(qh, kh, vh)


# ----------------------------------- MHA_block forward ----------------------------------

def mha_block_forward(u, params, *, heads, o=None):
    """Literal forward of MHA_block; u: [A0, A1, d_core]."""
    a0, a1, d = u.shape
    hd = d // heads
    scale = 1.0 / math.sqrt(hd)
    hp = jax.lax.Precision.HIGHEST

    # PositionalEncoding (dropout p=0 -> identity); PE is added along axis 1.
    u = add_positional_encoding(u, params["pe"][:a1])
    rows_q = a0 * a1
    u2d = u.reshape(rows_q, d)

    # Fold QQ/KK/VV into nn.MultiheadAttention's in-projection (one matmul instead of two):
    #   q' = (u Wqq^T + bqq) Wq_in^T + bq_in = u (Wq_in Wqq)^T + (Wq_in bqq + bq_in)
    w_in, b_in = params["mha_in_w"], params["mha_in_b"]
    wq_in, wk_in, wv_in = w_in[:d], w_in[d:2 * d], w_in[2 * d:]
    bq_in, bk_in, bv_in = b_in[:d], b_in[d:2 * d], b_in[2 * d:]
    w_eff_q = jnp.matmul(wq_in, params["qq_w"], precision=hp)
    w_eff_k = jnp.matmul(wk_in, params["kk_w"], precision=hp)
    w_eff_v = jnp.matmul(wv_in, params["vv_w"], precision=hp)
    b_eff_q = jnp.matmul(wq_in, params["qq_b"], precision=hp) + bq_in
    b_eff_k = jnp.matmul(wk_in, params["kk_b"], precision=hp) + bk_in
    b_eff_v = jnp.matmul(wv_in, params["vv_b"], precision=hp) + bv_in

    if o is None:
        s0 = a0
        # One fused QKV projection pallas_call (single read of u2d, one combined transpose).
        qkv = linear(u2d,
                     jnp.concatenate([w_eff_q, w_eff_k, w_eff_v], axis=0),
                     jnp.concatenate([b_eff_q, b_eff_k, b_eff_v]))
        qkv_h = (qkv.reshape(a0, a1, 3, heads, hd)
                 .transpose(2, 1, 3, 0, 4)
                 .reshape(3, a1 * heads, a0, hd))
        qh, kh, vh = qkv_h[0], qkv_h[1], qkv_h[2]
    else:
        s0 = o.shape[0]
        o2d = o.reshape(s0 * a1, d)
        q = linear(u2d, w_eff_q, b_eff_q)
        kv = linear(o2d, jnp.concatenate([w_eff_k, w_eff_v], axis=0),
                    jnp.concatenate([b_eff_k, b_eff_v]))
        qh = (q.reshape(a0, a1, heads, hd).transpose(1, 2, 0, 3)
              .reshape(a1 * heads, a0, hd))
        kvh = (kv.reshape(s0, a1, 2, heads, hd).transpose(2, 1, 3, 0, 4)
               .reshape(2, a1 * heads, s0, hd))
        kh, vh = kvh[0], kvh[1]

    ctx = sdpa(qh, kh, vh, scale=scale)
    ctx2d = (ctx.reshape(a1, heads, a0, hd)
             .transpose(2, 0, 1, 3)
             .reshape(rows_q, d))

    # Out-projection + residual(u) + LayerNorm (norm1) fused in one kernel.
    x1 = linear_residual_layernorm(ctx2d, params["mha_out_w"], params["mha_out_b"],
                                   u2d, params["ln1_g"], params["ln1_b"])

    # ff1 -> GELU (self.act fused into ff1's epilogue).
    f1 = feed_forward(x1, params["ff1_w1"], params["ff1_b1"],
                      params["ff1_w2"], params["ff1_b2"], out_act=True)
    # ff2 with residual(u) + LayerNorm (norm2) fused into its epilogue.
    out2d = feed_forward(f1, params["ff2_w1"], params["ff2_b1"],
                         params["ff2_w2"], params["ff2_b2"], out_act=False,
                         residual=u2d, gamma=params["ln2_g"], beta=params["ln2_b"])
    return out2d.reshape(a0, a1, d)


# ------------------------------------- params / test ------------------------------------

def init_params(key, d_core, heads, max_len=64, dtype=jnp.float32):
    def lin_init(k, dout, din):
        k1, k2 = jax.random.split(k)
        bound = 1.0 / math.sqrt(din)
        w = jax.random.uniform(k1, (dout, din), dtype, -bound, bound)
        b = jax.random.uniform(k2, (dout,), dtype, -bound, bound)
        return w, b

    keys = jax.random.split(key, 13)
    p = {}
    p["qq_w"], p["qq_b"] = lin_init(keys[0], d_core, d_core)
    p["kk_w"], p["kk_b"] = lin_init(keys[1], d_core, d_core)
    p["vv_w"], p["vv_b"] = lin_init(keys[2], d_core, d_core)
    p["mha_in_w"], p["mha_in_b"] = lin_init(keys[3], 3 * d_core, d_core)
    p["mha_out_w"], p["mha_out_b"] = lin_init(keys[4], d_core, d_core)
    p["ff1_w1"], p["ff1_b1"] = lin_init(keys[5], d_core, d_core)
    p["ff1_w2"], p["ff1_b2"] = lin_init(keys[6], d_core, d_core)
    p["ff2_w1"], p["ff2_b1"] = lin_init(keys[7], d_core, d_core)
    p["ff2_w2"], p["ff2_b2"] = lin_init(keys[8], d_core, d_core)
    p["ln1_g"] = (1.0 + 0.1 * jax.random.normal(keys[9], (d_core,))).astype(dtype)
    p["ln1_b"] = (0.1 * jax.random.normal(keys[10], (d_core,))).astype(dtype)
    p["ln2_g"] = (1.0 + 0.1 * jax.random.normal(keys[11], (d_core,))).astype(dtype)
    p["ln2_b"] = (0.1 * jax.random.normal(keys[12], (d_core,))).astype(dtype)

    # Sinusoidal positional-encoding table (sin on even cols, cos on odd cols), as in the
    # PyTorch module; written via scatter so odd d_core also works.
    pos = jnp.arange(max_len, dtype=jnp.float32)[:, None]
    div = jnp.exp(jnp.arange(0, d_core, 2, dtype=jnp.float32)
                  * (-math.log(10000.0) / d_core))
    ang = pos * div
    half = ang.shape[1]
    pe = jnp.zeros((max_len, 2 * half), jnp.float32)
    pe = pe.at[:, 0::2].set(jnp.sin(ang)).at[:, 1::2].set(jnp.cos(ang))
    p["pe"] = pe[:, :d_core].astype(dtype)
    return p


def reference_forward(u, params, *, heads):
    hp = jax.lax.Precision.HIGHEST

    def mm(a, b):
        return jnp.matmul(a, b, precision=hp)

    a0, a1, d = u.shape
    hd = d // heads
    scale = 1.0 / math.sqrt(hd)

    u = u + params["pe"][:a1][None, :, :]
    o = u
    q = mm(u, params["qq_w"].T) + params["qq_b"]
    k = mm(o, params["kk_w"].T) + params["kk_b"]
    v = mm(o, params["vv_w"].T) + params["vv_b"]

    w_in, b_in = params["mha_in_w"], params["mha_in_b"]
    qp = mm(q, w_in[:d].T) + b_in[:d]
    kp = mm(k, w_in[d:2 * d].T) + b_in[d:2 * d]
    vp = mm(v, w_in[2 * d:].T) + b_in[2 * d:]

    def split(x):  # (L, N, D) -> (N, H, L, hd)
        return x.reshape(a0, a1, heads, hd).transpose(1, 2, 0, 3)

    qh, kh, vh = split(qp), split(kp), split(vp)
    s = jnp.einsum("nhqd,nhkd->nhqk", qh * scale, kh, precision=hp)
    pw = jax.nn.softmax(s, axis=-1)
    ctx = jnp.einsum("nhqk,nhkd->nhqd", pw, vh, precision=hp)
    ctx = ctx.transpose(2, 0, 1, 3).reshape(a0, a1, d)
    attn = mm(ctx, params["mha_out_w"].T) + params["mha_out_b"]

    def ln(x, g, b):
        mu = jnp.mean(x, axis=-1, keepdims=True)
        var = jnp.mean((x - mu) ** 2, axis=-1, keepdims=True)
        return (x - mu) / jnp.sqrt(var + _LN_EPS) * g + b

    def ff(x, w1, b1, w2, b2):
        h = jax.nn.gelu(mm(x, w1.T) + b1, approximate=False)
        return mm(h, w2.T) + b2

    x1 = ln(u + attn, params["ln1_g"], params["ln1_b"])
    f1 = jax.nn.gelu(ff(x1, params["ff1_w1"], params["ff1_b1"],
                        params["ff1_w2"], params["ff1_b2"]), approximate=False)
    f2 = ff(f1, params["ff2_w1"], params["ff2_b1"],
            params["ff2_w2"], params["ff2_b2"])
    return ln(u + f2, params["ln2_g"], params["ln2_b"])


if __name__ == "__main__":
    batch, seq, d_core, heads = 2, 8, 32, 4
    key = jax.random.PRNGKey(0)
    ku, kp = jax.random.split(key)

    u = jax.random.normal(ku, (batch, seq, d_core), jnp.float32)
    params = init_params(kp, d_core, heads, max_len=64)

    out = jax.jit(functools.partial(mha_block_forward, heads=heads))(u, params)
    out = jax.block_until_ready(out)

    ref = reference_forward(u, params, heads=heads)
    assert out.shape == (batch, seq, d_core)
    max_err = float(jnp.max(jnp.abs(out - ref)))
    assert jnp.allclose(out, ref, atol=3e-3, rtol=3e-3), max_err

    print("KERNEL_OK")
</pallas_src>

<mosaic_0001>
module attributes {stable_mosaic.version = 11 : i64} {
  func.func @_k(%arg0: i32, %arg1: i32, %arg2: memref<8x128xf32, #tpu.memory_space<vmem>>, %arg3: memref<128x128xf32, #tpu.memory_space<vmem>>, %arg4: memref<1x128xf32, #tpu.memory_space<vmem>>, %arg5: memref<8x128xf32, #tpu.memory_space<vmem>>) attributes {dimension_semantics = [#tpu.dimension_semantics<arbitrary>, #tpu.dimension_semantics<arbitrary>], iteration_bounds = array<i64: 2, 1>, scalar_prefetch = 0 : i64, scratch_operands = 0 : i64, tpu.core_type = #tpu.core_type<tc>, window_params = [{transform_indices = @transform_0, window_bounds = array<i64: 8, 128>}, {pipeline_mode = #tpu.pipeline_mode<synchronous>, transform_indices = @transform_1, window_bounds = array<i64: 128, 128>}, {pipeline_mode = #tpu.pipeline_mode<synchronous>, transform_indices = @transform_2, window_bounds = array<i64: 1, 128>}, {transform_indices = @transform_3, window_bounds = array<i64: 8, 128>}]} {
    %c0 = arith.constant 0 : index
    %c0_0 = arith.constant 0 : index
    %0 = vector.load %arg2[%c0, %c0_0] : memref<8x128xf32, #tpu.memory_space<vmem>>, vector<8x128xf32>
    %c0_1 = arith.constant 0 : index
    %c0_2 = arith.constant 0 : index
    %1 = vector.load %arg3[%c0_1, %c0_2] : memref<128x128xf32, #tpu.memory_space<vmem>>, vector<128x128xf32>
    %cst = arith.constant dense<0.000000e+00> : vector<8x128xf32>
    %2 = tpu.matmul %0, %1, %cst {dimension_numbers = #tpu.dot_dimension_numbers<[1], [0], [0], [1], [0, 0, 1, 1], [], []>} : vector<8x128xf32>, vector<128x128xf32>, vector<8x128xf32> -> vector<8x128xf32>
    %c0_3 = arith.constant 0 : index
    %c0_4 = arith.constant 0 : index
    %3 = vector.load %arg4[%c0_3, %c0_4] : memref<1x128xf32, #tpu.memory_space<vmem>>, vector<1x128xf32>
    %4 = vector.broadcast %3 : vector<1x128xf32> to vector<8x128xf32>
    %5 = arith.addf %2, %4 : vector<8x128xf32>
    %c0_5 = arith.constant 0 : index
    %c0_6 = arith.constant 0 : index
    %6 = vector.load %arg5[%c0_5, %c0_6] : memref<8x128xf32, #tpu.memory_space<vmem>>, vector<8x128xf32>
    tpu.vector_store %arg5[%c0_5, %c0_6], %5 {strides = array<i32>} : memref<8x128xf32, #tpu.memory_space<vmem>>, vector<8x128xf32>,
    return
  }
  func.func @transform_0(%arg0: i32, %arg1: i32) -> (i32, i32) {
    %c0_i32 = arith.constant 0 : i32
    %c0_i32_0 = arith.constant 0 : i32
    return %arg0, %c0_i32 : i32, i32
  }
  func.func @transform_1(%arg0: i32, %arg1: i32) -> (i32, i32) {
    %c0_i32 = arith.constant 0 : i32
    %c0_i32_0 = arith.constant 0 : i32
    return %c0_i32, %arg1 : i32, i32
  }
  func.func @transform_2(%arg0: i32, %arg1: i32) -> (i32, i32) {
    %c0_i32 = arith.constant 0 : i32
    %c0_i32_0 = arith.constant 0 : i32
    return %c0_i32, %arg1 : i32, i32
  }
  func.func @transform_3(%arg0: i32, %arg1: i32) -> (i32, i32) {
    %c0_i32 = arith.constant 0 : i32
    return %arg0, %arg1 : i32, i32
  }
}

module attributes {stable_mosaic.version = 11 : i64} {
  func.func @_add_pe_kernel(%arg0: i32, %arg1: memref<1x8x32xf32, #tpu.memory_space<vmem>>, %arg2: memref<8x32xf32, #tpu.memory_space<vmem>>, %arg3: memref<1x8x32xf32, #tpu.memory_space<vmem>>) attributes {dimension_semantics = [#tpu.dimension_semantics<parallel>], iteration_bounds = array<i64: 2>, scalar_prefetch = 0 : i64, scratch_operands = 0 : i64, tpu.core_type = #tpu.core_type<tc>, window_params = [{transform_indices = @transform_0, window_bounds = array<i64: 1, 8, 32>}, {pipeline_mode = #tpu.pipeline_mode<synchronous>, transform_indices = @transform_1, window_bounds = array<i64: 8, 32>}, {transform_indices = @transform_2, window_bounds = array<i64: 1, 8, 32>}]} {
    %c0 = arith.constant 0 : index
    %c0_0 = arith.constant 0 : index
    %c0_1 = arith.constant 0 : index
    %0 = vector.load %arg1[%c0, %c0_0, %c0_1] : memref<1x8x32xf32, #tpu.memory_space<vmem>>, vector<1x8x32xf32>
    %c0_2 = arith.constant 0 : index
    %c0_3 = arith.constant 0 : index
    %1 = vector.load %arg2[%c0_2, %c0_3] : memref<8x32xf32, #tpu.memory_space<vmem>>, vector<8x32xf32>
    %2 = vector.shape_cast %1 : vector<8x32xf32> to vector<1x8x32xf32>
    %3 = arith.addf %0, %2 : vector<1x8x32xf32>
    %c0_4 = arith.constant 0 : index
    %c0_5 = arith.constant 0 : index
    %c0_6 = arith.constant 0 : index
    %4 = vector.load %arg3[%c0_4, %c0_5, %c0_6] : memref<1x8x32xf32, #tpu.memory_space<vmem>>, vector<1x8x32xf32>
    tpu.vector_store %arg3[%c0_4, %c0_5, %c0_6], %3 {strides = array<i32>} : memref<1x8x32xf32, #tpu.memory_space<vmem>>, vector<1x8x32xf32>,
    return
  }
  func.func @transform_0(%arg0: i32) -> (i32, i32, i32) {
    %c0_i32 = arith.constant 0 : i32
    %c0_i32_0 = arith.constant 0 : i32
    %c0_i32_1 = arith.constant 0 : i32
    return %arg0, %c0_i32, %c0_i32_0 : i32, i32, i32
  }
  func.func @transform_1(%arg0: i32) -> (i32, i32) {
    %c0_i32 = arith.constant 0 : i32
    %c0_i32_0 = arith.constant 0 : i32
    %c0_i32_1 = arith.constant 0 : i32
    return %c0_i32, %c0_i32_0 : i32, i32
  }
  func.func @transform_2(%arg0: i32) -> (i32, i32, i32) {
    %c0_i32 = arith.constant 0 : i32
    %c0_i32_0 = arith.constant 0 : i32
    %c0_i32_1 = arith.constant 0 : i32
    return %arg0, %c0_i32, %c0_i32_0 : i32, i32, i32
  }
}

module attributes {stable_mosaic.version = 11 : i64} {
  func.func @_linear_res_ln_kernel(%arg0: i32, %arg1: i32, %arg2: memref<8x32xf32, #tpu.memory_space<vmem>>, %arg3: memref<32x32xf32, #tpu.memory_space<vmem>>, %arg4: memref<1x32xf32, #tpu.memory_space<vmem>>, %arg5: memref<8x32xf32, #tpu.memory_space<vmem>>, %arg6: memref<1x32xf32, #tpu.memory_space<vmem>>, %arg7: memref<1x32xf32, #tpu.memory_space<vmem>>, %arg8: memref<8x32xf32, #tpu.memory_space<vmem>>, %arg9: memref<8x32xf32, #tpu.memory_space<vmem>>) attributes {dimension_semantics = [#tpu.dimension_semantics<parallel>, #tpu.dimension_semantics<arbitrary>], iteration_bounds = array<i64: 2, 1>, scalar_prefetch = 0 : i64, scratch_operands = 1 : i64, tpu.core_type = #tpu.core_type<tc>, window_params = [{transform_indices = @transform_0, window_bounds = array<i64: 8, 32>}, {transform_indices = @transform_1, window_bounds = array<i64: 32, 32>}, {pipeline_mode = #tpu.pipeline_mode<synchronous>, transform_indices = @transform_2, window_bounds = array<i64: 1, 32>}, {transform_indices = @transform_3, window_bounds = array<i64: 8, 32>}, {pipeline_mode = #tpu.pipeline_mode<synchronous>, transform_indices = @transform_4, window_bounds = array<i64: 1, 32>}, {pipeline_mode = #tpu.pipeline_mode<synchronous>, transform_indices = @transform_5, window_bounds = array<i64: 1, 32>}, {transform_indices = @transform_6, window_bounds = array<i64: 8, 32>}]} {
    %c0_i32 = arith.constant 0 : i32
    %0 = arith.cmpi eq, %arg1, %c0_i32 : i32
    %1 = arith.extui %0 : i1 to i32
    %c0_i32_0 = arith.constant 0 : i32
    %2 = arith.cmpi ne, %1, %c0_i32_0 : i32
    scf.if %2 {
      %cst_10 = arith.constant 0.000000e+00 : f32
      %12 = vector.broadcast %cst_10 : f32 to vector<8x32xf32>
      %c0_11 = arith.constant 0 : index
      %c0_12 = arith.constant 0 : index
      %13 = vector.load %arg9[%c0_11, %c0_12] : memref<8x32xf32, #tpu.memory_space<vmem>>, vector<8x32xf32>
      tpu.vector_store %arg9[%c0_11, %c0_12], %12 {strides = array<i32>} : memref<8x32xf32, #tpu.memory_space<vmem>>, vector<8x32xf32>,
    } else {
    }
    %c0 = arith.constant 0 : index
    %c0_1 = arith.constant 0 : index
    %3 = vector.load %arg9[%c0, %c0_1] : memref<8x32xf32, #tpu.memory_space<vmem>>, vector<8x32xf32>
    %c0_2 = arith.constant 0 : index
    %c0_3 = arith.constant 0 : index
    %4 = vector.load %arg2[%c0_2, %c0_3] : memref<8x32xf32, #tpu.memory_space<vmem>>, vector<8x32xf32>
    %c0_4 = arith.constant 0 : index
    %c0_5 = arith.constant 0 : index
    %5 = vector.load %arg3[%c0_4, %c0_5] : memref<32x32xf32, #tpu.memory_space<vmem>>, vector<32x32xf32>
    %cst = arith.constant dense<0.000000e+00> : vector<8x32xf32>
    %6 = tpu.matmul %4, %5, %cst {dimension_numbers = #tpu.dot_dimension_numbers<[1], [0], [0], [1], [0, 0, 1, 1], [], []>} : vector<8x32xf32>, vector<32x32xf32>, vector<8x32xf32> -> vector<8x32xf32>
    %7 = arith.addf %3, %6 : vector<8x32xf32>
    %c0_6 = arith.constant 0 : index
    %c0_7 = arith.constant 0 : index
    %8 = vector.load %arg9[%c0_6, %c0_7] : memref<8x32xf32, #tpu.memory_space<vmem>>, vector<8x32xf32>
    tpu.vector_store %arg9[%c0_6, %c0_7], %7 {strides = array<i32>} : memref<8x32xf32, #tpu.memory_space<vmem>>, vector<8x32xf32>,
    %c0_i32_8 = arith.constant 0 : i32
    %9 = arith.cmpi eq, %arg1, %c0_i32_8 : i32
    %10 = arith.extui %9 : i1 to i32
    %c0_i32_9 = arith.constant 0 : i32
    %11 = arith.cmpi ne, %10, %c0_i32_9 : i32
    scf.if %11 {
      %c0_10 = arith.constant 0 : index
      %c0_11 = arith.constant 0 : index
      %12 = vector.load %arg9[%c0_10, %c0_11] : memref<8x32xf32, #tpu.memory_space<vmem>>, vector<8x32xf32>
      %c0_12 = arith.constant 0 : index
      %c0_13 = arith.constant 0 : index
      %13 = vector.load %arg4[%c0_12, %c0_13] : memref<1x32xf32, #tpu.memory_space<vmem>>, vector<1x32xf32>
      %14 = vector.broadcast %13 : vector<1x32xf32> to vector<8x32xf32>
      %15 = arith.addf %12, %14 : vector<8x32xf32>
      %c0_14 = arith.constant 0 : index
      %c0_15 = arith.constant 0 : index
      %16 = vector.load %arg5[%c0_14, %c0_15] : memref<8x32xf32, #tpu.memory_space<vmem>>, vector<8x32xf32>
      %17 = arith.addf %15, %16 : vector<8x32xf32>
      %cst_16 = arith.constant dense<0.000000e+00> : vector<8xf32>
      %18 = vector.multi_reduction <add>, %17, %cst_16 [1] : vector<8x32xf32> to vector<8xf32>
      %19 = vector.shape_cast %18 : vector<8xf32> to vector<8x1xf32>
      %cst_17 = arith.constant 3.200000e+01 : f32
      %20 = vector.broadcast %cst_17 : f32 to vector<8x1xf32>
      %21 = arith.divf %19, %20 : vector<8x1xf32>
      %22 = vector.broadcast %21 : vector<8x1xf32> to vector<8x32xf32>
      %23 = arith.subf %17, %22 : vector<8x32xf32>
      %24 = arith.mulf %23, %23 : vector<8x32xf32>
      %cst_18 = arith.constant dense<0.000000e+00> : vector<8xf32>
      %25 = vector.multi_reduction <add>, %24, %cst_18 [1] : vector<8x32xf32> to vector<8xf32>
      %26 = vector.shape_cast %25 : vector<8xf32> to vector<8x1xf32>
      %cst_19 = arith.constant 3.200000e+01 : f32
      %27 = vector.broadcast %cst_19 : f32 to vector<8x1xf32>
      %28 = arith.divf %26, %27 : vector<8x1xf32>
      %cst_20 = arith.constant 9.99999974E-6 : f32
      %29 = vector.broadcast %cst_20 : f32 to vector<8x1xf32>
      %30 = arith.addf %28, %29 : vector<8x1xf32>
      %31 = math.rsqrt %30 : vector<8x1xf32>
      %32 = vector.broadcast %31 : vector<8x1xf32> to vector<8x32xf32>
      %33 = arith.mulf %23, %32 : vector<8x32xf32>
      %c0_21 = arith.constant 0 : index
      %c0_22 = arith.constant 0 : index
      %34 = vector.load %arg6[%c0_21, %c0_22] : memref<1x32xf32, #tpu.memory_space<vmem>>, vector<1x32xf32>
      %35 = vector.broadcast %34 : vector<1x32xf32> to vector<8x32xf32>
      %36 = arith.mulf %33, %35 : vector<8x32xf32>
      %c0_23 = arith.constant 0 : index
      %c0_24 = arith.constant 0 : index
      %37 = vector.load %arg7[%c0_23, %c0_24] : memref<1x32xf32, #tpu.memory_space<vmem>>, vector<1x32xf32>
      %38 = vector.broadcast %37 : vector<1x32xf32> to vector<8x32xf32>
      %39 = arith.addf %36, %38 : vector<8x32xf32>
      %c0_25 = arith.constant 0 : index
      %c0_26 = arith.constant 0 : index
      %40 = vector.load %arg8[%c0_25, %c0_26] : memref<8x32xf32, #tpu.memory_space<vmem>>, vector<8x32xf32>
      tpu.vector_store %arg8[%c0_25, %c0_26], %39 {strides = array<i32>} : memref<8x32xf32, #tpu.memory_space<vmem>>, vector<8x32xf32>,
    } else {
    }
    return
  }
  func.func @transform_0(%arg0: i32, %arg1: i32) -> (i32, i32) {
    %c0_i32 = arith.constant 0 : i32
    return %arg0, %arg1 : i32, i32
  }
  func.func @transform_1(%arg0: i32, %arg1: i32) -> (i32, i32) {
    %c0_i32 = arith.constant 0 : i32
    %c0_i32_0 = arith.constant 0 : i32
    return %arg1, %c0_i32 : i32, i32
  }
  func.func @transform_2(%arg0: i32, %arg1: i32) -> (i32, i32) {
    %c0_i32 = arith.constant 0 : i32
    %c0_i32_0 = arith.constant 0 : i32
    %c0_i32_1 = arith.constant 0 : i32
    return %c0_i32, %c0_i32_0 : i32, i32
  }
  func.func @transform_3(%arg0: i32, %arg1: i32) -> (i32, i32) {
    %c0_i32 = arith.constant 0 : i32
    %c0_i32_0 = arith.constant 0 : i32
    return %arg0, %c0_i32 : i32, i32
  }
  func.func @transform_4(%arg0: i32, %arg1: i32) -> (i32, i32) {
    %c0_i32 = arith.constant 0 : i32
    %c0_i32_0 = arith.constant 0 : i32
    %c0_i32_1 = arith.constant 0 : i32
    return %c0_i32, %c0_i32_0 : i32, i32
  }
  func.func @transform_5(%arg0: i32, %arg1: i32) -> (i32, i32) {
    %c0_i32 = arith.constant 0 : i32
    %c0_i32_0 = arith.constant 0 : i32
    %c0_i32_1 = arith.constant 0 : i32
    return %c0_i32, %c0_i32_0 : i32, i32
  }
  func.func @transform_6(%arg0: i32, %arg1: i32) -> (i32, i32) {
    %c0_i32 = arith.constant 0 : i32
    %c0_i32_0 = arith.constant 0 : i32
    return %arg0, %c0_i32 : i32, i32
  }
}

module attributes {stable_mosaic.version = 11 : i64} {
  func.func @_linear_kernel(%arg0: i32, %arg1: i32, %arg2: memref<8x32xf32, #tpu.memory_space<vmem>>, %arg3: memref<32x96xf32, #tpu.memory_space<vmem>>, %arg4: memref<1x96xf32, #tpu.memory_space<vmem>>, %arg5: memref<8x96xf32, #tpu.memory_space<vmem>>) attributes {dimension_semantics = [#tpu.dimension_semantics<parallel>, #tpu.dimension_semantics<parallel>], iteration_bounds = array<i64: 2, 1>, scalar_prefetch = 0 : i64, scratch_operands = 0 : i64, tpu.core_type = #tpu.core_type<tc>, window_params = [{transform_indices = @transform_0, window_bounds = array<i64: 8, 32>}, {transform_indices = @transform_1, window_bounds = array<i64: 32, 96>}, {transform_indices = @transform_2, window_bounds = array<i64: 1, 96>}, {transform_indices = @transform_3, window_bounds = array<i64: 8, 96>}]} {
    %c0 = arith.constant 0 : index
    %c0_0 = arith.constant 0 : index
    %0 = vector.load %arg2[%c0, %c0_0] : memref<8x32xf32, #tpu.memory_space<vmem>>, vector<8x32xf32>
    %c0_1 = arith.constant 0 : index
    %c0_2 = arith.constant 0 : index
    %1 = vector.load %arg3[%c0_1, %c0_2] : memref<32x96xf32, #tpu.memory_space<vmem>>, vector<32x96xf32>
    %cst = arith.constant dense<0.000000e+00> : vector<8x96xf32>
    %2 = tpu.matmul %0, %1, %cst {dimension_numbers = #tpu.dot_dimension_numbers<[1], [0], [0], [1], [0, 0, 1, 1], [], []>} : vector<8x32xf32>, vector<32x96xf32>, vector<8x96xf32> -> vector<8x96xf32>
    %c0_3 = arith.constant 0 : index
    %c0_4 = arith.constant 0 : index
    %3 = vector.load %arg4[%c0_3, %c0_4] : memref<1x96xf32, #tpu.memory_space<vmem>>, vector<1x96xf32>
    %4 = vector.broadcast %3 : vector<1x96xf32> to vector<8x96xf32>
    %5 = arith.addf %2, %4 : vector<8x96xf32>
    %c0_5 = arith.constant 0 : index
    %c0_6 = arith.constant 0 : index
    %6 = vector.load %arg5[%c0_5, %c0_6] : memref<8x96xf32, #tpu.memory_space<vmem>>, vector<8x96xf32>
    tpu.vector_store %arg5[%c0_5, %c0_6], %5 {strides = array<i32>} : memref<8x96xf32, #tpu.memory_space<vmem>>, vector<8x96xf32>,
    return
  }
  func.func @transform_0(%arg0: i32, %arg1: i32) -> (i32, i32) {
    %c0_i32 = arith.constant 0 : i32
    %c0_i32_0 = arith.constant 0 : i32
    return %arg0, %c0_i32 : i32, i32
  }
  func.func @transform_1(%arg0: i32, %arg1: i32) -> (i32, i32) {
    %c0_i32 = arith.constant 0 : i32
    %c0_i32_0 = arith.constant 0 : i32
    return %c0_i32, %arg1 : i32, i32
  }
  func.func @transform_2(%arg0: i32, %arg1: i32) -> (i32, i32) {
    %c0_i32 = arith.constant 0 : i32
    %c0_i32_0 = arith.constant 0 : i32
    return %c0_i32, %arg1 : i32, i32
  }
  func.func @transform_3(%arg0: i32, %arg1: i32) -> (i32, i32) {
    %c0_i32 = arith.constant 0 : i32
    return %arg0, %arg1 : i32, i32
  }
}

module attributes {stable_mosaic.version = 11 : i64} {
  func.func @_sdpa_kernel(%arg0: i32, %arg1: memref<16x2x8xf32, #tpu.memory_space<vmem>>, %arg2: memref<16x2x8xf32, #tpu.memory_space<vmem>>, %arg3: memref<16x2x8xf32, #tpu.memory_space<vmem>>, %arg4: memref<16x2x8xf32, #tpu.memory_space<vmem>>) attributes {dimension_semantics = [#tpu.dimension_semantics<parallel>], iteration_bounds = array<i64: 2>, scalar_prefetch = 0 : i64, scratch_operands = 0 : i64, tpu.core_type = #tpu.core_type<tc>, window_params = [{transform_indices = @transform_0, window_bounds = array<i64: 16, 2, 8>}, {transform_indices = @transform_1, window_bounds = array<i64: 16, 2, 8>}, {transform_indices = @transform_2, window_bounds = array<i64: 16, 2, 8>}, {transform_indices = @transform_3, window_bounds = array<i64: 16, 2, 8>}]} {
    %c0 = arith.constant 0 : index
    %c0_0 = arith.constant 0 : index
    %c0_1 = arith.constant 0 : index
    %0 = vector.load %arg1[%c0, %c0_0, %c0_1] : memref<16x2x8xf32, #tpu.memory_space<vmem>>, vector<16x2x8xf32>
    %c0_2 = arith.constant 0 : index
    %c0_3 = arith.constant 0 : index
    %c0_4 = arith.constant 0 : index
    %1 = vector.load %arg2[%c0_2, %c0_3, %c0_4] : memref<16x2x8xf32, #tpu.memory_space<vmem>>, vector<16x2x8xf32>
    %c0_5 = arith.constant 0 : index
    %c0_6 = arith.constant 0 : index
    %c0_7 = arith.constant 0 : index
    %2 = vector.load %arg3[%c0_5, %c0_6, %c0_7] : memref<16x2x8xf32, #tpu.memory_space<vmem>>, vector<16x2x8xf32>
    "tpu.trace_start"() <{level = 10 : i32, message = "bqd,bkd->bqk"}> : () -> ()
    %cst = arith.constant dense<0.000000e+00> : vector<16x2x2xf32>
    %3 = tpu.matmul %0, %1, %cst {dimension_numbers = #tpu.dot_dimension_numbers<[2], [2], [1], [1], [0, 0, 0, 1, 1, 1], [0], [0]>} : vector<16x2x8xf32>, vector<16x2x8xf32>, vector<16x2x2xf32> -> vector<16x2x2xf32>
    "tpu.trace_stop"() : () -> ()
    %cst_8 = arith.constant 0.353553385 : f32
    %4 = vector.broadcast %cst_8 : f32 to vector<16x2x2xf32>
    %5 = arith.mulf %3, %4 : vector<16x2x2xf32>
    %cst_9 = arith.constant dense<0xFF800000> : vector<16x2xf32>
    %6 = vector.multi_reduction <maximumf>, %5, %cst_9 [2] : vector<16x2x2xf32> to vector<16x2xf32>
    %7 = vector.shape_cast %6 : vector<16x2xf32> to vector<16x2x1xf32>
    %8 = vector.broadcast %7 : vector<16x2x1xf32> to vector<16x2x2xf32>
    %9 = arith.subf %5, %8 : vector<16x2x2xf32>
    %10 = math.exp %9 : vector<16x2x2xf32>
    %cst_10 = arith.constant dense<0.000000e+00> : vector<16x2xf32>
    %11 = vector.multi_reduction <add>, %10, %cst_10 [2] : vector<16x2x2xf32> to vector<16x2xf32>
    %12 = vector.shape_cast %11 : vector<16x2xf32> to vector<16x2x1xf32>
    "tpu.trace_start"() <{level = 10 : i32, message = "bqk,bkd->bqd"}> : () -> ()
    %cst_11 = arith.constant dense<0.000000e+00> : vector<16x2x8xf32>
    %13 = tpu.matmul %10, %2, %cst_11 {dimension_numbers = #tpu.dot_dimension_numbers<[2], [1], [1], [2], [0, 0, 0, 1, 1, 2], [0], [0]>} : vector<16x2x2xf32>, vector<16x2x8xf32>, vector<16x2x8xf32> -> vector<16x2x8xf32>
    "tpu.trace_stop"() : () -> ()
    %14 = tpu.reciprocal %12 {approx = true} : vector<16x2x1xf32> -> vector<16x2x1xf32>
    %15 = vector.broadcast %14 : vector<16x2x1xf32> to vector<16x2x8xf32>
    %16 = arith.mulf %13, %15 : vector<16x2x8xf32>
    %c0_12 = arith.constant 0 : index
    %c0_13 = arith.constant 0 : index
    %c0_14 = arith.constant 0 : index
    %17 = vector.load %arg4[%c0_12, %c0_13, %c0_14] : memref<16x2x8xf32, #tpu.memory_space<vmem>>, vector<16x2x8xf32>
    tpu.vector_store %arg4[%c0_12, %c0_13, %c0_14], %16 {strides = array<i32>} : memref<16x2x8xf32, #tpu.memory_space<vmem>>, vector<16x2x8xf32>,
    return
  }
  func.func @transform_0(%arg0: i32) -> (i32, i32, i32) {
    %c0_i32 = arith.constant 0 : i32
    %c0_i32_0 = arith.constant 0 : i32
    %c0_i32_1 = arith.constant 0 : i32
    return %arg0, %c0_i32, %c0_i32_0 : i32, i32, i32
  }
  func.func @transform_1(%arg0: i32) -> (i32, i32, i32) {
    %c0_i32 = arith.constant 0 : i32
    %c0_i32_0 = arith.constant 0 : i32
    %c0_i32_1 = arith.constant 0 : i32
    return %arg0, %c0_i32, %c0_i32_0 : i32, i32, i32
  }
  func.func @transform_2(%arg0: i32) -> (i32, i32, i32) {
    %c0_i32 = arith.constant 0 : i32
    %c0_i32_0 = arith.constant 0 : i32
    %c0_i32_1 = arith.constant 0 : i32
    return %arg0, %c0_i32, %c0_i32_0 : i32, i32, i32
  }
  func.func @transform_3(%arg0: i32) -> (i32, i32, i32) {
    %c0_i32 = arith.constant 0 : i32
    %c0_i32_0 = arith.constant 0 : i32
    %c0_i32_1 = arith.constant 0 : i32
    return %arg0, %c0_i32, %c0_i32_0 : i32, i32, i32
  }
}

module attributes {stable_mosaic.version = 11 : i64} {
  func.func @_ff_kernel(%arg0: i32, %arg1: i32, %arg2: memref<8x32xf32, #tpu.memory_space<vmem>>, %arg3: memref<32x32xf32, #tpu.memory_space<vmem>>, %arg4: memref<1x32xf32, #tpu.memory_space<vmem>>, %arg5: memref<32x32xf32, #tpu.memory_space<vmem>>, %arg6: memref<1x32xf32, #tpu.memory_space<vmem>>, %arg7: memref<8x32xf32, #tpu.memory_space<vmem>>, %arg8: memref<8x32xf32, #tpu.memory_space<vmem>>) attributes {dimension_semantics = [#tpu.dimension_semantics<parallel>, #tpu.dimension_semantics<arbitrary>], iteration_bounds = array<i64: 2, 1>, scalar_prefetch = 0 : i64, scratch_operands = 1 : i64, tpu.core_type = #tpu.core_type<tc>, window_params = [{transform_indices = @transform_0, window_bounds = array<i64: 8, 32>}, {transform_indices = @transform_1, window_bounds = array<i64: 32, 32>}, {transform_indices = @transform_2, window_bounds = array<i64: 1, 32>}, {transform_indices = @transform_3, window_bounds = array<i64: 32, 32>}, {pipeline_mode = #tpu.pipeline_mode<synchronous>, transform_indices = @transform_4, window_bounds = array<i64: 1, 32>}, {transform_indices = @transform_5, window_bounds = array<i64: 8, 32>}]} {
    %c0_i32 = arith.constant 0 : i32
    %0 = arith.cmpi eq, %arg1, %c0_i32 : i32
    %1 = arith.extui %0 : i1 to i32
    %c0_i32_0 = arith.constant 0 : i32
    %2 = arith.cmpi ne, %1, %c0_i32_0 : i32
    scf.if %2 {
      %cst_18 = arith.constant 0.000000e+00 : f32
      %25 = vector.broadcast %cst_18 : f32 to vector<8x32xf32>
      %c0_19 = arith.constant 0 : index
      %c0_20 = arith.constant 0 : index
      %26 = vector.load %arg8[%c0_19, %c0_20] : memref<8x32xf32, #tpu.memory_space<vmem>>, vector<8x32xf32>
      tpu.vector_store %arg8[%c0_19, %c0_20], %25 {strides = array<i32>} : memref<8x32xf32, #tpu.memory_space<vmem>>, vector<8x32xf32>,
    } else {
    }
    %c0 = arith.constant 0 : index
    %c0_1 = arith.constant 0 : index
    %3 = vector.load %arg2[%c0, %c0_1] : memref<8x32xf32, #tpu.memory_space<vmem>>, vector<8x32xf32>
    %c0_2 = arith.constant 0 : index
    %c0_3 = arith.constant 0 : index
    %4 = vector.load %arg3[%c0_2, %c0_3] : memref<32x32xf32, #tpu.memory_space<vmem>>, vector<32x32xf32>
    %cst = arith.constant dense<0.000000e+00> : vector<8x32xf32>
    %5 = tpu.matmul %3, %4, %cst {dimension_numbers = #tpu.dot_dimension_numbers<[1], [0], [0], [1], [0, 0, 1, 1], [], []>} : vector<8x32xf32>, vector<32x32xf32>, vector<8x32xf32> -> vector<8x32xf32>
    %c0_4 = arith.constant 0 : index
    %c0_5 = arith.constant 0 : index
    %6 = vector.load %arg4[%c0_4, %c0_5] : memref<1x32xf32, #tpu.memory_space<vmem>>, vector<1x32xf32>
    %7 = vector.broadcast %6 : vector<1x32xf32> to vector<8x32xf32>
    %8 = arith.addf %5, %7 : vector<8x32xf32>
    %cst_6 = arith.constant 5.000000e-01 : f32
    %9 = vector.broadcast %cst_6 : f32 to vector<8x32xf32>
    %10 = arith.mulf %9, %8 : vector<8x32xf32>
    %cst_7 = arith.constant 0.707106769 : f32
    %11 = vector.broadcast %cst_7 : f32 to vector<8x32xf32>
    %12 = arith.mulf %8, %11 : vector<8x32xf32>
    %13 = math.erf %12 : vector<8x32xf32>
    %cst_8 = arith.constant 1.000000e+00 : f32
    %14 = vector.broadcast %cst_8 : f32 to vector<8x32xf32>
    %15 = arith.addf %14, %13 : vector<8x32xf32>
    %16 = arith.mulf %10, %15 : vector<8x32xf32>
    %c0_9 = arith.constant 0 : index
    %c0_10 = arith.constant 0 : index
    %17 = vector.load %arg8[%c0_9, %c0_10] : memref<8x32xf32, #tpu.memory_space<vmem>>, vector<8x32xf32>
    %c0_11 = arith.constant 0 : index
    %c0_12 = arith.constant 0 : index
    %18 = vector.load %arg5[%c0_11, %c0_12] : memref<32x32xf32, #tpu.memory_space<vmem>>, vector<32x32xf32>
    %cst_13 = arith.constant dense<0.000000e+00> : vector<8x32xf32>
    %19 = tpu.matmul %16, %18, %cst_13 {dimension_numbers = #tpu.dot_dimension_numbers<[1], [0], [0], [1], [0, 0, 1, 1], [], []>} : vector<8x32xf32>, vector<32x32xf32>, vector<8x32xf32> -> vector<8x32xf32>
    %20 = arith.addf %17, %19 : vector<8x32xf32>
    %c0_14 = arith.constant 0 : index
    %c0_15 = arith.constant 0 : index
    %21 = vector.load %arg8[%c0_14, %c0_15] : memref<8x32xf32, #tpu.memory_space<vmem>>, vector<8x32xf32>
    tpu.vector_store %arg8[%c0_14, %c0_15], %20 {strides = array<i32>} : memref<8x32xf32, #tpu.memory_space<vmem>>, vector<8x32xf32>,
    %c0_i32_16 = arith.constant 0 : i32
    %22 = arith.cmpi eq, %arg1, %c0_i32_16 : i32
    %23 = arith.extui %22 : i1 to i32
    %c0_i32_17 = arith.constant 0 : i32
    %24 = arith.cmpi ne, %23, %c0_i32_17 : i32
    scf.if %24 {
      %c0_18 = arith.constant 0 : index
      %c0_19 = arith.constant 0 : index
      %25 = vector.load %arg8[%c0_18, %c0_19] : memref<8x32xf32, #tpu.memory_space<vmem>>, vector<8x32xf32>
      %c0_20 = arith.constant 0 : index
      %c0_21 = arith.constant 0 : index
      %26 = vector.load %arg6[%c0_20, %c0_21] : memref<1x32xf32, #tpu.memory_space<vmem>>, vector<1x32xf32>
      %27 = vector.broadcast %26 : vector<1x32xf32> to vector<8x32xf32>
      %28 = arith.addf %25, %27 : vector<8x32xf32>
      %cst_22 = arith.constant 5.000000e-01 : f32
      %29 = vector.broadcast %cst_22 : f32 to vector<8x32xf32>
      %30 = arith.mulf %29, %28 : vector<8x32xf32>
      %cst_23 = arith.constant 0.707106769 : f32
      %31 = vector.broadcast %cst_23 : f32 to vector<8x32xf32>
      %32 = arith.mulf %28, %31 : vector<8x32xf32>
      %33 = math.erf %32 : vector<8x32xf32>
      %cst_24 = arith.constant 1.000000e+00 : f32
      %34 = vector.broadcast %cst_24 : f32 to vector<8x32xf32>
      %35 = arith.addf %34, %33 : vector<8x32xf32>
      %36 = arith.mulf %30, %35 : vector<8x32xf32>
      %c0_25 = arith.constant 0 : index
      %c0_26 = arith.constant 0 : index
      %37 = vector.load %arg7[%c0_25, %c0_26] : memref<8x32xf32, #tpu.memory_space<vmem>>, vector<8x32xf32>
      tpu.vector_store %arg7[%c0_25, %c0_26], %36 {strides = array<i32>} : memref<8x32xf32, #tpu.memory_space<vmem>>, vector<8x32xf32>,
    } else {
    }
    return
  }
  func.func @transform_0(%arg0: i32, %arg1: i32) -> (i32, i32) {
    %c0_i32 = arith.constant 0 : i32
    %c0_i32_0 = arith.constant 0 : i32
    return %arg0, %c0_i32 : i32, i32
  }
  func.func @transform_1(%arg0: i32, %arg1: i32) -> (i32, i32) {
    %c0_i32 = arith.constant 0 : i32
    %c0_i32_0 = arith.constant 0 : i32
    return %c0_i32, %arg1 : i32, i32
  }
  func.func @transform_2(%arg0: i32, %arg1: i32) -> (i32, i32) {
    %c0_i32 = arith.constant 0 : i32
    %c0_i32_0 = arith.constant 0 : i32
    return %c0_i32, %arg1 : i32, i32
  }
  func.func @transform_3(%arg0: i32, %arg1: i32) -> (i32, i32) {
    %c0_i32 = arith.constant 0 : i32
    %c0_i32_0 = arith.constant 0 : i32
    return %arg1, %c0_i32 : i32, i32
  }
  func.func @transform_4(%arg0: i32, %arg1: i32) -> (i32, i32) {
    %c0_i32 = arith.constant 0 : i32
    %c0_i32_0 = arith.constant 0 : i32
    %c0_i32_1 = arith.constant 0 : i32
    return %c0_i32, %c0_i32_0 : i32, i32
  }
  func.func @transform_5(%arg0: i32, %arg1: i32) -> (i32, i32) {
    %c0_i32 = arith.constant 0 : i32
    %c0_i32_0 = arith.constant 0 : i32
    return %arg0, %c0_i32 : i32, i32
  }
}

module attributes {stable_mosaic.version = 11 : i64} {
  func.func @_ff_kernel(%arg0: i32, %arg1: i32, %arg2: memref<8x32xf32, #tpu.memory_space<vmem>>, %arg3: memref<32x32xf32, #tpu.memory_space<vmem>>, %arg4: memref<1x32xf32, #tpu.memory_space<vmem>>, %arg5: memref<32x32xf32, #tpu.memory_space<vmem>>, %arg6: memref<1x32xf32, #tpu.memory_space<vmem>>, %arg7: memref<8x32xf32, #tpu.memory_space<vmem>>, %arg8: memref<1x32xf32, #tpu.memory_space<vmem>>, %arg9: memref<1x32xf32, #tpu.memory_space<vmem>>, %arg10: memref<8x32xf32, #tpu.memory_space<vmem>>, %arg11: memref<8x32xf32, #tpu.memory_space<vmem>>) attributes {dimension_semantics = [#tpu.dimension_semantics<parallel>, #tpu.dimension_semantics<arbitrary>], iteration_bounds = array<i64: 2, 1>, scalar_prefetch = 0 : i64, scratch_operands = 1 : i64, tpu.core_type = #tpu.core_type<tc>, window_params = [{transform_indices = @transform_0, window_bounds = array<i64: 8, 32>}, {transform_indices = @transform_1, window_bounds = array<i64: 32, 32>}, {transform_indices = @transform_2, window_bounds = array<i64: 1, 32>}, {transform_indices = @transform_3, window_bounds = array<i64: 32, 32>}, {pipeline_mode = #tpu.pipeline_mode<synchronous>, transform_indices = @transform_4, window_bounds = array<i64: 1, 32>}, {transform_indices = @transform_5, window_bounds = array<i64: 8, 32>}, {pipeline_mode = #tpu.pipeline_mode<synchronous>, transform_indices = @transform_6, window_bounds = array<i64: 1, 32>}, {pipeline_mode = #tpu.pipeline_mode<synchronous>, transform_indices = @transform_7, window_bounds = array<i64: 1, 32>}, {transform_indices = @transform_8, window_bounds = array<i64: 8, 32>}]} {
    %c0_i32 = arith.constant 0 : i32
    %0 = arith.cmpi eq, %arg1, %c0_i32 : i32
    %1 = arith.extui %0 : i1 to i32
    %c0_i32_0 = arith.constant 0 : i32
    %2 = arith.cmpi ne, %1, %c0_i32_0 : i32
    scf.if %2 {
      %cst_18 = arith.constant 0.000000e+00 : f32
      %25 = vector.broadcast %cst_18 : f32 to vector<8x32xf32>
      %c0_19 = arith.constant 0 : index
      %c0_20 = arith.constant 0 : index
      %26 = vector.load %arg11[%c0_19, %c0_20] : memref<8x32xf32, #tpu.memory_space<vmem>>, vector<8x32xf32>
      tpu.vector_store %arg11[%c0_19, %c0_20], %25 {strides = array<i32>} : memref<8x32xf32, #tpu.memory_space<vmem>>, vector<8x32xf32>,
    } else {
    }
    %c0 = arith.constant 0 : index
    %c0_1 = arith.constant 0 : index
    %3 = vector.load %arg2[%c0, %c0_1] : memref<8x32xf32, #tpu.memory_space<vmem>>, vector<8x32xf32>
    %c0_2 = arith.constant 0 : index
    %c0_3 = arith.constant 0 : index
    %4 = vector.load %arg3[%c0_2, %c0_3] : memref<32x32xf32, #tpu.memory_space<vmem>>, vector<32x32xf32>
    %cst = arith.constant dense<0.000000e+00> : vector<8x32xf32>
    %5 = tpu.matmul %3, %4, %cst {dimension_numbers = #tpu.dot_dimension_numbers<[1], [0], [0], [1], [0, 0, 1, 1], [], []>} : vector<8x32xf32>, vector<32x32xf32>, vector<8x32xf32> -> vector<8x32xf32>
    %c0_4 = arith.constant 0 : index
    %c0_5 = arith.constant 0 : index
    %6 = vector.load %arg4[%c0_4, %c0_5] : memref<1x32xf32, #tpu.memory_space<vmem>>, vector<1x32xf32>
    %7 = vector.broadcast %6 : vector<1x32xf32> to vector<8x32xf32>
    %8 = arith.addf %5, %7 : vector<8x32xf32>
    %cst_6 = arith.constant 5.000000e-01 : f32
    %9 = vector.broadcast %cst_6 : f32 to vector<8x32xf32>
    %10 = arith.mulf %9, %8 : vector<8x32xf32>
    %cst_7 = arith.constant 0.707106769 : f32
    %11 = vector.broadcast %cst_7 : f32 to vector<8x32xf32>
    %12 = arith.mulf %8, %11 : vector<8x32xf32>
    %13 = math.erf %12 : vector<8x32xf32>
    %cst_8 = arith.constant 1.000000e+00 : f32
    %14 = vector.broadcast %cst_8 : f32 to vector<8x32xf32>
    %15 = arith.addf %14, %13 : vector<8x32xf32>
    %16 = arith.mulf %10, %15 : vector<8x32xf32>
    %c0_9 = arith.constant 0 : index
    %c0_10 = arith.constant 0 : index
    %17 = vector.load %arg11[%c0_9, %c0_10] : memref<8x32xf32, #tpu.memory_space<vmem>>, vector<8x32xf32>
    %c0_11 = arith.constant 0 : index
    %c0_12 = arith.constant 0 : index
    %18 = vector.load %arg5[%c0_11, %c0_12] : memref<32x32xf32, #tpu.memory_space<vmem>>, vector<32x32xf32>
    %cst_13 = arith.constant dense<0.000000e+00> : vector<8x32xf32>
    %19 = tpu.matmul %16, %18, %cst_13 {dimension_numbers = #tpu.dot_dimension_numbers<[1], [0], [0], [1], [0, 0, 1, 1], [], []>} : vector<8x32xf32>, vector<32x32xf32>, vector<8x32xf32> -> vector<8x32xf32>
    %20 = arith.addf %17, %19 : vector<8x32xf32>
    %c0_14 = arith.constant 0 : index
    %c0_15 = arith.constant 0 : index
    %21 = vector.load %arg11[%c0_14, %c0_15] : memref<8x32xf32, #tpu.memory_space<vmem>>, vector<8x32xf32>
    tpu.vector_store %arg11[%c0_14, %c0_15], %20 {strides = array<i32>} : memref<8x32xf32, #tpu.memory_space<vmem>>, vector<8x32xf32>,
    %c0_i32_16 = arith.constant 0 : i32
    %22 = arith.cmpi eq, %arg1, %c0_i32_16 : i32
    %23 = arith.extui %22 : i1 to i32
    %c0_i32_17 = arith.constant 0 : i32
    %24 = arith.cmpi ne, %23, %c0_i32_17 : i32
    scf.if %24 {
      %c0_18 = arith.constant 0 : index
      %c0_19 = arith.constant 0 : index
      %25 = vector.load %arg11[%c0_18, %c0_19] : memref<8x32xf32, #tpu.memory_space<vmem>>, vector<8x32xf32>
      %c0_20 = arith.constant 0 : index
      %c0_21 = arith.constant 0 : index
      %26 = vector.load %arg6[%c0_20, %c0_21] : memref<1x32xf32, #tpu.memory_space<vmem>>, vector<1x32xf32>
      %27 = vector.broadcast %26 : vector<1x32xf32> to vector<8x32xf32>
      %28 = arith.addf %25, %27 : vector<8x32xf32>
      %c0_22 = arith.constant 0 : index
      %c0_23 = arith.constant 0 : index
      %29 = vector.load %arg7[%c0_22, %c0_23] : memref<8x32xf32, #tpu.memory_space<vmem>>, vector<8x32xf32>
      %30 = arith.addf %28, %29 : vector<8x32xf32>
      %cst_24 = arith.constant dense<0.000000e+00> : vector<8xf32>
      %31 = vector.multi_reduction <add>, %30, %cst_24 [1] : vector<8x32xf32> to vector<8xf32>
      %32 = vector.shape_cast %31 : vector<8xf32> to vector<8x1xf32>
      %cst_25 = arith.constant 3.200000e+01 : f32
      %33 = vector.broadcast %cst_25 : f32 to vector<8x1xf32>
      %34 = arith.divf %32, %33 : vector<8x1xf32>
      %35 = vector.broadcast %34 : vector<8x1xf32> to vector<8x32xf32>
      %36 = arith.subf %30, %35 : vector<8x32xf32>
      %37 = arith.mulf %36, %36 : vector<8x32xf32>
      %cst_26 = arith.constant dense<0.000000e+00> : vector<8xf32>
      %38 = vector.multi_reduction <add>, %37, %cst_26 [1] : vector<8x32xf32> to vector<8xf32>
      %39 = vector.shape_cast %38 : vector<8xf32> to vector<8x1xf32>
      %cst_27 = arith.constant 3.200000e+01 : f32
      %40 = vector.broadcast %cst_27 : f32 to vector<8x1xf32>
      %41 = arith.divf %39, %40 : vector<8x1xf32>
      %cst_28 = arith.constant 9.99999974E-6 : f32
      %42 = vector.broadcast %cst_28 : f32 to vector<8x1xf32>
      %43 = arith.addf %41, %42 : vector<8x1xf32>
      %44 = math.rsqrt %43 : vector<8x1xf32>
      %45 = vector.broadcast %44 : vector<8x1xf32> to vector<8x32xf32>
      %46 = arith.mulf %36, %45 : vector<8x32xf32>
      %c0_29 = arith.constant 0 : index
      %c0_30 = arith.constant 0 : index
      %47 = vector.load %arg8[%c0_29, %c0_30] : memref<1x32xf32, #tpu.memory_space<vmem>>, vector<1x32xf32>
      %48 = vector.broadcast %47 : vector<1x32xf32> to vector<8x32xf32>
      %49 = arith.mulf %46, %48 : vector<8x32xf32>
      %c0_31 = arith.constant 0 : index
      %c0_32 = arith.constant 0 : index
      %50 = vector.load %arg9[%c0_31, %c0_32] : memref<1x32xf32, #tpu.memory_space<vmem>>, vector<1x32xf32>
      %51 = vector.broadcast %50 : vector<1x32xf32> to vector<8x32xf32>
      %52 = arith.addf %49, %51 : vector<8x32xf32>
      %c0_33 = arith.constant 0 : index
      %c0_34 = arith.constant 0 : index
      %53 = vector.load %arg10[%c0_33, %c0_34] : memref<8x32xf32, #tpu.memory_space<vmem>>, vector<8x32xf32>
      tpu.vector_store %arg10[%c0_33, %c0_34], %52 {strides = array<i32>} : memref<8x32xf32, #tpu.memory_space<vmem>>, vector<8x32xf32>,
    } else {
    }
    return
  }
  func.func @transform_0(%arg0: i32, %arg1: i32) -> (i32, i32) {
    %c0_i32 = arith.constant 0 : i32
    %c0_i32_0 = arith.constant 0 : i32
    return %arg0, %c0_i32 : i32, i32
  }
  func.func @transform_1(%arg0: i32, %arg1: i32) -> (i32, i32) {
    %c0_i32 = arith.constant 0 : i32
    %c0_i32_0 = arith.constant 0 : i32
    return %c0_i32, %arg1 : i32, i32
  }
  func.func @transform_2(%arg0: i32, %arg1: i32) -> (i32, i32) {
    %c0_i32 = arith.constant 0 : i32
    %c0_i32_0 = arith.constant 0 : i32
    return %c0_i32, %arg1 : i32, i32
  }
  func.func @transform_3(%arg0: i32, %arg1: i32) -> (i32, i32) {
    %c0_i32 = arith.constant 0 : i32
    %c0_i32_0 = arith.constant 0 : i32
    return %arg1, %c0_i32 : i32, i32
  }
  func.func @transform_4(%arg0: i32, %arg1: i32) -> (i32, i32) {
    %c0_i32 = arith.constant 0 : i32
    %c0_i32_0 = arith.constant 0 : i32
    %c0_i32_1 = arith.constant 0 : i32
    return %c0_i32, %c0_i32_0 : i32, i32
  }
  func.func @transform_5(%arg0: i32, %arg1: i32) -> (i32, i32) {
    %c0_i32 = arith.constant 0 : i32
    %c0_i32_0 = arith.constant 0 : i32
    return %arg0, %c0_i32 : i32, i32
  }
  func.func @transform_6(%arg0: i32, %arg1: i32) -> (i32, i32) {
    %c0_i32 = arith.constant 0 : i32
    %c0_i32_0 = arith.constant 0 : i32
    %c0_i32_1 = arith.constant 0 : i32
    return %c0_i32, %c0_i32_0 : i32, i32
  }
  func.func @transform_7(%arg0: i32, %arg1: i32) -> (i32, i32) {
    %c0_i32 = arith.constant 0 : i32
    %c0_i32_0 = arith.constant 0 : i32
    %c0_i32_1 = arith.constant 0 : i32
    return %c0_i32, %c0_i32_0 : i32, i32
  }
  func.func @transform_8(%arg0: i32, %arg1: i32) -> (i32, i32) {
    %c0_i32 = arith.constant 0 : i32
    %c0_i32_0 = arith.constant 0 : i32
    return %arg0, %c0_i32 : i32, i32
  }
}

</mosaic_0001>

<llo_original>
// kernel: tpu_custom_call.1
$region0: #{tpu_custom_call.1}
  #allocation0 [shape = 'u32[]', space=smem, size = 0x4, offset = 0x4, fixed_abs, tag = 'smem constant byte address 0x4 - core index']
  #allocation1 [shape = 'u32[144,128]{1,0:T(1,128)}', space=vmem, size = 0x12000, scoped, tag = 'internal scratch']
  %s0 = inlined_call_operand.hbm [shape: f32[16,128], index: 0, kind: input, shape index: {}]
  %s1 = inlined_call_operand.hbm [shape: f32[128,128], index: 1, kind: input, shape index: {}]
  %s2 = inlined_call_operand.vmem [shape: f32[1,128], index: 2, kind: input, shape index: {}]
  %s3 = inlined_call_operand.hbm [shape: f32[16,128], index: 3, kind: output, shape index: {}]
  %s4 = sld [smem:[#allocation0]]
  $region53: #{tpu_custom_call.1} parent=0
    _
  %s6 = ssub.s32 1, %s4
  %s7 = scalar_select 0, %s6, %s4
  $region1: #{tpu_custom_call.1} parent=0
    #allocation2 [shape = 'u8[8192]{0}', space=vmem, size = 0x2000, scoped, tag = 'input window, operand 0']
    #allocation3 [shape = 's32[2]{0}', space=sflag, size = 0x8, scoped, tag = 'scoped memory for tpu_custom_call.1']
    #allocation4 [shape = 's32[2]{0}', space=sflag, size = 0x8, scoped, tag = 'scoped memory for tpu_custom_call.1']
    #allocation5 [shape = 'u8[65536]{0}', space=vmem, size = 0x10000, scoped, tag = 'input window, operand 1, single buffered']
    #allocation6 [shape = 's32[1]{0}', space=sflag, size = 0x4, scoped, tag = 'scoped memory for tpu_custom_call.1']
    #allocation7 [shape = 'u8[8192]{0}', space=vmem, size = 0x2000, scoped, tag = 'output window, operand 0']
    %8 = vsyncpa [#allocation3], 0
    %s9 = scalar_lea.sflag [#allocation3], 1
    %10 = vsyncpa %s9, 0
    %11 = vsyncpa [#allocation6], 0
    %12 = vsyncpa [#allocation4], 0
    %s13 = scalar_lea.sflag [#allocation4], 1
    %14 = vsyncpa %s13, 0
    loop: start=0, step=1, limit=4
    $region2: #{tpu_custom_call.1} parent=1 // loop_pre_header
      _
    $region3: #{tpu_custom_call.1} parent=1 // loop_header
      %s16 = sphi 0, %s20
      %p17 = scmp.ge.s32.totalorder %s16, 4
      %s23 = sphi 0, %s35
      %s24 = sphi 0, %s31
      %s25 = sphi 0, %s23
      %s26 = sphi 0, %s24
      %s27 = sphi 0, %s25
      %s28 = sphi 0, %s26
      %s38 = sphi 0, %s40
      %s41 = sphi 0, %s38
      %s42 = sphi 0, %s41
      %s58 = sphi 0, %s42
      %s64 = sphi 0, %s66
      %s67 = sphi 0, %s64
      %s68 = sphi 0, %s67
      %s84 = sphi 0, %s68
      %s90 = sphi 0, %s92
      %s93 = sphi 0, %s90
      %s94 = sphi 0, %s93
      %s110 = sphi 0, %s94
      %s118 = sphi 0, %s120
      %s121 = sphi 0, %s118
      %s122 = sphi 0, %s121
      %s138 = sphi 0, %s122
    $region4: #{tpu_custom_call.1} parent=1 // loop_header_branch
      %19 = sbr.rel (%p17) target = $region8
    $region5: #{tpu_custom_call.1} parent=1 // loop_body
      %s21 = ssub.s32 %s16, 1
      %s22 = ssub.s32 %s16, 2
      %s29 = sadd.s32 1, %s24
      %p30 = scmp.ge.s32.totalorder %s29, 1
      %s31 = scalar_select %p30, 0, %s29
      %s32 = sadd.s32 1, %s23
      %s33 = scalar_select %p30, %s32, %s23
      %p34 = scmp.ge.s32.totalorder %s33, 2
      %s35 = scalar_select %p34, 0, %s33
      %s36 = ssub.s32 %s23, %s35
      %p37 = scmp.eq.s32.totalorder %s36, 0
      %s39 = sadd.s32 %s38, 1
      %s40 = scalar_select %p37, %s38, %s39
      %p43 = pneg %p37
      %p44 = scmp.eq.s32.totalorder %s16, 1
      %p45 = por %p43, %p44
      %p46 = scmp.ne.s32.totalorder %s38, %s41
      %p47 = scmp.eq.s32.totalorder %s16, 0
      %p48 = por %p46, %p47
      %p49 = scmp.ne.s32.totalorder %s38, %s41
      %p50 = scmp.eq.s32.totalorder %s21, 1
      %p51 = por %p49, %p50
      %p52 = scmp.ne.s32.totalorder %s41, %s42
      %p53 = scmp.eq.s32.totalorder %s21, 0
      %p54 = por %p52, %p53
      %p55 = scmp.ne.s32.totalorder %s41, %s42
      %p56 = scmp.eq.s32.totalorder %s22, 1
      %p57 = por %p55, %p56
      %p59 = scmp.ne.s32.totalorder %s42, %s58
      %p60 = scmp.eq.s32.totalorder %s22, 0
      %p61 = por %p59, %p60
      %s62 = ssub.s32 %s24, %s31
      %p63 = scmp.eq.s32.totalorder %s62, 0
      %s65 = sadd.s32 %s64, 1
      %s66 = scalar_select %p63, %s64, %s65
      %p69 = pneg %p63
      %p70 = scmp.eq.s32.totalorder %s16, 1
      %p71 = por %p69, %p70
      %p72 = scmp.ne.s32.totalorder %s64, %s67
      %p73 = scmp.eq.s32.totalorder %s16, 0
      %p74 = por %p72, %p73
      %p75 = scmp.ne.s32.totalorder %s64, %s67
      %p76 = scmp.eq.s32.totalorder %s21, 1
      %p77 = por %p75, %p76
      %p78 = scmp.ne.s32.totalorder %s67, %s68
      %p79 = scmp.eq.s32.totalorder %s21, 0
      %p80 = por %p78, %p79
      %p81 = scmp.ne.s32.totalorder %s67, %s68
      %p82 = scmp.eq.s32.totalorder %s22, 1
      %p83 = por %p81, %p82
      %p85 = scmp.ne.s32.totalorder %s68, %s84
      %p86 = scmp.eq.s32.totalorder %s22, 0
      %p87 = por %p85, %p86
      %s88 = ssub.s32 %s24, %s31
      %p89 = scmp.eq.s32.totalorder %s88, 0
      %s91 = sadd.s32 %s90, 1
      %s92 = scalar_select %p89, %s90, %s91
      %p95 = pneg %p89
      %p96 = scmp.eq.s32.totalorder %s16, 1
      %p97 = por %p95, %p96
      %p98 = scmp.ne.s32.totalorder %s90, %s93
      %p99 = scmp.eq.s32.totalorder %s16, 0
      %p100 = por %p98, %p99
      %p101 = scmp.ne.s32.totalorder %s90, %s93
      %p102 = scmp.eq.s32.totalorder %s21, 1
      %p103 = por %p101, %p102
      %p104 = scmp.ne.s32.totalorder %s93, %s94
      %p105 = scmp.eq.s32.totalorder %s21, 0
      %p106 = por %p104, %p105
      %p107 = scmp.ne.s32.totalorder %s93, %s94
      %p108 = scmp.eq.s32.totalorder %s22, 1
      %p109 = por %p107, %p108
      %p111 = scmp.ne.s32.totalorder %s94, %s110
      %p112 = scmp.eq.s32.totalorder %s22, 0
      %p113 = por %p111, %p112
      %s114 = ssub.s32 %s23, %s35
      %s115 = ssub.s32 %s24, %s31
      %s116 = sor.u32 %s114, %s115
      %p117 = scmp.eq.s32.totalorder %s116, 0
      %s119 = sadd.s32 %s118, 1
      %s120 = scalar_select %p117, %s118, %s119
      %p123 = pneg %p117
      %p124 = scmp.eq.s32.totalorder %s16, 1
      %p125 = por %p123, %p124
      %p126 = scmp.ne.s32.totalorder %s118, %s121
      %p127 = scmp.eq.s32.totalorder %s16, 0
      %p128 = por %p126, %p127
      %p129 = scmp.ne.s32.totalorder %s118, %s121
      %p130 = scmp.eq.s32.totalorder %s21, 1
      %p131 = por %p129, %p130
      %p132 = scmp.ne.s32.totalorder %s121, %s122
      %p133 = scmp.eq.s32.totalorder %s21, 0
      %p134 = por %p132, %p133
      %p135 = scmp.ne.s32.totalorder %s121, %s122
      %p136 = scmp.eq.s32.totalorder %s22, 1
      %p137 = por %p135, %p136
      %p139 = scmp.ne.s32.totalorder %s122, %s138
      %p140 = scmp.eq.s32.totalorder %s22, 0
      %p141 = por %p139, %p140
      %p142 = scmp.le.s32.totalorder 1, %s16
      %p143 = scmp.lt.s32.totalorder %s16, 3
      %p144 = pnand %p142, %p143
      %p145 = pneg %p144
      // Predicated region
      $region9: #{tpu_custom_call.1} parent=5 // pred_check
        _
      $region10: #{tpu_custom_call.1} parent=5 // pred_check_branch
        %147 = sbr.rel (%p144) target = $region12
      $region11: #{tpu_custom_call.1} parent=5 // pred_region
        %s148 = ssub.s32 %s16, 1
        // Predicated region
        $region13: #{tpu_custom_call.1} parent=11 // pred_check
          %p149 = pneg %p80
        $region14: #{tpu_custom_call.1} parent=11 // pred_check_branch
          %151 = sbr.rel (%p149) target = $region16
        $region15: #{tpu_custom_call.1} parent=11 // pred_region
          %s153 = ssub.s32 2048, 2048
          %154 = vsyncadd [#allocation6], %s153
          %s155 = smul.addr %s26, 128
          %s156 = scalar_lea.hbm %s1, %s155
          %s157 = sshll.u32 [#allocation5], 4
          %s158 = int_to_ptr.vmem [resolvable:$true] %s157
          %163 = dma.hbm_to_vmem [thread:$0]  %s156, 2048, %s158, [#allocation6], 128, 128, 8
        $region16: #{tpu_custom_call.1} parent=11 // pred_fallthru
          _
        // Predicated region
        $region17: #{tpu_custom_call.1} parent=11 // pred_check
          %p164 = pneg %p106
        $region18: #{tpu_custom_call.1} parent=11 // pred_check_branch
          %166 = sbr.rel (%p164) target = $region20
        $region19: #{tpu_custom_call.1} parent=11 // pred_region
          %p167 = scmp.lt.s32.totalorder %s26, 0
          %s168 = scalar_select %p167, %s26, 0
          %s169 = scalar_lea.vmem %s2, %s168
        $region20: #{tpu_custom_call.1} parent=11 // pred_fallthru
          _
      $region12: #{tpu_custom_call.1} parent=5 // pred_fallthru
        _
      %p170 = scmp.lt.s32.totalorder %s16, 2
      // Predicated region
      $region21: #{tpu_custom_call.1} parent=5 // pred_check
        %p171 = pneg %p170
      $region22: #{tpu_custom_call.1} parent=5 // pred_check_branch
        %173 = sbr.rel (%p171) target = $region24
      $region23: #{tpu_custom_call.1} parent=5 // pred_region
        // Predicated region
        $region25: #{tpu_custom_call.1} parent=23 // pred_check
          %p174 = pneg %p48
        $region26: #{tpu_custom_call.1} parent=23 // pred_check_branch
          %176 = sbr.rel (%p174) target = $region28
        $region27: #{tpu_custom_call.1} parent=23 // pred_region
          %s177 = sand.u32 %s38, 1
          %s178 = scalar_lea.sflag [#allocation3], %s177
          %s179 = sand.u32 %s38, 1
          %s180 = smul.addr %s179, 8
          %s181 = scalar_lea.vmem [#allocation2], %s180
          %s183 = ssub.s32 128, 128
          %184 = vsyncadd %s178, %s183
          %s185 = smul.addr %s23, 128
          %s186 = scalar_lea.hbm %s0, %s185
          %s188 = sshll.u32 %s181, 4
          %s189 = int_to_ptr.vmem [resolvable:$true] %s188
          %191 = dma.hbm_to_vmem [thread:$0]  %s186, 128, %s189, %s178
        $region28: #{tpu_custom_call.1} parent=23 // pred_fallthru
          _
      $region24: #{tpu_custom_call.1} parent=5 // pred_fallthru
        _
      %p192 = scmp.le.s32.totalorder 1, %s16
      %p193 = scmp.lt.s32.totalorder %s16, 3
      %p194 = pnand %p192, %p193
      %p195 = pneg %p194
      // Predicated region
      $region29: #{tpu_custom_call.1} parent=5 // pred_check
        _
      $region30: #{tpu_custom_call.1} parent=5 // pred_check_branch
        %197 = sbr.rel (%p194) target = $region32
      $region31: #{tpu_custom_call.1} parent=5 // pred_region
        %s198 = ssub.s32 %s16, 1
        %s199 = sand.u32 %s41, 1
        %s200 = scalar_lea.sflag [#allocation3], %s199
        %s201 = sand.u32 %s41, 1
        %s202 = smul.addr %s201, 8
        %s203 = scalar_lea.vmem [#allocation2], %s202
        // Predicated region
        $region33: #{tpu_custom_call.1} parent=31 // pred_check
          %p204 = pneg %p54
        $region34: #{tpu_custom_call.1} parent=31 // pred_check_branch
          %206 = sbr.rel (%p204) target = $region36
        $region35: #{tpu_custom_call.1} parent=31 // pred_region
          %207 = dma.done %s200, 128
        $region36: #{tpu_custom_call.1} parent=31 // pred_fallthru
          _
        // Predicated region
        $region37: #{tpu_custom_call.1} parent=31 // pred_check
          %p208 = pneg %p80
        $region38: #{tpu_custom_call.1} parent=31 // pred_check_branch
          %210 = sbr.rel (%p208) target = $region40
        $region39: #{tpu_custom_call.1} parent=31 // pred_region
          %211 = dma.done [#allocation6], 2048
        $region40: #{tpu_custom_call.1} parent=31 // pred_fallthru
          _
        %s212 = sand.u32 %s41, 1
        %s213 = scalar_lea.sflag [#allocation3], %s212
        %s214 = sand.u32 %s41, 1
        %s215 = smul.addr %s214, 8
        %s216 = scalar_lea.vmem [#allocation2], %s215
        %p217 = pneg %p54
        %p218 = pneg %p51
        %p219 = pneg %p80
        %p220 = pneg %p77
        %p221 = scmp.lt.s32.totalorder %s26, 0
        %s222 = scalar_select %p221, %s26, 0
        %s223 = scalar_lea.vmem %s2, %s222
        %p224 = pneg %p106
        %p225 = pneg %p103
        %p226 = pneg %p134
        %p227 = pneg %p131
        %s228 = sand.u32 %s121, 1
        %s229 = scalar_lea.sflag [#allocation4], %s228
        %s230 = sand.u32 %s121, 1
        %s231 = smul.addr %s230, 8
        %s232 = scalar_lea.vmem [#allocation7], %s231
        %p233 = scmp.lt.s32.totalorder %s26, 0
        %s234 = scalar_select %p233, %s26, 0
        %s235 = scalar_lea.vmem %s2, %s234
        %v236 = vld [vmem:[%s203] sm:$0xff]
        %v237 = vld [vmem:[#allocation5] sm:$0xff]
        %v238 = vld [vmem:[#allocation5 + $0x8] sm:$0xff]
        %v239 = vld [vmem:[#allocation5 + $0x10] sm:$0xff]
        %v240 = vld [vmem:[#allocation5 + $0x18] sm:$0xff]
        %v241 = vld [vmem:[#allocation5 + $0x20] sm:$0xff]
        %v242 = vld [vmem:[#allocation5 + $0x28] sm:$0xff]
        %v243 = vld [vmem:[#allocation5 + $0x30] sm:$0xff]
        %v244 = vld [vmem:[#allocation5 + $0x38] sm:$0xff]
        %v245 = vld [vmem:[#allocation5 + $0x40] sm:$0xff]
        %v246 = vld [vmem:[#allocation5 + $0x48] sm:$0xff]
        %v247 = vld [vmem:[#allocation5 + $0x50] sm:$0xff]
        %v248 = vld [vmem:[#allocation5 + $0x58] sm:$0xff]
        %v249 = vld [vmem:[#allocation5 + $0x60] sm:$0xff]
        %v250 = vld [vmem:[#allocation5 + $0x68] sm:$0xff]
        %v251 = vld [vmem:[#allocation5 + $0x70] sm:$0xff]
        %v252 = vld [vmem:[#allocation5 + $0x78] sm:$0xff]
        %v253 = vld [vmem:[%s235] sm:$0x1]
        %v255 = vlaneseq
        %v256 = vshrl.u32 %v255, 7
        %v257 = vsub.s32 0, %v256
        %v258 = vrot.slane %v253, %v257
        %260 = vmatprep.subr.mxu0 0.0
        %261 = vmatpush1.msra.mxu0 %v252
        %262 = vmatprep.subr.mxu0 0.0
        %263 = vmatpush1.msra.mxu0 %v251
        %264 = vmatprep.subr.mxu0 0.0
        %265 = vmatpush1.msra.mxu0 %v250
        %266 = vmatprep.subr.mxu0 0.0
        %267 = vmatpush1.msra.mxu0 %v249
        %268 = vmatprep.subr.mxu0 0.0
        %269 = vmatpush1.msra.mxu0 %v248
        %270 = vmatprep.subr.mxu0 0.0
        %271 = vmatpush1.msra.mxu0 %v247
        %272 = vmatprep.subr.mxu0 0.0
        %273 = vmatpush1.msra.mxu0 %v246
        %274 = vmatprep.subr.mxu0 0.0
        %275 = vmatpush1.msra.mxu0 %v245
        %276 = vmatprep.subr.mxu0 0.0
        %277 = vmatpush1.msra.mxu0 %v244
        %278 = vmatprep.subr.mxu0 0.0
        %279 = vmatpush1.msra.mxu0 %v243
        %280 = vmatprep.subr.mxu0 0.0
        %281 = vmatpush1.msra.mxu0 %v242
        %282 = vmatprep.subr.mxu0 0.0
        %283 = vmatpush1.msra.mxu0 %v241
        %284 = vmatprep.subr.mxu0 0.0
        %285 = vmatpush1.msra.mxu0 %v240
        %286 = vmatprep.subr.mxu0 0.0
        %287 = vmatpush1.msra.mxu0 %v239
        %288 = vmatprep.subr.mxu0 0.0
        %289 = vmatpush1.msra.mxu0 %v238
        %290 = vmatprep.subr.mxu0 0.0
        %291 = vmatpush1.msra.mxu0 %v237
        %292 = vmatprep.subr.mxu0 0.0
        %293 = vmatpush2.msra.mxu0 0.0
        %294 = vmatprep.subr.mxu0 0.0
        %295 = vmatpush2.msra.mxu0 0.0
        %296 = vmatprep.subr.mxu0 0.0
        %297 = vmatpush2.msra.mxu0 0.0
        %298 = vmatprep.subr.mxu0 0.0
        %299 = vmatpush2.msra.mxu0 0.0
        %300 = vmatprep.subr.mxu0 0.0
        %301 = vmatpush2.msra.mxu0 0.0
        %302 = vmatprep.subr.mxu0 0.0
        %303 = vmatpush2.msra.mxu0 0.0
        %304 = vmatprep.subr.mxu0 0.0
        %305 = vmatpush2.msra.mxu0 0.0
        %306 = vmatprep.subr.mxu0 0.0
        %307 = vmatpush2.msra.mxu0 0.0
        %308 = vmatprep.subr.mxu0 0.0
        %309 = vmatpush2.msra.mxu0 0.0
        %310 = vmatprep.subr.mxu0 0.0
        %311 = vmatpush2.msra.mxu0 0.0
        %312 = vmatprep.subr.mxu0 0.0
        %313 = vmatpush2.msra.mxu0 0.0
        %314 = vmatprep.subr.mxu0 0.0
        %315 = vmatpush2.msra.mxu0 0.0
        %316 = vmatprep.subr.mxu0 0.0
        %317 = vmatpush2.msra.mxu0 0.0
        %318 = vmatprep.subr.mxu0 0.0
        %319 = vmatpush2.msra.mxu0 0.0
        %320 = vmatprep.subr.mxu0 0.0
        %321 = vmatpush2.msra.mxu0 0.0
        %322 = vmatprep.subr.mxu0 0.0
        %323 = vmatpush2.msra.mxu0 0.0
        %324 = vmatprep.mubr.f32.mxu0 0.0
        %325 = vmatmul.mubr.f32.gmra.mxu0 %v236
        %v326 = vpop.f32.mrf.mxu0
        %v327 = vadd.f32 %v258, %v326
        %v328 = vpop.f32.mrf.mxu0
        %329 = vdwg.mxu0
        %330 = vst [vmem:[%s232] sm:$0xff] %v327
        %s331 = sand.u32 %s121, 1
        %s332 = scalar_lea.sflag [#allocation4], %s331
        %s333 = sand.u32 %s121, 1
        %s334 = smul.addr %s333, 8
        %s335 = scalar_lea.vmem [#allocation7], %s334
        // Predicated region
        $region41: #{tpu_custom_call.1} parent=31 // pred_check
          %p336 = pneg %p131
        $region42: #{tpu_custom_call.1} parent=31 // pred_check_branch
          %338 = sbr.rel (%p336) target = $region44
        $region43: #{tpu_custom_call.1} parent=31 // pred_region
          %s340 = ssub.s32 128, 128
          %341 = vsyncadd %s332, %s340
          %s342 = sadd.s32 %s26, %s25
          %s343 = smul.addr %s342, 128
          %s344 = scalar_lea.hbm %s3, %s343
          %s346 = sshll.u32 %s335, 4
          %s347 = int_to_ptr.vmem [resolvable:$true] %s346
          %349 = dma.vmem_to_hbm [thread:$0]  %s347, 128, %s344, %s332
        $region44: #{tpu_custom_call.1} parent=31 // pred_fallthru
          _
      $region32: #{tpu_custom_call.1} parent=5 // pred_fallthru
        _
      %p350 = scmp.le.s32.totalorder 2, %s16
      // Predicated region
      $region45: #{tpu_custom_call.1} parent=5 // pred_check
        %p351 = pneg %p350
      $region46: #{tpu_custom_call.1} parent=5 // pred_check_branch
        %353 = sbr.rel (%p351) target = $region48
      $region47: #{tpu_custom_call.1} parent=5 // pred_region
        %s354 = ssub.s32 %s16, 2
        // Predicated region
        $region49: #{tpu_custom_call.1} parent=47 // pred_check
          %p355 = pneg %p137
        $region50: #{tpu_custom_call.1} parent=47 // pred_check_branch
          %357 = sbr.rel (%p355) target = $region52
        $region51: #{tpu_custom_call.1} parent=47 // pred_region
          %s358 = sand.u32 %s122, 1
          %s359 = scalar_lea.sflag [#allocation4], %s358
          %s360 = sand.u32 %s122, 1
          %s361 = smul.addr %s360, 8
          %s362 = scalar_lea.vmem [#allocation7], %s361
          %363 = dma.done %s359, 128
        $region52: #{tpu_custom_call.1} parent=47 // pred_fallthru
          _
      $region48: #{tpu_custom_call.1} parent=5 // pred_fallthru
        _
    $region6: #{tpu_custom_call.1} parent=1 // loop_footer
      %s20 = sadd.s32 1, %s16
    $region7: #{tpu_custom_call.1} parent=1 // loop_footer_branch
      %15 = sbr.rel target = $region3
    $region8: #{tpu_custom_call.1} parent=1 // loop_exit
      _
    %364 = vsyncpa [#allocation3], 1
    %s365 = scalar_lea.sflag [#allocation3], 1
    %366 = vsyncpa %s365, 1
    %367 = vsyncpa [#allocation6], 1
    %368 = vsyncpa [#allocation4], 1
    %s369 = scalar_lea.sflag [#allocation4], 1
    %370 = vsyncpa %s369, 1

// kernel: mha_block_forward.6
$region0: #{mha_block_forward.6}
  #allocation0 [shape = 'u32[]', space=smem, size = 0x4, offset = 0x4, fixed_abs, tag = 'smem constant byte address 0x4 - core index']
  #allocation1 [shape = 'u32[144,128]{1,0:T(1,128)}', space=vmem, size = 0x12000, scoped, tag = 'internal scratch']
  %s0 = inlined_call_operand.vmem [shape: f32[2,8,32], index: 0, kind: input, shape index: {}]
  %s1 = inlined_call_operand.vmem [shape: f32[8,32], index: 1, kind: input, shape index: {}]
  %s2 = inlined_call_operand.vmem [shape: f32[2,8,32], index: 2, kind: output, shape index: {}]
  %s3 = sld [smem:[#allocation0]]
  $region41: #{mha_block_forward.6} parent=0
    _
  %s5 = ssub.s32 1, %s3
  %s6 = scalar_select 0, %s5, %s3
  loop: start=0, step=1, limit=4
  $region2: #{mha_block_forward.6} parent=0 // loop_pre_header
    _
  $region3: #{mha_block_forward.6} parent=0 // loop_header
    %s8 = sphi 0, %s12
    %p9 = scmp.ge.s32.totalorder %s8, 4
    %s18 = sphi 0, %s20
    %s21 = sphi 0, %s18
    %s22 = sphi 0, %s21
    %s38 = sphi 0, %s22
    %s42 = sphi 0, %s42
    %s44 = sphi 0, %s42
    %s45 = sphi 0, %s44
    %s59 = sphi 0, %s45
    %s65 = sphi 0, %s67
    %s68 = sphi 0, %s65
    %s69 = sphi 0, %s68
    %s85 = sphi 0, %s69
  $region4: #{mha_block_forward.6} parent=0 // loop_header_branch
    %11 = sbr.rel (%p9) target = $region8
  $region5: #{mha_block_forward.6} parent=0 // loop_body
    %s13 = ssub.s32 %s8, 1
    %s14 = ssub.s32 %s8, 2
    %s15 = sadd.s32 %s8, 1
    %s16 = ssub.s32 %s8, %s15
    %p17 = scmp.eq.s32.totalorder %s16, 0
    %s19 = sadd.s32 %s18, 1
    %s20 = scalar_select %p17, %s18, %s19
    %p23 = pneg %p17
    %p24 = scmp.eq.s32.totalorder %s8, 1
    %p25 = por %p23, %p24
    %p26 = scmp.ne.s32.totalorder %s18, %s21
    %p27 = scmp.eq.s32.totalorder %s8, 0
    %p28 = por %p26, %p27
    %p29 = scmp.ne.s32.totalorder %s18, %s21
    %p30 = scmp.eq.s32.totalorder %s13, 1
    %p31 = por %p29, %p30
    %p32 = scmp.ne.s32.totalorder %s21, %s22
    %p33 = scmp.eq.s32.totalorder %s13, 0
    %p34 = por %p32, %p33
    %p35 = scmp.ne.s32.totalorder %s21, %s22
    %p36 = scmp.eq.s32.totalorder %s14, 1
    %p37 = por %p35, %p36
    %p39 = scmp.ne.s32.totalorder %s22, %s38
    %p40 = scmp.eq.s32.totalorder %s14, 0
    %p41 = por %p39, %p40
    %s43 = sadd.s32 %s42, 1
    %p46 = scmp.eq.s32.totalorder %s8, 1
    %p47 = scmp.ne.s32.totalorder %s42, %s44
    %p48 = scmp.eq.s32.totalorder %s8, 0
    %p49 = por %p47, %p48
    %p50 = scmp.ne.s32.totalorder %s42, %s44
    %p51 = scmp.eq.s32.totalorder %s13, 1
    %p52 = por %p50, %p51
    %p53 = scmp.ne.s32.totalorder %s44, %s45
    %p54 = scmp.eq.s32.totalorder %s13, 0
    %p55 = por %p53, %p54
    %p56 = scmp.ne.s32.totalorder %s44, %s45
    %p57 = scmp.eq.s32.totalorder %s14, 1
    %p58 = por %p56, %p57
    %p60 = scmp.ne.s32.totalorder %s45, %s59
    %p61 = scmp.eq.s32.totalorder %s14, 0
    %p62 = por %p60, %p61
    %s63 = ssub.s32 %s8, %s15
    %p64 = scmp.eq.s32.totalorder %s63, 0
    %s66 = sadd.s32 %s65, 1
    %s67 = scalar_select %p64, %s65, %s66
    %p70 = pneg %p64
    %p71 = scmp.eq.s32.totalorder %s8, 1
    %p72 = por %p70, %p71
    %p73 = scmp.ne.s32.totalorder %s65, %s68
    %p74 = scmp.eq.s32.totalorder %s8, 0
    %p75 = por %p73, %p74
    %p76 = scmp.ne.s32.totalorder %s65, %s68
    %p77 = scmp.eq.s32.totalorder %s13, 1
    %p78 = por %p76, %p77
    %p79 = scmp.ne.s32.totalorder %s68, %s69
    %p80 = scmp.eq.s32.totalorder %s13, 0
    %p81 = por %p79, %p80
    %p82 = scmp.ne.s32.totalorder %s68, %s69
    %p83 = scmp.eq.s32.totalorder %s14, 1
    %p84 = por %p82, %p83
    %p86 = scmp.ne.s32.totalorder %s69, %s85
    %p87 = scmp.eq.s32.totalorder %s14, 0
    %p88 = por %p86, %p87
    %p89 = scmp.le.s32.totalorder 1, %s8
    %p90 = scmp.lt.s32.totalorder %s8, 3
    %p91 = pnand %p89, %p90
    %p92 = pneg %p91
    // Predicated region
    $region9: #{mha_block_forward.6} parent=5 // pred_check
      _
    $region10: #{mha_block_forward.6} parent=5 // pred_check_branch
      %94 = sbr.rel (%p91) target = $region12
    $region11: #{mha_block_forward.6} parent=5 // pred_region
      %s95 = ssub.s32 %s8, 1
      // Predicated region
      $region13: #{mha_block_forward.6} parent=11 // pred_check
        %p96 = pneg %p55
      $region14: #{mha_block_forward.6} parent=11 // pred_check_branch
        %98 = sbr.rel (%p96) target = $region16
      $region15: #{mha_block_forward.6} parent=11 // pred_region
        _
      $region16: #{mha_block_forward.6} parent=11 // pred_fallthru
        _
    $region12: #{mha_block_forward.6} parent=5 // pred_fallthru
      _
    %p99 = scmp.lt.s32.totalorder %s8, 2
    // Predicated region
    $region17: #{mha_block_forward.6} parent=5 // pred_check
      %p100 = pneg %p99
    $region18: #{mha_block_forward.6} parent=5 // pred_check_branch
      %102 = sbr.rel (%p100) target = $region20
    $region19: #{mha_block_forward.6} parent=5 // pred_region
      // Predicated region
      $region21: #{mha_block_forward.6} parent=19 // pred_check
        %p103 = pneg %p28
      $region22: #{mha_block_forward.6} parent=19 // pred_check_branch
        %105 = sbr.rel (%p103) target = $region24
      $region23: #{mha_block_forward.6} parent=19 // pred_region
        %p106 = scmp.lt.s32.totalorder %s8, 1
        %s107 = scalar_select %p106, %s8, 1
        %s108 = smul.addr %s107, 8
        %s109 = scalar_lea.vmem %s0, %s108
      $region24: #{mha_block_forward.6} parent=19 // pred_fallthru
        _
    $region20: #{mha_block_forward.6} parent=5 // pred_fallthru
      _
    %p110 = scmp.le.s32.totalorder 1, %s8
    %p111 = scmp.lt.s32.totalorder %s8, 3
    %p112 = pnand %p110, %p111
    %p113 = pneg %p112
    // Predicated region
    $region25: #{mha_block_forward.6} parent=5 // pred_check
      _
    $region26: #{mha_block_forward.6} parent=5 // pred_check_branch
      %115 = sbr.rel (%p112) target = $region28
    $region27: #{mha_block_forward.6} parent=5 // pred_region
      %s116 = ssub.s32 %s8, 1
      %p117 = scmp.lt.s32.totalorder %s13, 1
      %s118 = scalar_select %p117, %s13, 1
      %s119 = smul.addr %s118, 8
      %s120 = scalar_lea.vmem %s0, %s119
      %p121 = pneg %p34
      %p122 = pneg %p31
      %p123 = pneg %p55
      %p124 = pneg %p52
      %p125 = pneg %p81
      %p126 = pneg %p78
      %p127 = scmp.lt.s32.totalorder %s13, 1
      %s128 = scalar_select %p127, %s13, 1
      %s129 = smul.addr %s128, 8
      %s130 = scalar_lea.vmem %s2, %s129
      %p131 = scmp.lt.s32.totalorder %s13, 1
      %s132 = scalar_select %p131, %s13, 1
      %s133 = smul.addr %s132, 8
      %s134 = scalar_lea.vmem %s0, %s133
      %p135 = scmp.lt.s32.totalorder %s13, 1
      %s136 = scalar_select %p135, %s13, 1
      %s137 = smul.addr %s136, 8
      %s138 = scalar_lea.vmem %s2, %s137
      %v139 = vld [vmem:[%s134] sm:$0xff]
      %v140 = vld [vmem:[%s1] sm:$0xff]
      %v141 = vadd.f32 %v139, %v140
      %vm142 = vcmask 261120
      %143 = vst.msk [vmem:[%s138] sm:$0xff] %vm142, %v141
      %p144 = scmp.lt.s32.totalorder %s13, 1
      %s145 = scalar_select %p144, %s13, 1
      %s146 = smul.addr %s145, 8
      %s147 = scalar_lea.vmem %s2, %s146
      // Predicated region
      $region29: #{mha_block_forward.6} parent=27 // pred_check
        %p148 = pneg %p78
      $region30: #{mha_block_forward.6} parent=27 // pred_check_branch
        %150 = sbr.rel (%p148) target = $region32
      $region31: #{mha_block_forward.6} parent=27 // pred_region
        _
      $region32: #{mha_block_forward.6} parent=27 // pred_fallthru
        _
    $region28: #{mha_block_forward.6} parent=5 // pred_fallthru
      _
    %p151 = scmp.le.s32.totalorder 2, %s8
    // Predicated region
    $region33: #{mha_block_forward.6} parent=5 // pred_check
      %p152 = pneg %p151
    $region34: #{mha_block_forward.6} parent=5 // pred_check_branch
      %154 = sbr.rel (%p152) target = $region36
    $region35: #{mha_block_forward.6} parent=5 // pred_region
      %s155 = ssub.s32 %s8, 2
      // Predicated region
      $region37: #{mha_block_forward.6} parent=35 // pred_check
        %p156 = pneg %p84
      $region38: #{mha_block_forward.6} parent=35 // pred_check_branch
        %158 = sbr.rel (%p156) target = $region40
      $region39: #{mha_block_forward.6} parent=35 // pred_region
        %p159 = scmp.lt.s32.totalorder %s14, 1
        %s160 = scalar_select %p159, %s14, 1
        %s161 = smul.addr %s160, 8
        %s162 = scalar_lea.vmem %s2, %s161
      $region40: #{mha_block_forward.6} parent=35 // pred_fallthru
        _
    $region36: #{mha_block_forward.6} parent=5 // pred_fallthru
      _
  $region6: #{mha_block_forward.6} parent=0 // loop_footer
    %s12 = sadd.s32 1, %s8
  $region7: #{mha_block_forward.6} parent=0 // loop_footer_branch
    %7 = sbr.rel target = $region3
  $region8: #{mha_block_forward.6} parent=0 // loop_exit
    _

// kernel: mha_block_forward.7
$region0: #{mha_block_forward.7}
  #allocation0 [shape = 'u32[]', space=smem, size = 0x4, offset = 0x4, fixed_abs, tag = 'smem constant byte address 0x4 - core index']
  #allocation1 [shape = 'u32[144,128]{1,0:T(1,128)}', space=vmem, size = 0x12000, scoped, tag = 'internal scratch']
  %s0 = inlined_call_operand.vmem [shape: f32[16,32], index: 0, kind: input, shape index: {}]
  %s1 = inlined_call_operand.vmem [shape: f32[32,96], index: 1, kind: input, shape index: {}]
  %s2 = inlined_call_operand.vmem [shape: f32[1,96], index: 2, kind: input, shape index: {}]
  %s3 = inlined_call_operand.vmem [shape: f32[16,96], index: 3, kind: output, shape index: {}]
  %s4 = sld [smem:[#allocation0]]
  $region45: #{mha_block_forward.7} parent=0
    _
  %s6 = ssub.s32 1, %s4
  %s7 = scalar_select 0, %s6, %s4
  loop: start=0, step=1, limit=4
  $region2: #{mha_block_forward.7} parent=0 // loop_pre_header
    _
  $region3: #{mha_block_forward.7} parent=0 // loop_header
    %s9 = sphi 0, %s13
    %p10 = scmp.ge.s32.totalorder %s9, 4
    %s16 = sphi 0, %s28
    %s17 = sphi 0, %s24
    %s18 = sphi 0, %s16
    %s19 = sphi 0, %s17
    %s20 = sphi 0, %s18
    %s21 = sphi 0, %s19
    %s31 = sphi 0, %s33
    %s34 = sphi 0, %s31
    %s35 = sphi 0, %s34
    %s51 = sphi 0, %s35
    %s57 = sphi 0, %s59
    %s60 = sphi 0, %s57
    %s61 = sphi 0, %s60
    %s77 = sphi 0, %s61
    %s83 = sphi 0, %s85
    %s86 = sphi 0, %s83
    %s87 = sphi 0, %s86
    %s103 = sphi 0, %s87
    %s111 = sphi 0, %s113
    %s114 = sphi 0, %s111
    %s115 = sphi 0, %s114
    %s131 = sphi 0, %s115
  $region4: #{mha_block_forward.7} parent=0 // loop_header_branch
    %12 = sbr.rel (%p10) target = $region8
  $region5: #{mha_block_forward.7} parent=0 // loop_body
    %s14 = ssub.s32 %s9, 1
    %s15 = ssub.s32 %s9, 2
    %s22 = sadd.s32 1, %s17
    %p23 = scmp.ge.s32.totalorder %s22, 1
    %s24 = scalar_select %p23, 0, %s22
    %s25 = sadd.s32 1, %s16
    %s26 = scalar_select %p23, %s25, %s16
    %p27 = scmp.ge.s32.totalorder %s26, 2
    %s28 = scalar_select %p27, 0, %s26
    %s29 = ssub.s32 %s16, %s28
    %p30 = scmp.eq.s32.totalorder %s29, 0
    %s32 = sadd.s32 %s31, 1
    %s33 = scalar_select %p30, %s31, %s32
    %p36 = pneg %p30
    %p37 = scmp.eq.s32.totalorder %s9, 1
    %p38 = por %p36, %p37
    %p39 = scmp.ne.s32.totalorder %s31, %s34
    %p40 = scmp.eq.s32.totalorder %s9, 0
    %p41 = por %p39, %p40
    %p42 = scmp.ne.s32.totalorder %s31, %s34
    %p43 = scmp.eq.s32.totalorder %s14, 1
    %p44 = por %p42, %p43
    %p45 = scmp.ne.s32.totalorder %s34, %s35
    %p46 = scmp.eq.s32.totalorder %s14, 0
    %p47 = por %p45, %p46
    %p48 = scmp.ne.s32.totalorder %s34, %s35
    %p49 = scmp.eq.s32.totalorder %s15, 1
    %p50 = por %p48, %p49
    %p52 = scmp.ne.s32.totalorder %s35, %s51
    %p53 = scmp.eq.s32.totalorder %s15, 0
    %p54 = por %p52, %p53
    %s55 = ssub.s32 %s17, %s24
    %p56 = scmp.eq.s32.totalorder %s55, 0
    %s58 = sadd.s32 %s57, 1
    %s59 = scalar_select %p56, %s57, %s58
    %p62 = pneg %p56
    %p63 = scmp.eq.s32.totalorder %s9, 1
    %p64 = por %p62, %p63
    %p65 = scmp.ne.s32.totalorder %s57, %s60
    %p66 = scmp.eq.s32.totalorder %s9, 0
    %p67 = por %p65, %p66
    %p68 = scmp.ne.s32.totalorder %s57, %s60
    %p69 = scmp.eq.s32.totalorder %s14, 1
    %p70 = por %p68, %p69
    %p71 = scmp.ne.s32.totalorder %s60, %s61
    %p72 = scmp.eq.s32.totalorder %s14, 0
    %p73 = por %p71, %p72
    %p74 = scmp.ne.s32.totalorder %s60, %s61
    %p75 = scmp.eq.s32.totalorder %s15, 1
    %p76 = por %p74, %p75
    %p78 = scmp.ne.s32.totalorder %s61, %s77
    %p79 = scmp.eq.s32.totalorder %s15, 0
    %p80 = por %p78, %p79
    %s81 = ssub.s32 %s17, %s24
    %p82 = scmp.eq.s32.totalorder %s81, 0
    %s84 = sadd.s32 %s83, 1
    %s85 = scalar_select %p82, %s83, %s84
    %p88 = pneg %p82
    %p89 = scmp.eq.s32.totalorder %s9, 1
    %p90 = por %p88, %p89
    %p91 = scmp.ne.s32.totalorder %s83, %s86
    %p92 = scmp.eq.s32.totalorder %s9, 0
    %p93 = por %p91, %p92
    %p94 = scmp.ne.s32.totalorder %s83, %s86
    %p95 = scmp.eq.s32.totalorder %s14, 1
    %p96 = por %p94, %p95
    %p97 = scmp.ne.s32.totalorder %s86, %s87
    %p98 = scmp.eq.s32.totalorder %s14, 0
    %p99 = por %p97, %p98
    %p100 = scmp.ne.s32.totalorder %s86, %s87
    %p101 = scmp.eq.s32.totalorder %s15, 1
    %p102 = por %p100, %p101
    %p104 = scmp.ne.s32.totalorder %s87, %s103
    %p105 = scmp.eq.s32.totalorder %s15, 0
    %p106 = por %p104, %p105
    %s107 = ssub.s32 %s16, %s28
    %s108 = ssub.s32 %s17, %s24
    %s109 = sor.u32 %s107, %s108
    %p110 = scmp.eq.s32.totalorder %s109, 0
    %s112 = sadd.s32 %s111, 1
    %s113 = scalar_select %p110, %s111, %s112
    %p116 = pneg %p110
    %p117 = scmp.eq.s32.totalorder %s9, 1
    %p118 = por %p116, %p117
    %p119 = scmp.ne.s32.totalorder %s111, %s114
    %p120 = scmp.eq.s32.totalorder %s9, 0
    %p121 = por %p119, %p120
    %p122 = scmp.ne.s32.totalorder %s111, %s114
    %p123 = scmp.eq.s32.totalorder %s14, 1
    %p124 = por %p122, %p123
    %p125 = scmp.ne.s32.totalorder %s114, %s115
    %p126 = scmp.eq.s32.totalorder %s14, 0
    %p127 = por %p125, %p126
    %p128 = scmp.ne.s32.totalorder %s114, %s115
    %p129 = scmp.eq.s32.totalorder %s15, 1
    %p130 = por %p128, %p129
    %p132 = scmp.ne.s32.totalorder %s115, %s131
    %p133 = scmp.eq.s32.totalorder %s15, 0
    %p134 = por %p132, %p133
    %p135 = scmp.le.s32.totalorder 1, %s9
    %p136 = scmp.lt.s32.totalorder %s9, 3
    %p137 = pnand %p135, %p136
    %p138 = pneg %p137
    // Predicated region
    $region9: #{mha_block_forward.7} parent=5 // pred_check
      _
    $region10: #{mha_block_forward.7} parent=5 // pred_check_branch
      %140 = sbr.rel (%p137) target = $region12
    $region11: #{mha_block_forward.7} parent=5 // pred_region
      %s141 = ssub.s32 %s9, 1
      // Predicated region
      $region13: #{mha_block_forward.7} parent=11 // pred_check
        %p142 = pneg %p73
      $region14: #{mha_block_forward.7} parent=11 // pred_check_branch
        %144 = sbr.rel (%p142) target = $region16
      $region15: #{mha_block_forward.7} parent=11 // pred_region
        %p145 = scmp.lt.s32.totalorder %s19, 0
        %s146 = scalar_select %p145, %s19, 0
        %s147 = smul.addr %s146, 8
        %s148 = scalar_lea.vmem %s1, %s147
      $region16: #{mha_block_forward.7} parent=11 // pred_fallthru
        _
      // Predicated region
      $region17: #{mha_block_forward.7} parent=11 // pred_check
        %p149 = pneg %p99
      $region18: #{mha_block_forward.7} parent=11 // pred_check_branch
        %151 = sbr.rel (%p149) target = $region20
      $region19: #{mha_block_forward.7} parent=11 // pred_region
        %p152 = scmp.lt.s32.totalorder %s19, 0
        %s153 = scalar_select %p152, %s19, 0
        %s154 = scalar_lea.vmem %s2, %s153
      $region20: #{mha_block_forward.7} parent=11 // pred_fallthru
        _
    $region12: #{mha_block_forward.7} parent=5 // pred_fallthru
      _
    %p155 = scmp.lt.s32.totalorder %s9, 2
    // Predicated region
    $region21: #{mha_block_forward.7} parent=5 // pred_check
      %p156 = pneg %p155
    $region22: #{mha_block_forward.7} parent=5 // pred_check_branch
      %158 = sbr.rel (%p156) target = $region24
    $region23: #{mha_block_forward.7} parent=5 // pred_region
      // Predicated region
      $region25: #{mha_block_forward.7} parent=23 // pred_check
        %p159 = pneg %p41
      $region26: #{mha_block_forward.7} parent=23 // pred_check_branch
        %161 = sbr.rel (%p159) target = $region28
      $region27: #{mha_block_forward.7} parent=23 // pred_region
        %p162 = scmp.lt.s32.totalorder %s16, 1
        %s163 = scalar_select %p162, %s16, 1
        %s164 = smul.addr %s163, 8
        %s165 = scalar_lea.vmem %s0, %s164
      $region28: #{mha_block_forward.7} parent=23 // pred_fallthru
        _
    $region24: #{mha_block_forward.7} parent=5 // pred_fallthru
      _
    %p166 = scmp.le.s32.totalorder 1, %s9
    %p167 = scmp.lt.s32.totalorder %s9, 3
    %p168 = pnand %p166, %p167
    %p169 = pneg %p168
    // Predicated region
    $region29: #{mha_block_forward.7} parent=5 // pred_check
      _
    $region30: #{mha_block_forward.7} parent=5 // pred_check_branch
      %171 = sbr.rel (%p168) target = $region32
    $region31: #{mha_block_forward.7} parent=5 // pred_region
      %s172 = ssub.s32 %s9, 1
      %p173 = scmp.lt.s32.totalorder %s18, 1
      %s174 = scalar_select %p173, %s18, 1
      %s175 = smul.addr %s174, 8
      %s176 = scalar_lea.vmem %s0, %s175
      %p177 = pneg %p47
      %p178 = pneg %p44
      %p179 = scmp.lt.s32.totalorder %s19, 0
      %s180 = scalar_select %p179, %s19, 0
      %s181 = smul.addr %s180, 8
      %s182 = scalar_lea.vmem %s1, %s181
      %p183 = pneg %p73
      %p184 = pneg %p70
      %p185 = scmp.lt.s32.totalorder %s19, 0
      %s186 = scalar_select %p185, %s19, 0
      %s187 = scalar_lea.vmem %s2, %s186
      %p188 = pneg %p99
      %p189 = pneg %p96
      %p190 = pneg %p127
      %p191 = pneg %p124
      %p192 = scmp.lt.s32.totalorder %s18, 1
      %s193 = scalar_select %p192, %s18, 1
      %p194 = scmp.lt.s32.totalorder %s19, 0
      %s195 = scalar_select %p194, %s19, 0
      %s196 = sadd.s32 %s195, %s193
      %s197 = smul.addr %s196, 8
      %s198 = scalar_lea.vmem %s3, %s197
      %p199 = scmp.lt.s32.totalorder %s18, 1
      %s200 = scalar_select %p199, %s18, 1
      %s201 = smul.addr %s200, 8
      %s202 = scalar_lea.vmem %s0, %s201
      %p203 = scmp.lt.s32.totalorder %s19, 0
      %s204 = scalar_select %p203, %s19, 0
      %s205 = smul.addr %s204, 8
      %s206 = scalar_lea.vmem %s1, %s205
      %p207 = scmp.lt.s32.totalorder %s19, 0
      %s208 = scalar_select %p207, %s19, 0
      %s209 = scalar_lea.vmem %s2, %s208
      %p210 = scmp.lt.s32.totalorder %s18, 1
      %s211 = scalar_select %p210, %s18, 1
      %p212 = scmp.lt.s32.totalorder %s19, 0
      %s213 = scalar_select %p212, %s19, 0
      %s214 = sadd.s32 %s213, %s211
      %s215 = smul.addr %s214, 8
      %s216 = scalar_lea.vmem %s3, %s215
      %v217 = vld [vmem:[%s202] sm:$0xff]
      %v218 = vld [vmem:[%s206] sm:$0xff]
      %v219 = vld [vmem:[%s206 + $0x8] sm:$0xff]
      %v220 = vld [vmem:[%s206 + $0x10] sm:$0xff]
      %v221 = vld [vmem:[%s206 + $0x18] sm:$0xff]
      %v222 = vld [vmem:[%s209] sm:$0x1]
      %v224 = vlaneseq
      %v225 = vshrl.u32 %v224, 7
      %v226 = vsub.s32 0, %v225
      %v227 = vrot.slane %v222, %v226
      %vm229 = vcmask 261120
      %v231 = vsel %vm229, %v217, 0
      %233 = vmatprep.subr.mxu0 0.0
      %234 = vmatpush1.msra.mxu0 0.0
      %235 = vmatprep.subr.mxu0 0.0
      %236 = vmatpush1.msra.mxu0 0.0
      %237 = vmatprep.subr.mxu0 0.0
      %238 = vmatpush1.msra.mxu0 0.0
      %239 = vmatprep.subr.mxu0 0.0
      %240 = vmatpush1.msra.mxu0 0.0
      %241 = vmatprep.subr.mxu0 0.0
      %242 = vmatpush1.msra.mxu0 0.0
      %243 = vmatprep.subr.mxu0 0.0
      %244 = vmatpush1.msra.mxu0 0.0
      %245 = vmatprep.subr.mxu0 0.0
      %246 = vmatpush1.msra.mxu0 0.0
      %247 = vmatprep.subr.mxu0 0.0
      %248 = vmatpush1.msra.mxu0 0.0
      %249 = vmatprep.subr.mxu0 0.0
      %250 = vmatpush1.msra.mxu0 0.0
      %251 = vmatprep.subr.mxu0 0.0
      %252 = vmatpush1.msra.mxu0 0.0
      %253 = vmatprep.subr.mxu0 0.0
      %254 = vmatpush1.msra.mxu0 0.0
      %255 = vmatprep.subr.mxu0 0.0
      %256 = vmatpush1.msra.mxu0 0.0
      %257 = vmatprep.subr.mxu0 0.0
      %258 = vmatpush1.msra.mxu0 %v221
      %259 = vmatprep.subr.mxu0 0.0
      %260 = vmatpush1.msra.mxu0 %v220
      %261 = vmatprep.subr.mxu0 0.0
      %262 = vmatpush1.msra.mxu0 %v219
      %263 = vmatprep.subr.mxu0 0.0
      %264 = vmatpush1.msra.mxu0 %v218
      %265 = vmatprep.subr.mxu0 0.0
      %266 = vmatpush2.msra.mxu0 0.0
      %267 = vmatprep.subr.mxu0 0.0
      %268 = vmatpush2.msra.mxu0 0.0
      %269 = vmatprep.subr.mxu0 0.0
      %270 = vmatpush2.msra.mxu0 0.0
      %271 = vmatprep.subr.mxu0 0.0
      %272 = vmatpush2.msra.mxu0 0.0
      %273 = vmatprep.subr.mxu0 0.0
      %274 = vmatpush2.msra.mxu0 0.0
      %275 = vmatprep.subr.mxu0 0.0
      %276 = vmatpush2.msra.mxu0 0.0
      %277 = vmatprep.subr.mxu0 0.0
      %278 = vmatpush2.msra.mxu0 0.0
      %279 = vmatprep.subr.mxu0 0.0
      %280 = vmatpush2.msra.mxu0 0.0
      %281 = vmatprep.subr.mxu0 0.0
      %282 = vmatpush2.msra.mxu0 0.0
      %283 = vmatprep.subr.mxu0 0.0
      %284 = vmatpush2.msra.mxu0 0.0
      %285 = vmatprep.subr.mxu0 0.0
      %286 = vmatpush2.msra.mxu0 0.0
      %287 = vmatprep.subr.mxu0 0.0
      %288 = vmatpush2.msra.mxu0 0.0
      %289 = vmatprep.subr.mxu0 0.0
      %290 = vmatpush2.msra.mxu0 0.0
      %291 = vmatprep.subr.mxu0 0.0
      %292 = vmatpush2.msra.mxu0 0.0
      %293 = vmatprep.subr.mxu0 0.0
      %294 = vmatpush2.msra.mxu0 0.0
      %295 = vmatprep.subr.mxu0 0.0
      %296 = vmatpush2.msra.mxu0 0.0
      %297 = vmatprep.mubr.f32.mxu0 0.0
      %298 = vmatmul.mubr.f32.gmra.mxu0 %v231
      %v299 = vpop.f32.mrf.mxu0
      %v300 = vadd.f32 %v227, %v299
      %v301 = vpop.f32.mrf.mxu0
      %302 = vdwg.mxu0
      %vm303 = vcmask 785408
      %304 = vst.msk [vmem:[%s216] sm:$0xff] %vm303, %v300
      %p305 = scmp.lt.s32.totalorder %s18, 1
      %s306 = scalar_select %p305, %s18, 1
      %p307 = scmp.lt.s32.totalorder %s19, 0
      %s308 = scalar_select %p307, %s19, 0
      %s309 = sadd.s32 %s308, %s306
      %s310 = smul.addr %s309, 8
      %s311 = scalar_lea.vmem %s3, %s310
      // Predicated region
      $region33: #{mha_block_forward.7} parent=31 // pred_check
        %p312 = pneg %p124
      $region34: #{mha_block_forward.7} parent=31 // pred_check_branch
        %314 = sbr.rel (%p312) target = $region36
      $region35: #{mha_block_forward.7} parent=31 // pred_region
        _
      $region36: #{mha_block_forward.7} parent=31 // pred_fallthru
        _
    $region32: #{mha_block_forward.7} parent=5 // pred_fallthru
      _
    %p315 = scmp.le.s32.totalorder 2, %s9
    // Predicated region
    $region37: #{mha_block_forward.7} parent=5 // pred_check
      %p316 = pneg %p315
    $region38: #{mha_block_forward.7} parent=5 // pred_check_branch
      %318 = sbr.rel (%p316) target = $region40
    $region39: #{mha_block_forward.7} parent=5 // pred_region
      %s319 = ssub.s32 %s9, 2
      // Predicated region
      $region41: #{mha_block_forward.7} parent=39 // pred_check
        %p320 = pneg %p130
      $region42: #{mha_block_forward.7} parent=39 // pred_check_branch
        %322 = sbr.rel (%p320) target = $region44
      $region43: #{mha_block_forward.7} parent=39 // pred_region
        %p323 = scmp.lt.s32.totalorder %s20, 1
        %s324 = scalar_select %p323, %s20, 1
        %p325 = scmp.lt.s32.totalorder %s21, 0
        %s326 = scalar_select %p325, %s21, 0
        %s327 = sadd.s32 %s326, %s324
        %s328 = smul.addr %s327, 8
        %s329 = scalar_lea.vmem %s3, %s328
      $region44: #{mha_block_forward.7} parent=39 // pred_fallthru
        _
    $region40: #{mha_block_forward.7} parent=5 // pred_fallthru
      _
  $region6: #{mha_block_forward.7} parent=0 // loop_footer
    %s13 = sadd.s32 1, %s9
  $region7: #{mha_block_forward.7} parent=0 // loop_footer_branch
    %8 = sbr.rel target = $region3
  $region8: #{mha_block_forward.7} parent=0 // loop_exit
    _

// kernel: mha_block_forward.9
$region0: #{mha_block_forward.9}
  #allocation0 [shape = 'u32[]', space=smem, size = 0x4, offset = 0x4, fixed_abs, tag = 'smem constant byte address 0x4 - core index']
  #allocation1 [shape = 'u32[144,128]{1,0:T(1,128)}', space=vmem, size = 0x12000, scoped, tag = 'internal scratch']
  #allocation2 [shape = 'f32[8,32]{1,0:T(8,128)}', space=vmem, size = 0x1000, scoped, tag = 'scratch operand']
  %s0 = inlined_call_operand.vmem [shape: f32[16,32], index: 0, kind: input, shape index: {}]
  %s1 = inlined_call_operand.vmem [shape: f32[32,32], index: 1, kind: input, shape index: {}]
  %s2 = inlined_call_operand.vmem [shape: f32[1,32], index: 2, kind: input, shape index: {}]
  %s3 = inlined_call_operand.vmem [shape: f32[16,32], index: 3, kind: input, shape index: {}]
  %s4 = inlined_call_operand.vmem [shape: f32[1,32], index: 4, kind: input, shape index: {}]
  %s5 = inlined_call_operand.vmem [shape: f32[1,32], index: 5, kind: input, shape index: {}]
  %s6 = inlined_call_operand.vmem [shape: f32[16,32], index: 6, kind: output, shape index: {}]
  %s7 = sld [smem:[#allocation0]]
  $region65: #{mha_block_forward.9} parent=0
    _
  %s9 = ssub.s32 1, %s7
  %s10 = scalar_select 0, %s9, %s7
  loop: start=0, step=1, limit=4
  $region2: #{mha_block_forward.9} parent=0 // loop_pre_header
    _
  $region3: #{mha_block_forward.9} parent=0 // loop_header
    %s12 = sphi 0, %s16
    %p13 = scmp.ge.s32.totalorder %s12, 4
    %s19 = sphi 0, %s31
    %s20 = sphi 0, %s27
    %s21 = sphi 0, %s19
    %s22 = sphi 0, %s20
    %s23 = sphi 0, %s21
    %s24 = sphi 0, %s22
    %s36 = sphi 0, %s38
    %s39 = sphi 0, %s36
    %s40 = sphi 0, %s39
    %s56 = sphi 0, %s40
    %s62 = sphi 0, %s64
    %s65 = sphi 0, %s62
    %s66 = sphi 0, %s65
    %s82 = sphi 0, %s66
    %s86 = sphi 0, %s86
    %s88 = sphi 0, %s86
    %s89 = sphi 0, %s88
    %s103 = sphi 0, %s89
    %s109 = sphi 0, %s111
    %s112 = sphi 0, %s109
    %s113 = sphi 0, %s112
    %s129 = sphi 0, %s113
    %s133 = sphi 0, %s133
    %s135 = sphi 0, %s133
    %s136 = sphi 0, %s135
    %s150 = sphi 0, %s136
    %s154 = sphi 0, %s154
    %s156 = sphi 0, %s154
    %s157 = sphi 0, %s156
    %s171 = sphi 0, %s157
    %s177 = sphi 0, %s179
    %s180 = sphi 0, %s177
    %s181 = sphi 0, %s180
    %s197 = sphi 0, %s181
  $region4: #{mha_block_forward.9} parent=0 // loop_header_branch
    %15 = sbr.rel (%p13) target = $region8
  $region5: #{mha_block_forward.9} parent=0 // loop_body
    %s17 = ssub.s32 %s12, 1
    %s18 = ssub.s32 %s12, 2
    %s25 = sadd.s32 1, %s20
    %p26 = scmp.ge.s32.totalorder %s25, 1
    %s27 = scalar_select %p26, 0, %s25
    %s28 = sadd.s32 1, %s19
    %s29 = scalar_select %p26, %s28, %s19
    %p30 = scmp.ge.s32.totalorder %s29, 2
    %s31 = scalar_select %p30, 0, %s29
    %s32 = ssub.s32 %s19, %s31
    %s33 = ssub.s32 %s20, %s27
    %s34 = sor.u32 %s32, %s33
    %p35 = scmp.eq.s32.totalorder %s34, 0
    %s37 = sadd.s32 %s36, 1
    %s38 = scalar_select %p35, %s36, %s37
    %p41 = pneg %p35
    %p42 = scmp.eq.s32.totalorder %s12, 1
    %p43 = por %p41, %p42
    %p44 = scmp.ne.s32.totalorder %s36, %s39
    %p45 = scmp.eq.s32.totalorder %s12, 0
    %p46 = por %p44, %p45
    %p47 = scmp.ne.s32.totalorder %s36, %s39
    %p48 = scmp.eq.s32.totalorder %s17, 1
    %p49 = por %p47, %p48
    %p50 = scmp.ne.s32.totalorder %s39, %s40
    %p51 = scmp.eq.s32.totalorder %s17, 0
    %p52 = por %p50, %p51
    %p53 = scmp.ne.s32.totalorder %s39, %s40
    %p54 = scmp.eq.s32.totalorder %s18, 1
    %p55 = por %p53, %p54
    %p57 = scmp.ne.s32.totalorder %s40, %s56
    %p58 = scmp.eq.s32.totalorder %s18, 0
    %p59 = por %p57, %p58
    %s60 = ssub.s32 %s20, %s27
    %p61 = scmp.eq.s32.totalorder %s60, 0
    %s63 = sadd.s32 %s62, 1
    %s64 = scalar_select %p61, %s62, %s63
    %p67 = pneg %p61
    %p68 = scmp.eq.s32.totalorder %s12, 1
    %p69 = por %p67, %p68
    %p70 = scmp.ne.s32.totalorder %s62, %s65
    %p71 = scmp.eq.s32.totalorder %s12, 0
    %p72 = por %p70, %p71
    %p73 = scmp.ne.s32.totalorder %s62, %s65
    %p74 = scmp.eq.s32.totalorder %s17, 1
    %p75 = por %p73, %p74
    %p76 = scmp.ne.s32.totalorder %s65, %s66
    %p77 = scmp.eq.s32.totalorder %s17, 0
    %p78 = por %p76, %p77
    %p79 = scmp.ne.s32.totalorder %s65, %s66
    %p80 = scmp.eq.s32.totalorder %s18, 1
    %p81 = por %p79, %p80
    %p83 = scmp.ne.s32.totalorder %s66, %s82
    %p84 = scmp.eq.s32.totalorder %s18, 0
    %p85 = por %p83, %p84
    %s87 = sadd.s32 %s86, 1
    %p90 = scmp.eq.s32.totalorder %s12, 1
    %p91 = scmp.ne.s32.totalorder %s86, %s88
    %p92 = scmp.eq.s32.totalorder %s12, 0
    %p93 = por %p91, %p92
    %p94 = scmp.ne.s32.totalorder %s86, %s88
    %p95 = scmp.eq.s32.totalorder %s17, 1
    %p96 = por %p94, %p95
    %p97 = scmp.ne.s32.totalorder %s88, %s89
    %p98 = scmp.eq.s32.totalorder %s17, 0
    %p99 = por %p97, %p98
    %p100 = scmp.ne.s32.totalorder %s88, %s89
    %p101 = scmp.eq.s32.totalorder %s18, 1
    %p102 = por %p100, %p101
    %p104 = scmp.ne.s32.totalorder %s89, %s103
    %p105 = scmp.eq.s32.totalorder %s18, 0
    %p106 = por %p104, %p105
    %s107 = ssub.s32 %s19, %s31
    %p108 = scmp.eq.s32.totalorder %s107, 0
    %s110 = sadd.s32 %s109, 1
    %s111 = scalar_select %p108, %s109, %s110
    %p114 = pneg %p108
    %p115 = scmp.eq.s32.totalorder %s12, 1
    %p116 = por %p114, %p115
    %p117 = scmp.ne.s32.totalorder %s109, %s112
    %p118 = scmp.eq.s32.totalorder %s12, 0
    %p119 = por %p117, %p118
    %p120 = scmp.ne.s32.totalorder %s109, %s112
    %p121 = scmp.eq.s32.totalorder %s17, 1
    %p122 = por %p120, %p121
    %p123 = scmp.ne.s32.totalorder %s112, %s113
    %p124 = scmp.eq.s32.totalorder %s17, 0
    %p125 = por %p123, %p124
    %p126 = scmp.ne.s32.totalorder %s112, %s113
    %p127 = scmp.eq.s32.totalorder %s18, 1
    %p128 = por %p126, %p127
    %p130 = scmp.ne.s32.totalorder %s113, %s129
    %p131 = scmp.eq.s32.totalorder %s18, 0
    %p132 = por %p130, %p131
    %s134 = sadd.s32 %s133, 1
    %p137 = scmp.eq.s32.totalorder %s12, 1
    %p138 = scmp.ne.s32.totalorder %s133, %s135
    %p139 = scmp.eq.s32.totalorder %s12, 0
    %p140 = por %p138, %p139
    %p141 = scmp.ne.s32.totalorder %s133, %s135
    %p142 = scmp.eq.s32.totalorder %s17, 1
    %p143 = por %p141, %p142
    %p144 = scmp.ne.s32.totalorder %s135, %s136
    %p145 = scmp.eq.s32.totalorder %s17, 0
    %p146 = por %p144, %p145
    %p147 = scmp.ne.s32.totalorder %s135, %s136
    %p148 = scmp.eq.s32.totalorder %s18, 1
    %p149 = por %p147, %p148
    %p151 = scmp.ne.s32.totalorder %s136, %s150
    %p152 = scmp.eq.s32.totalorder %s18, 0
    %p153 = por %p151, %p152
    %s155 = sadd.s32 %s154, 1
    %p158 = scmp.eq.s32.totalorder %s12, 1
    %p159 = scmp.ne.s32.totalorder %s154, %s156
    %p160 = scmp.eq.s32.totalorder %s12, 0
    %p161 = por %p159, %p160
    %p162 = scmp.ne.s32.totalorder %s154, %s156
    %p163 = scmp.eq.s32.totalorder %s17, 1
    %p164 = por %p162, %p163
    %p165 = scmp.ne.s32.totalorder %s156, %s157
    %p166 = scmp.eq.s32.totalorder %s17, 0
    %p167 = por %p165, %p166
    %p168 = scmp.ne.s32.totalorder %s156, %s157
    %p169 = scmp.eq.s32.totalorder %s18, 1
    %p170 = por %p168, %p169
    %p172 = scmp.ne.s32.totalorder %s157, %s171
    %p173 = scmp.eq.s32.totalorder %s18, 0
    %p174 = por %p172, %p173
    %s175 = ssub.s32 %s19, %s31
    %p176 = scmp.eq.s32.totalorder %s175, 0
    %s178 = sadd.s32 %s177, 1
    %s179 = scalar_select %p176, %s177, %s178
    %p182 = pneg %p176
    %p183 = scmp.eq.s32.totalorder %s12, 1
    %p184 = por %p182, %p183
    %p185 = scmp.ne.s32.totalorder %s177, %s180
    %p186 = scmp.eq.s32.totalorder %s12, 0
    %p187 = por %p185, %p186
    %p188 = scmp.ne.s32.totalorder %s177, %s180
    %p189 = scmp.eq.s32.totalorder %s17, 1
    %p190 = por %p188, %p189
    %p191 = scmp.ne.s32.totalorder %s180, %s181
    %p192 = scmp.eq.s32.totalorder %s17, 0
    %p193 = por %p191, %p192
    %p194 = scmp.ne.s32.totalorder %s180, %s181
    %p195 = scmp.eq.s32.totalorder %s18, 1
    %p196 = por %p194, %p195
    %p198 = scmp.ne.s32.totalorder %s181, %s197
    %p199 = scmp.eq.s32.totalorder %s18, 0
    %p200 = por %p198, %p199
    %p201 = scmp.le.s32.totalorder 1, %s12
    %p202 = scmp.lt.s32.totalorder %s12, 3
    %p203 = pnand %p201, %p202
    %p204 = pneg %p203
    // Predicated region
    $region9: #{mha_block_forward.9} parent=5 // pred_check
      _
    $region10: #{mha_block_forward.9} parent=5 // pred_check_branch
      %206 = sbr.rel (%p203) target = $region12
    $region11: #{mha_block_forward.9} parent=5 // pred_region
      %s207 = ssub.s32 %s12, 1
      // Predicated region
      $region13: #{mha_block_forward.9} parent=11 // pred_check
        %p208 = pneg %p78
      $region14: #{mha_block_forward.9} parent=11 // pred_check_branch
        %210 = sbr.rel (%p208) target = $region16
      $region15: #{mha_block_forward.9} parent=11 // pred_region
        %s211 = smul.u32 4, %s22
        %p212 = scmp.lt.s32.totalorder %s211, 3
        %s213 = scalar_select %p212, %s211, 3
        %s214 = smul.addr %s213, 8
        %s215 = scalar_lea.vmem %s1, %s214
        %s216 = smul.u32 4, %s22
      $region16: #{mha_block_forward.9} parent=11 // pred_fallthru
        _
      // Predicated region
      $region17: #{mha_block_forward.9} parent=11 // pred_check
        %p217 = pneg %p99
      $region18: #{mha_block_forward.9} parent=11 // pred_check_branch
        %219 = sbr.rel (%p217) target = $region20
      $region19: #{mha_block_forward.9} parent=11 // pred_region
        _
      $region20: #{mha_block_forward.9} parent=11 // pred_fallthru
        _
      // Predicated region
      $region21: #{mha_block_forward.9} parent=11 // pred_check
        %p220 = pneg %p146
      $region22: #{mha_block_forward.9} parent=11 // pred_check_branch
        %222 = sbr.rel (%p220) target = $region24
      $region23: #{mha_block_forward.9} parent=11 // pred_region
        _
      $region24: #{mha_block_forward.9} parent=11 // pred_fallthru
        _
      // Predicated region
      $region25: #{mha_block_forward.9} parent=11 // pred_check
        %p223 = pneg %p167
      $region26: #{mha_block_forward.9} parent=11 // pred_check_branch
        %225 = sbr.rel (%p223) target = $region28
      $region27: #{mha_block_forward.9} parent=11 // pred_region
        _
      $region28: #{mha_block_forward.9} parent=11 // pred_fallthru
        _
    $region12: #{mha_block_forward.9} parent=5 // pred_fallthru
      _
    %p226 = scmp.lt.s32.totalorder %s12, 2
    // Predicated region
    $region29: #{mha_block_forward.9} parent=5 // pred_check
      %p227 = pneg %p226
    $region30: #{mha_block_forward.9} parent=5 // pred_check_branch
      %229 = sbr.rel (%p227) target = $region32
    $region31: #{mha_block_forward.9} parent=5 // pred_region
      // Predicated region
      $region33: #{mha_block_forward.9} parent=31 // pred_check
        %p230 = pneg %p46
      $region34: #{mha_block_forward.9} parent=31 // pred_check_branch
        %232 = sbr.rel (%p230) target = $region36
      $region35: #{mha_block_forward.9} parent=31 // pred_region
        %p233 = scmp.lt.s32.totalorder %s19, 1
        %s234 = scalar_select %p233, %s19, 1
        %p235 = scmp.lt.s32.totalorder %s20, 0
        %s236 = scalar_select %p235, %s20, 0
        %s237 = sadd.s32 %s236, %s234
        %s238 = smul.addr %s237, 8
        %s239 = scalar_lea.vmem %s0, %s238
      $region36: #{mha_block_forward.9} parent=31 // pred_fallthru
        _
      // Predicated region
      $region37: #{mha_block_forward.9} parent=31 // pred_check
        %p240 = pneg %p119
      $region38: #{mha_block_forward.9} parent=31 // pred_check_branch
        %242 = sbr.rel (%p240) target = $region40
      $region39: #{mha_block_forward.9} parent=31 // pred_region
        %p243 = scmp.lt.s32.totalorder %s19, 1
        %s244 = scalar_select %p243, %s19, 1
        %s245 = smul.addr %s244, 8
        %s246 = scalar_lea.vmem %s3, %s245
      $region40: #{mha_block_forward.9} parent=31 // pred_fallthru
        _
    $region32: #{mha_block_forward.9} parent=5 // pred_fallthru
      _
    %p247 = scmp.le.s32.totalorder 1, %s12
    %p248 = scmp.lt.s32.totalorder %s12, 3
    %p249 = pnand %p247, %p248
    %p250 = pneg %p249
    // Predicated region
    $region41: #{mha_block_forward.9} parent=5 // pred_check
      _
    $region42: #{mha_block_forward.9} parent=5 // pred_check_branch
      %252 = sbr.rel (%p249) target = $region44
    $region43: #{mha_block_forward.9} parent=5 // pred_region
      %s253 = ssub.s32 %s12, 1
      %p254 = scmp.lt.s32.totalorder %s21, 1
      %s255 = scalar_select %p254, %s21, 1
      %p256 = scmp.lt.s32.totalorder %s22, 0
      %s257 = scalar_select %p256, %s22, 0
      %s258 = sadd.s32 %s257, %s255
      %s259 = smul.addr %s258, 8
      %s260 = scalar_lea.vmem %s0, %s259
      %p261 = pneg %p52
      %p262 = pneg %p49
      %s263 = smul.u32 4, %s22
      %p264 = scmp.lt.s32.totalorder %s263, 3
      %s265 = scalar_select %p264, %s263, 3
      %s266 = smul.addr %s265, 8
      %s267 = scalar_lea.vmem %s1, %s266
      %p268 = pneg %p78
      %p269 = pneg %p75
      %p270 = pneg %p99
      %p271 = pneg %p96
      %p272 = scmp.lt.s32.totalorder %s21, 1
      %s273 = scalar_select %p272, %s21, 1
      %s274 = smul.addr %s273, 8
      %s275 = scalar_lea.vmem %s3, %s274
      %p276 = pneg %p125
      %p277 = pneg %p122
      %p278 = pneg %p146
      %p279 = pneg %p143
      %p280 = pneg %p167
      %p281 = pneg %p164
      %p282 = pneg %p193
      %p283 = pneg %p190
      %p284 = scmp.lt.s32.totalorder %s21, 1
      %s285 = scalar_select %p284, %s21, 1
      %s286 = smul.addr %s285, 8
      %s287 = scalar_lea.vmem %s6, %s286
      %p288 = scmp.lt.s32.totalorder %s21, 1
      %s289 = scalar_select %p288, %s21, 1
      %p290 = scmp.lt.s32.totalorder %s22, 0
      %s291 = scalar_select %p290, %s22, 0
      %s292 = sadd.s32 %s291, %s289
      %s293 = smul.addr %s292, 8
      %s294 = scalar_lea.vmem %s0, %s293
      %s295 = smul.u32 4, %s22
      %p296 = scmp.lt.s32.totalorder %s295, 3
      %s297 = scalar_select %p296, %s295, 3
      %s298 = smul.addr %s297, 8
      %s299 = scalar_lea.vmem %s1, %s298
      %s300 = smul.u32 4, %s22
      %p301 = scmp.lt.s32.totalorder %s21, 1
      %s302 = scalar_select %p301, %s21, 1
      %s303 = smul.addr %s302, 8
      %s304 = scalar_lea.vmem %s3, %s303
      %p305 = scmp.lt.s32.totalorder %s21, 1
      %s306 = scalar_select %p305, %s21, 1
      %s307 = smul.addr %s306, 8
      %s308 = scalar_lea.vmem %s6, %s307
      %p309 = scmp.eq.s32.totalorder %s22, 0
      // Predicated region
      $region45: #{mha_block_forward.9} parent=43 // pred_check
        %p310 = pneg %p309
      $region46: #{mha_block_forward.9} parent=43 // pred_check_branch
        %312 = sbr.rel (%p310) target = $region48
      $region47: #{mha_block_forward.9} parent=43 // pred_region
        %vm313 = vcmask 261120
        %314 = vst.msk [vmem:[#allocation2] sm:$0xff] %vm313, 0.0
      $region48: #{mha_block_forward.9} parent=43 // pred_fallthru
        _
      %v315 = vld [vmem:[#allocation2] sm:$0xff]
      %v316 = vld [vmem:[%s294] sm:$0xff]
      %v317 = vld [vmem:[%s299] sm:$0xff]
      %v318 = vld [vmem:[%s299 + $0x8] sm:$0xff]
      %v319 = vld [vmem:[%s299 + $0x10] sm:$0xff]
      %v320 = vld [vmem:[%s299 + $0x18] sm:$0xff]
      %vm321 = vcmask 261120
      %v323 = vsel %vm321, %v316, 0
      %325 = vmatprep.subr.mxu0 0.0
      %326 = vmatpush1.msra.mxu0 0.0
      %327 = vmatprep.subr.mxu0 0.0
      %328 = vmatpush1.msra.mxu0 0.0
      %329 = vmatprep.subr.mxu0 0.0
      %330 = vmatpush1.msra.mxu0 0.0
      %331 = vmatprep.subr.mxu0 0.0
      %332 = vmatpush1.msra.mxu0 0.0
      %333 = vmatprep.subr.mxu0 0.0
      %334 = vmatpush1.msra.mxu0 0.0
      %335 = vmatprep.subr.mxu0 0.0
      %336 = vmatpush1.msra.mxu0 0.0
      %337 = vmatprep.subr.mxu0 0.0
      %338 = vmatpush1.msra.mxu0 0.0
      %339 = vmatprep.subr.mxu0 0.0
      %340 = vmatpush1.msra.mxu0 0.0
      %341 = vmatprep.subr.mxu0 0.0
      %342 = vmatpush1.msra.mxu0 0.0
      %343 = vmatprep.subr.mxu0 0.0
      %344 = vmatpush1.msra.mxu0 0.0
      %345 = vmatprep.subr.mxu0 0.0
      %346 = vmatpush1.msra.mxu0 0.0
      %347 = vmatprep.subr.mxu0 0.0
      %348 = vmatpush1.msra.mxu0 0.0
      %349 = vmatprep.subr.mxu0 0.0
      %350 = vmatpush1.msra.mxu0 %v320
      %351 = vmatprep.subr.mxu0 0.0
      %352 = vmatpush1.msra.mxu0 %v319
      %353 = vmatprep.subr.mxu0 0.0
      %354 = vmatpush1.msra.mxu0 %v318
      %355 = vmatprep.subr.mxu0 0.0
      %356 = vmatpush1.msra.mxu0 %v317
      %357 = vmatprep.subr.mxu0 0.0
      %358 = vmatpush2.msra.mxu0 0.0
      %359 = vmatprep.subr.mxu0 0.0
      %360 = vmatpush2.msra.mxu0 0.0
      %361 = vmatprep.subr.mxu0 0.0
      %362 = vmatpush2.msra.mxu0 0.0
      %363 = vmatprep.subr.mxu0 0.0
      %364 = vmatpush2.msra.mxu0 0.0
      %365 = vmatprep.subr.mxu0 0.0
      %366 = vmatpush2.msra.mxu0 0.0
      %367 = vmatprep.subr.mxu0 0.0
      %368 = vmatpush2.msra.mxu0 0.0
      %369 = vmatprep.subr.mxu0 0.0
      %370 = vmatpush2.msra.mxu0 0.0
      %371 = vmatprep.subr.mxu0 0.0
      %372 = vmatpush2.msra.mxu0 0.0
      %373 = vmatprep.subr.mxu0 0.0
      %374 = vmatpush2.msra.mxu0 0.0
      %375 = vmatprep.subr.mxu0 0.0
      %376 = vmatpush2.msra.mxu0 0.0
      %377 = vmatprep.subr.mxu0 0.0
      %378 = vmatpush2.msra.mxu0 0.0
      %379 = vmatprep.subr.mxu0 0.0
      %380 = vmatpush2.msra.mxu0 0.0
      %381 = vmatprep.subr.mxu0 0.0
      %382 = vmatpush2.msra.mxu0 0.0
      %383 = vmatprep.subr.mxu0 0.0
      %384 = vmatpush2.msra.mxu0 0.0
      %385 = vmatprep.subr.mxu0 0.0
      %386 = vmatpush2.msra.mxu0 0.0
      %387 = vmatprep.subr.mxu0 0.0
      %388 = vmatpush2.msra.mxu0 0.0
      %389 = vmatprep.mubr.f32.mxu0 0.0
      %390 = vmatmul.mubr.f32.gmra.mxu0 %v323
      %v391 = vpop.f32.mrf.mxu0
      %v392 = vadd.f32 0.0, %v391
      %v393 = vpop.f32.mrf.mxu0
      %394 = vdwg.mxu0
      %v395 = vadd.f32 %v315, %v392
      %396 = vst.msk [vmem:[#allocation2] sm:$0xff] %vm321, %v395
      // Predicated region
      $region49: #{mha_block_forward.9} parent=43 // pred_check
        %p397 = pneg %p309
      $region50: #{mha_block_forward.9} parent=43 // pred_check_branch
        %399 = sbr.rel (%p397) target = $region52
      $region51: #{mha_block_forward.9} parent=43 // pred_region
        %v400 = vld [vmem:[#allocation2] sm:$0xff]
        %v401 = vld [vmem:[%s2] sm:$0x1]
        %v403 = vlaneseq
        %v404 = vshrl.u32 %v403, 7
        %v405 = vsub.s32 0, %v404
        %v406 = vrot.slane %v401, %v405
        %v408 = vadd.f32 %v400, %v406
        %v409 = vld [vmem:[%s304] sm:$0xff]
        %v410 = vadd.f32 %v408, %v409
        %v411 = vsel %vm321, %v410, 0.0
        %412 = vadd.xlane.f32.xlu0 %v411
        %v413 = vpop.xlane.xlu0 %412
        %v414 = vrcp.pop 32.0
        %v415 = vmul.f32 %v413, %v414
        %v416 = vsub.f32 %v410, %v415
        %v417 = vmul.f32 %v416, %v416
        %v418 = vsel %vm321, %v417, 0.0
        %419 = vadd.xlane.f32.xlu0 %v418
        %v420 = vpop.xlane.xlu0 %419
        %v421 = vmul.f32 %v420, %v414
        %v422 = vadd.f32 %v421, 1e-05
        %v423 = vrsqrt.pop %v422
        %v424 = vmul.f32 %v416, %v423
        %v425 = vld [vmem:[%s4] sm:$0x1]
        %v427 = vlaneseq
        %v428 = vshrl.u32 %v427, 7
        %v429 = vsub.s32 0, %v428
        %v430 = vrot.slane %v425, %v429
        %v432 = vmul.f32 %v424, %v430
        %v433 = vld [vmem:[%s5] sm:$0x1]
        %v435 = vlaneseq
        %v436 = vshrl.u32 %v435, 7
        %v437 = vsub.s32 0, %v436
        %v438 = vrot.slane %v433, %v437
        %v440 = vadd.f32 %v432, %v438
        %441 = vst.msk [vmem:[%s308] sm:$0xff] %vm321, %v440
      $region52: #{mha_block_forward.9} parent=43 // pred_fallthru
        _
      %p442 = scmp.lt.s32.totalorder %s21, 1
      %s443 = scalar_select %p442, %s21, 1
      %s444 = smul.addr %s443, 8
      %s445 = scalar_lea.vmem %s6, %s444
      // Predicated region
      $region53: #{mha_block_forward.9} parent=43 // pred_check
        %p446 = pneg %p190
      $region54: #{mha_block_forward.9} parent=43 // pred_check_branch
        %448 = sbr.rel (%p446) target = $region56
      $region55: #{mha_block_forward.9} parent=43 // pred_region
        _
      $region56: #{mha_block_forward.9} parent=43 // pred_fallthru
        _
    $region44: #{mha_block_forward.9} parent=5 // pred_fallthru
      _
    %p449 = scmp.le.s32.totalorder 2, %s12
    // Predicated region
    $region57: #{mha_block_forward.9} parent=5 // pred_check
      %p450 = pneg %p449
    $region58: #{mha_block_forward.9} parent=5 // pred_check_branch
      %452 = sbr.rel (%p450) target = $region60
    $region59: #{mha_block_forward.9} parent=5 // pred_region
      %s453 = ssub.s32 %s12, 2
      // Predicated region
      $region61: #{mha_block_forward.9} parent=59 // pred_check
        %p454 = pneg %p196
      $region62: #{mha_block_forward.9} parent=59 // pred_check_branch
        %456 = sbr.rel (%p454) target = $region64
      $region63: #{mha_block_forward.9} parent=59 // pred_region
        %p457 = scmp.lt.s32.totalorder %s23, 1
        %s458 = scalar_select %p457, %s23, 1
        %s459 = smul.addr %s458, 8
        %s460 = scalar_lea.vmem %s6, %s459
      $region64: #{mha_block_forward.9} parent=59 // pred_fallthru
        _
    $region60: #{mha_block_forward.9} parent=5 // pred_fallthru
      _
  $region6: #{mha_block_forward.9} parent=0 // loop_footer
    %s16 = sadd.s32 1, %s12
  $region7: #{mha_block_forward.9} parent=0 // loop_footer_branch
    %11 = sbr.rel target = $region3
  $region8: #{mha_block_forward.9} parent=0 // loop_exit
    _

// kernel: mha_block_forward.10
$region0: #{mha_block_forward.10}
  #allocation0 [shape = 'u32[]', space=smem, size = 0x4, offset = 0x4, fixed_abs, tag = 'smem constant byte address 0x4 - core index']
  #allocation1 [shape = 'u32[144,128]{1,0:T(1,128)}', space=vmem, size = 0x12000, scoped, tag = 'internal scratch']
  #allocation2 [shape = 'f32[8,32]{1,0:T(8,128)}', space=vmem, size = 0x1000, scoped, tag = 'scratch operand']
  %s0 = inlined_call_operand.vmem [shape: f32[16,32], index: 0, kind: input, shape index: {}]
  %s1 = inlined_call_operand.vmem [shape: f32[32,32], index: 1, kind: input, shape index: {}]
  %s2 = inlined_call_operand.vmem [shape: f32[1,32], index: 2, kind: input, shape index: {}]
  %s3 = inlined_call_operand.vmem [shape: f32[32,32], index: 3, kind: input, shape index: {}]
  %s4 = inlined_call_operand.vmem [shape: f32[1,32], index: 4, kind: input, shape index: {}]
  %s5 = inlined_call_operand.vmem [shape: f32[16,32], index: 5, kind: output, shape index: {}]
  %s6 = sld [smem:[#allocation0]]
  $region61: #{mha_block_forward.10} parent=0
    _
  %s8 = ssub.s32 1, %s6
  %s9 = scalar_select 0, %s8, %s6
  loop: start=0, step=1, limit=4
  $region2: #{mha_block_forward.10} parent=0 // loop_pre_header
    _
  $region3: #{mha_block_forward.10} parent=0 // loop_header
    %s11 = sphi 0, %s15
    %p12 = scmp.ge.s32.totalorder %s11, 4
    %s18 = sphi 0, %s30
    %s19 = sphi 0, %s26
    %s20 = sphi 0, %s18
    %s21 = sphi 0, %s19
    %s22 = sphi 0, %s20
    %s23 = sphi 0, %s21
    %s33 = sphi 0, %s35
    %s36 = sphi 0, %s33
    %s37 = sphi 0, %s36
    %s53 = sphi 0, %s37
    %s59 = sphi 0, %s61
    %s62 = sphi 0, %s59
    %s63 = sphi 0, %s62
    %s79 = sphi 0, %s63
    %s85 = sphi 0, %s87
    %s88 = sphi 0, %s85
    %s89 = sphi 0, %s88
    %s105 = sphi 0, %s89
    %s111 = sphi 0, %s113
    %s114 = sphi 0, %s111
    %s115 = sphi 0, %s114
    %s131 = sphi 0, %s115
    %s135 = sphi 0, %s135
    %s137 = sphi 0, %s135
    %s138 = sphi 0, %s137
    %s152 = sphi 0, %s138
    %s158 = sphi 0, %s160
    %s161 = sphi 0, %s158
    %s162 = sphi 0, %s161
    %s178 = sphi 0, %s162
  $region4: #{mha_block_forward.10} parent=0 // loop_header_branch
    %14 = sbr.rel (%p12) target = $region8
  $region5: #{mha_block_forward.10} parent=0 // loop_body
    %s16 = ssub.s32 %s11, 1
    %s17 = ssub.s32 %s11, 2
    %s24 = sadd.s32 1, %s19
    %p25 = scmp.ge.s32.totalorder %s24, 1
    %s26 = scalar_select %p25, 0, %s24
    %s27 = sadd.s32 1, %s18
    %s28 = scalar_select %p25, %s27, %s18
    %p29 = scmp.ge.s32.totalorder %s28, 2
    %s30 = scalar_select %p29, 0, %s28
    %s31 = ssub.s32 %s18, %s30
    %p32 = scmp.eq.s32.totalorder %s31, 0
    %s34 = sadd.s32 %s33, 1
    %s35 = scalar_select %p32, %s33, %s34
    %p38 = pneg %p32
    %p39 = scmp.eq.s32.totalorder %s11, 1
    %p40 = por %p38, %p39
    %p41 = scmp.ne.s32.totalorder %s33, %s36
    %p42 = scmp.eq.s32.totalorder %s11, 0
    %p43 = por %p41, %p42
    %p44 = scmp.ne.s32.totalorder %s33, %s36
    %p45 = scmp.eq.s32.totalorder %s16, 1
    %p46 = por %p44, %p45
    %p47 = scmp.ne.s32.totalorder %s36, %s37
    %p48 = scmp.eq.s32.totalorder %s16, 0
    %p49 = por %p47, %p48
    %p50 = scmp.ne.s32.totalorder %s36, %s37
    %p51 = scmp.eq.s32.totalorder %s17, 1
    %p52 = por %p50, %p51
    %p54 = scmp.ne.s32.totalorder %s37, %s53
    %p55 = scmp.eq.s32.totalorder %s17, 0
    %p56 = por %p54, %p55
    %s57 = ssub.s32 %s19, %s26
    %p58 = scmp.eq.s32.totalorder %s57, 0
    %s60 = sadd.s32 %s59, 1
    %s61 = scalar_select %p58, %s59, %s60
    %p64 = pneg %p58
    %p65 = scmp.eq.s32.totalorder %s11, 1
    %p66 = por %p64, %p65
    %p67 = scmp.ne.s32.totalorder %s59, %s62
    %p68 = scmp.eq.s32.totalorder %s11, 0
    %p69 = por %p67, %p68
    %p70 = scmp.ne.s32.totalorder %s59, %s62
    %p71 = scmp.eq.s32.totalorder %s16, 1
    %p72 = por %p70, %p71
    %p73 = scmp.ne.s32.totalorder %s62, %s63
    %p74 = scmp.eq.s32.totalorder %s16, 0
    %p75 = por %p73, %p74
    %p76 = scmp.ne.s32.totalorder %s62, %s63
    %p77 = scmp.eq.s32.totalorder %s17, 1
    %p78 = por %p76, %p77
    %p80 = scmp.ne.s32.totalorder %s63, %s79
    %p81 = scmp.eq.s32.totalorder %s17, 0
    %p82 = por %p80, %p81
    %s83 = ssub.s32 %s19, %s26
    %p84 = scmp.eq.s32.totalorder %s83, 0
    %s86 = sadd.s32 %s85, 1
    %s87 = scalar_select %p84, %s85, %s86
    %p90 = pneg %p84
    %p91 = scmp.eq.s32.totalorder %s11, 1
    %p92 = por %p90, %p91
    %p93 = scmp.ne.s32.totalorder %s85, %s88
    %p94 = scmp.eq.s32.totalorder %s11, 0
    %p95 = por %p93, %p94
    %p96 = scmp.ne.s32.totalorder %s85, %s88
    %p97 = scmp.eq.s32.totalorder %s16, 1
    %p98 = por %p96, %p97
    %p99 = scmp.ne.s32.totalorder %s88, %s89
    %p100 = scmp.eq.s32.totalorder %s16, 0
    %p101 = por %p99, %p100
    %p102 = scmp.ne.s32.totalorder %s88, %s89
    %p103 = scmp.eq.s32.totalorder %s17, 1
    %p104 = por %p102, %p103
    %p106 = scmp.ne.s32.totalorder %s89, %s105
    %p107 = scmp.eq.s32.totalorder %s17, 0
    %p108 = por %p106, %p107
    %s109 = ssub.s32 %s19, %s26
    %p110 = scmp.eq.s32.totalorder %s109, 0
    %s112 = sadd.s32 %s111, 1
    %s113 = scalar_select %p110, %s111, %s112
    %p116 = pneg %p110
    %p117 = scmp.eq.s32.totalorder %s11, 1
    %p118 = por %p116, %p117
    %p119 = scmp.ne.s32.totalorder %s111, %s114
    %p120 = scmp.eq.s32.totalorder %s11, 0
    %p121 = por %p119, %p120
    %p122 = scmp.ne.s32.totalorder %s111, %s114
    %p123 = scmp.eq.s32.totalorder %s16, 1
    %p124 = por %p122, %p123
    %p125 = scmp.ne.s32.totalorder %s114, %s115
    %p126 = scmp.eq.s32.totalorder %s16, 0
    %p127 = por %p125, %p126
    %p128 = scmp.ne.s32.totalorder %s114, %s115
    %p129 = scmp.eq.s32.totalorder %s17, 1
    %p130 = por %p128, %p129
    %p132 = scmp.ne.s32.totalorder %s115, %s131
    %p133 = scmp.eq.s32.totalorder %s17, 0
    %p134 = por %p132, %p133
    %s136 = sadd.s32 %s135, 1
    %p139 = scmp.eq.s32.totalorder %s11, 1
    %p140 = scmp.ne.s32.totalorder %s135, %s137
    %p141 = scmp.eq.s32.totalorder %s11, 0
    %p142 = por %p140, %p141
    %p143 = scmp.ne.s32.totalorder %s135, %s137
    %p144 = scmp.eq.s32.totalorder %s16, 1
    %p145 = por %p143, %p144
    %p146 = scmp.ne.s32.totalorder %s137, %s138
    %p147 = scmp.eq.s32.totalorder %s16, 0
    %p148 = por %p146, %p147
    %p149 = scmp.ne.s32.totalorder %s137, %s138
    %p150 = scmp.eq.s32.totalorder %s17, 1
    %p151 = por %p149, %p150
    %p153 = scmp.ne.s32.totalorder %s138, %s152
    %p154 = scmp.eq.s32.totalorder %s17, 0
    %p155 = por %p153, %p154
    %s156 = ssub.s32 %s18, %s30
    %p157 = scmp.eq.s32.totalorder %s156, 0
    %s159 = sadd.s32 %s158, 1
    %s160 = scalar_select %p157, %s158, %s159
    %p163 = pneg %p157
    %p164 = scmp.eq.s32.totalorder %s11, 1
    %p165 = por %p163, %p164
    %p166 = scmp.ne.s32.totalorder %s158, %s161
    %p167 = scmp.eq.s32.totalorder %s11, 0
    %p168 = por %p166, %p167
    %p169 = scmp.ne.s32.totalorder %s158, %s161
    %p170 = scmp.eq.s32.totalorder %s16, 1
    %p171 = por %p169, %p170
    %p172 = scmp.ne.s32.totalorder %s161, %s162
    %p173 = scmp.eq.s32.totalorder %s16, 0
    %p174 = por %p172, %p173
    %p175 = scmp.ne.s32.totalorder %s161, %s162
    %p176 = scmp.eq.s32.totalorder %s17, 1
    %p177 = por %p175, %p176
    %p179 = scmp.ne.s32.totalorder %s162, %s178
    %p180 = scmp.eq.s32.totalorder %s17, 0
    %p181 = por %p179, %p180
    %p182 = scmp.le.s32.totalorder 1, %s11
    %p183 = scmp.lt.s32.totalorder %s11, 3
    %p184 = pnand %p182, %p183
    %p185 = pneg %p184
    // Predicated region
    $region9: #{mha_block_forward.10} parent=5 // pred_check
      _
    $region10: #{mha_block_forward.10} parent=5 // pred_check_branch
      %187 = sbr.rel (%p184) target = $region12
    $region11: #{mha_block_forward.10} parent=5 // pred_region
      %s188 = ssub.s32 %s11, 1
      // Predicated region
      $region13: #{mha_block_forward.10} parent=11 // pred_check
        %p189 = pneg %p75
      $region14: #{mha_block_forward.10} parent=11 // pred_check_branch
        %191 = sbr.rel (%p189) target = $region16
      $region15: #{mha_block_forward.10} parent=11 // pred_region
        %p192 = scmp.lt.s32.totalorder %s21, 0
        %s193 = scalar_select %p192, %s21, 0
        %s194 = smul.addr %s193, 8
        %s195 = scalar_lea.vmem %s1, %s194
      $region16: #{mha_block_forward.10} parent=11 // pred_fallthru
        _
      // Predicated region
      $region17: #{mha_block_forward.10} parent=11 // pred_check
        %p196 = pneg %p101
      $region18: #{mha_block_forward.10} parent=11 // pred_check_branch
        %198 = sbr.rel (%p196) target = $region20
      $region19: #{mha_block_forward.10} parent=11 // pred_region
        %p199 = scmp.lt.s32.totalorder %s21, 0
        %s200 = scalar_select %p199, %s21, 0
        %s201 = scalar_lea.vmem %s2, %s200
      $region20: #{mha_block_forward.10} parent=11 // pred_fallthru
        _
      // Predicated region
      $region21: #{mha_block_forward.10} parent=11 // pred_check
        %p202 = pneg %p127
      $region22: #{mha_block_forward.10} parent=11 // pred_check_branch
        %204 = sbr.rel (%p202) target = $region24
      $region23: #{mha_block_forward.10} parent=11 // pred_region
        %s205 = smul.u32 4, %s21
        %p206 = scmp.lt.s32.totalorder %s205, 3
        %s207 = scalar_select %p206, %s205, 3
        %s208 = smul.addr %s207, 8
        %s209 = scalar_lea.vmem %s3, %s208
        %s210 = smul.u32 4, %s21
      $region24: #{mha_block_forward.10} parent=11 // pred_fallthru
        _
      // Predicated region
      $region25: #{mha_block_forward.10} parent=11 // pred_check
        %p211 = pneg %p148
      $region26: #{mha_block_forward.10} parent=11 // pred_check_branch
        %213 = sbr.rel (%p211) target = $region28
      $region27: #{mha_block_forward.10} parent=11 // pred_region
        _
      $region28: #{mha_block_forward.10} parent=11 // pred_fallthru
        _
    $region12: #{mha_block_forward.10} parent=5 // pred_fallthru
      _
    %p214 = scmp.lt.s32.totalorder %s11, 2
    // Predicated region
    $region29: #{mha_block_forward.10} parent=5 // pred_check
      %p215 = pneg %p214
    $region30: #{mha_block_forward.10} parent=5 // pred_check_branch
      %217 = sbr.rel (%p215) target = $region32
    $region31: #{mha_block_forward.10} parent=5 // pred_region
      // Predicated region
      $region33: #{mha_block_forward.10} parent=31 // pred_check
        %p218 = pneg %p43
      $region34: #{mha_block_forward.10} parent=31 // pred_check_branch
        %220 = sbr.rel (%p218) target = $region36
      $region35: #{mha_block_forward.10} parent=31 // pred_region
        %p221 = scmp.lt.s32.totalorder %s18, 1
        %s222 = scalar_select %p221, %s18, 1
        %s223 = smul.addr %s222, 8
        %s224 = scalar_lea.vmem %s0, %s223
      $region36: #{mha_block_forward.10} parent=31 // pred_fallthru
        _
    $region32: #{mha_block_forward.10} parent=5 // pred_fallthru
      _
    %p225 = scmp.le.s32.totalorder 1, %s11
    %p226 = scmp.lt.s32.totalorder %s11, 3
    %p227 = pnand %p225, %p226
    %p228 = pneg %p227
    // Predicated region
    $region37: #{mha_block_forward.10} parent=5 // pred_check
      _
    $region38: #{mha_block_forward.10} parent=5 // pred_check_branch
      %230 = sbr.rel (%p227) target = $region40
    $region39: #{mha_block_forward.10} parent=5 // pred_region
      %s231 = ssub.s32 %s11, 1
      %p232 = scmp.lt.s32.totalorder %s20, 1
      %s233 = scalar_select %p232, %s20, 1
      %s234 = smul.addr %s233, 8
      %s235 = scalar_lea.vmem %s0, %s234
      %p236 = pneg %p49
      %p237 = pneg %p46
      %p238 = scmp.lt.s32.totalorder %s21, 0
      %s239 = scalar_select %p238, %s21, 0
      %s240 = smul.addr %s239, 8
      %s241 = scalar_lea.vmem %s1, %s240
      %p242 = pneg %p75
      %p243 = pneg %p72
      %p244 = scmp.lt.s32.totalorder %s21, 0
      %s245 = scalar_select %p244, %s21, 0
      %s246 = scalar_lea.vmem %s2, %s245
      %p247 = pneg %p101
      %p248 = pneg %p98
      %s249 = smul.u32 4, %s21
      %p250 = scmp.lt.s32.totalorder %s249, 3
      %s251 = scalar_select %p250, %s249, 3
      %s252 = smul.addr %s251, 8
      %s253 = scalar_lea.vmem %s3, %s252
      %p254 = pneg %p127
      %p255 = pneg %p124
      %p256 = pneg %p148
      %p257 = pneg %p145
      %p258 = pneg %p174
      %p259 = pneg %p171
      %p260 = scmp.lt.s32.totalorder %s20, 1
      %s261 = scalar_select %p260, %s20, 1
      %s262 = smul.addr %s261, 8
      %s263 = scalar_lea.vmem %s5, %s262
      %p264 = scmp.lt.s32.totalorder %s20, 1
      %s265 = scalar_select %p264, %s20, 1
      %s266 = smul.addr %s265, 8
      %s267 = scalar_lea.vmem %s0, %s266
      %p268 = scmp.lt.s32.totalorder %s21, 0
      %s269 = scalar_select %p268, %s21, 0
      %s270 = smul.addr %s269, 8
      %s271 = scalar_lea.vmem %s1, %s270
      %p272 = scmp.lt.s32.totalorder %s21, 0
      %s273 = scalar_select %p272, %s21, 0
      %s274 = scalar_lea.vmem %s2, %s273
      %s275 = smul.u32 4, %s21
      %p276 = scmp.lt.s32.totalorder %s275, 3
      %s277 = scalar_select %p276, %s275, 3
      %s278 = smul.addr %s277, 8
      %s279 = scalar_lea.vmem %s3, %s278
      %s280 = smul.u32 4, %s21
      %p281 = scmp.lt.s32.totalorder %s20, 1
      %s282 = scalar_select %p281, %s20, 1
      %s283 = smul.addr %s282, 8
      %s284 = scalar_lea.vmem %s5, %s283
      %p285 = scmp.eq.s32.totalorder %s21, 0
      // Predicated region
      $region41: #{mha_block_forward.10} parent=39 // pred_check
        %p286 = pneg %p285
      $region42: #{mha_block_forward.10} parent=39 // pred_check_branch
        %288 = sbr.rel (%p286) target = $region44
      $region43: #{mha_block_forward.10} parent=39 // pred_region
        %vm289 = vcmask 261120
        %290 = vst.msk [vmem:[#allocation2] sm:$0xff] %vm289, 0.0
      $region44: #{mha_block_forward.10} parent=39 // pred_fallthru
        _
      %v291 = vld [vmem:[%s267] sm:$0xff]
      %v292 = vld [vmem:[%s271] sm:$0xff]
      %v293 = vld [vmem:[%s271 + $0x8] sm:$0xff]
      %v294 = vld [vmem:[%s271 + $0x10] sm:$0xff]
      %v295 = vld [vmem:[%s271 + $0x18] sm:$0xff]
      %v296 = vld [vmem:[%s274] sm:$0x1]
      %v298 = vlaneseq
      %v299 = vshrl.u32 %v298, 7
      %v300 = vsub.s32 0, %v299
      %v301 = vrot.slane %v296, %v300
      %vm303 = vcmask 261120
      %v305 = vsel %vm303, %v291, 0
      %307 = vmatprep.subr.mxu0 0.0
      %308 = vmatpush1.msra.mxu0 0.0
      %309 = vmatprep.subr.mxu0 0.0
      %310 = vmatpush1.msra.mxu0 0.0
      %311 = vmatprep.subr.mxu0 0.0
      %312 = vmatpush1.msra.mxu0 0.0
      %313 = vmatprep.subr.mxu0 0.0
      %314 = vmatpush1.msra.mxu0 0.0
      %315 = vmatprep.subr.mxu0 0.0
      %316 = vmatpush1.msra.mxu0 0.0
      %317 = vmatprep.subr.mxu0 0.0
      %318 = vmatpush1.msra.mxu0 0.0
      %319 = vmatprep.subr.mxu0 0.0
      %320 = vmatpush1.msra.mxu0 0.0
      %321 = vmatprep.subr.mxu0 0.0
      %322 = vmatpush1.msra.mxu0 0.0
      %323 = vmatprep.subr.mxu0 0.0
      %324 = vmatpush1.msra.mxu0 0.0
      %325 = vmatprep.subr.mxu0 0.0
      %326 = vmatpush1.msra.mxu0 0.0
      %327 = vmatprep.subr.mxu0 0.0
      %328 = vmatpush1.msra.mxu0 0.0
      %329 = vmatprep.subr.mxu0 0.0
      %330 = vmatpush1.msra.mxu0 0.0
      %331 = vmatprep.subr.mxu0 0.0
      %332 = vmatpush1.msra.mxu0 %v295
      %333 = vmatprep.subr.mxu0 0.0
      %334 = vmatpush1.msra.mxu0 %v294
      %335 = vmatprep.subr.mxu0 0.0
      %336 = vmatpush1.msra.mxu0 %v293
      %337 = vmatprep.subr.mxu0 0.0
      %338 = vmatpush1.msra.mxu0 %v292
      %339 = vmatprep.subr.mxu0 0.0
      %340 = vmatpush2.msra.mxu0 0.0
      %341 = vmatprep.subr.mxu0 0.0
      %342 = vmatpush2.msra.mxu0 0.0
      %343 = vmatprep.subr.mxu0 0.0
      %344 = vmatpush2.msra.mxu0 0.0
      %345 = vmatprep.subr.mxu0 0.0
      %346 = vmatpush2.msra.mxu0 0.0
      %347 = vmatprep.subr.mxu0 0.0
      %348 = vmatpush2.msra.mxu0 0.0
      %349 = vmatprep.subr.mxu0 0.0
      %350 = vmatpush2.msra.mxu0 0.0
      %351 = vmatprep.subr.mxu0 0.0
      %352 = vmatpush2.msra.mxu0 0.0
      %353 = vmatprep.subr.mxu0 0.0
      %354 = vmatpush2.msra.mxu0 0.0
      %355 = vmatprep.subr.mxu0 0.0
      %356 = vmatpush2.msra.mxu0 0.0
      %357 = vmatprep.subr.mxu0 0.0
      %358 = vmatpush2.msra.mxu0 0.0
      %359 = vmatprep.subr.mxu0 0.0
      %360 = vmatpush2.msra.mxu0 0.0
      %361 = vmatprep.subr.mxu0 0.0
      %362 = vmatpush2.msra.mxu0 0.0
      %363 = vmatprep.subr.mxu0 0.0
      %364 = vmatpush2.msra.mxu0 0.0
      %365 = vmatprep.subr.mxu0 0.0
      %366 = vmatpush2.msra.mxu0 0.0
      %367 = vmatprep.subr.mxu0 0.0
      %368 = vmatpush2.msra.mxu0 0.0
      %369 = vmatprep.subr.mxu0 0.0
      %370 = vmatpush2.msra.mxu0 0.0
      %371 = vmatprep.mubr.f32.mxu0 0.0
      %372 = vmatmul.mubr.f32.gmra.mxu0 %v305
      %v373 = vpop.f32.mrf.mxu0
      %v374 = vadd.f32 %v301, %v373
      %v375 = vpop.f32.mrf.mxu0
      %376 = vdwg.mxu0
      %v377 = vmul.f32 %v374, 0.5
      %v378 = vmul.f32 %v374, 0.70710677
      %v379 = verf.f32.pop %v378
      %v380 = vadd.f32 %v379, 1.0
      %v381 = vmul.f32 %v377, %v380
      %v382 = vld [vmem:[#allocation2] sm:$0xff]
      %v383 = vld [vmem:[%s279] sm:$0xff]
      %v384 = vld [vmem:[%s279 + $0x8] sm:$0xff]
      %v385 = vld [vmem:[%s279 + $0x10] sm:$0xff]
      %v386 = vld [vmem:[%s279 + $0x18] sm:$0xff]
      %v388 = vsel %vm303, %v381, 0
      %390 = vmatprep.subr.mxu0 0.0
      %391 = vmatpush1.msra.mxu0 0.0
      %392 = vmatprep.subr.mxu0 0.0
      %393 = vmatpush1.msra.mxu0 0.0
      %394 = vmatprep.subr.mxu0 0.0
      %395 = vmatpush1.msra.mxu0 0.0
      %396 = vmatprep.subr.mxu0 0.0
      %397 = vmatpush1.msra.mxu0 0.0
      %398 = vmatprep.subr.mxu0 0.0
      %399 = vmatpush1.msra.mxu0 0.0
      %400 = vmatprep.subr.mxu0 0.0
      %401 = vmatpush1.msra.mxu0 0.0
      %402 = vmatprep.subr.mxu0 0.0
      %403 = vmatpush1.msra.mxu0 0.0
      %404 = vmatprep.subr.mxu0 0.0
      %405 = vmatpush1.msra.mxu0 0.0
      %406 = vmatprep.subr.mxu0 0.0
      %407 = vmatpush1.msra.mxu0 0.0
      %408 = vmatprep.subr.mxu0 0.0
      %409 = vmatpush1.msra.mxu0 0.0
      %410 = vmatprep.subr.mxu0 0.0
      %411 = vmatpush1.msra.mxu0 0.0
      %412 = vmatprep.subr.mxu0 0.0
      %413 = vmatpush1.msra.mxu0 0.0
      %414 = vmatprep.subr.mxu0 0.0
      %415 = vmatpush1.msra.mxu0 %v386
      %416 = vmatprep.subr.mxu0 0.0
      %417 = vmatpush1.msra.mxu0 %v385
      %418 = vmatprep.subr.mxu0 0.0
      %419 = vmatpush1.msra.mxu0 %v384
      %420 = vmatprep.subr.mxu0 0.0
      %421 = vmatpush1.msra.mxu0 %v383
      %422 = vmatprep.subr.mxu0 0.0
      %423 = vmatpush2.msra.mxu0 0.0
      %424 = vmatprep.subr.mxu0 0.0
      %425 = vmatpush2.msra.mxu0 0.0
      %426 = vmatprep.subr.mxu0 0.0
      %427 = vmatpush2.msra.mxu0 0.0
      %428 = vmatprep.subr.mxu0 0.0
      %429 = vmatpush2.msra.mxu0 0.0
      %430 = vmatprep.subr.mxu0 0.0
      %431 = vmatpush2.msra.mxu0 0.0
      %432 = vmatprep.subr.mxu0 0.0
      %433 = vmatpush2.msra.mxu0 0.0
      %434 = vmatprep.subr.mxu0 0.0
      %435 = vmatpush2.msra.mxu0 0.0
      %436 = vmatprep.subr.mxu0 0.0
      %437 = vmatpush2.msra.mxu0 0.0
      %438 = vmatprep.subr.mxu0 0.0
      %439 = vmatpush2.msra.mxu0 0.0
      %440 = vmatprep.subr.mxu0 0.0
      %441 = vmatpush2.msra.mxu0 0.0
      %442 = vmatprep.subr.mxu0 0.0
      %443 = vmatpush2.msra.mxu0 0.0
      %444 = vmatprep.subr.mxu0 0.0
      %445 = vmatpush2.msra.mxu0 0.0
      %446 = vmatprep.subr.mxu0 0.0
      %447 = vmatpush2.msra.mxu0 0.0
      %448 = vmatprep.subr.mxu0 0.0
      %449 = vmatpush2.msra.mxu0 0.0
      %450 = vmatprep.subr.mxu0 0.0
      %451 = vmatpush2.msra.mxu0 0.0
      %452 = vmatprep.subr.mxu0 0.0
      %453 = vmatpush2.msra.mxu0 0.0
      %454 = vmatprep.mubr.f32.mxu0 0.0
      %455 = vmatmul.mubr.f32.gmra.mxu0 %v388
      %v456 = vpop.f32.mrf.mxu0
      %v457 = vadd.f32 0.0, %v456
      %v458 = vpop.f32.mrf.mxu0
      %459 = vdwg.mxu0
      %v460 = vadd.f32 %v382, %v457
      %461 = vst.msk [vmem:[#allocation2] sm:$0xff] %vm303, %v460
      // Predicated region
      $region45: #{mha_block_forward.10} parent=39 // pred_check
        %p462 = pneg %p285
      $region46: #{mha_block_forward.10} parent=39 // pred_check_branch
        %464 = sbr.rel (%p462) target = $region48
      $region47: #{mha_block_forward.10} parent=39 // pred_region
        %v465 = vld [vmem:[#allocation2] sm:$0xff]
        %v466 = vld [vmem:[%s4] sm:$0x1]
        %v468 = vlaneseq
        %v469 = vshrl.u32 %v468, 7
        %v470 = vsub.s32 0, %v469
        %v471 = vrot.slane %v466, %v470
        %v473 = vadd.f32 %v465, %v471
        %v474 = vmul.f32 %v473, 0.5
        %v475 = vmul.f32 %v473, 0.70710677
        %v476 = verf.f32.pop %v475
        %v477 = vadd.f32 %v476, 1.0
        %v478 = vmul.f32 %v474, %v477
        %479 = vst.msk [vmem:[%s284] sm:$0xff] %vm303, %v478
      $region48: #{mha_block_forward.10} parent=39 // pred_fallthru
        _
      %p480 = scmp.lt.s32.totalorder %s20, 1
      %s481 = scalar_select %p480, %s20, 1
      %s482 = smul.addr %s481, 8
      %s483 = scalar_lea.vmem %s5, %s482
      // Predicated region
      $region49: #{mha_block_forward.10} parent=39 // pred_check
        %p484 = pneg %p171
      $region50: #{mha_block_forward.10} parent=39 // pred_check_branch
        %486 = sbr.rel (%p484) target = $region52
      $region51: #{mha_block_forward.10} parent=39 // pred_region
        _
      $region52: #{mha_block_forward.10} parent=39 // pred_fallthru
        _
    $region40: #{mha_block_forward.10} parent=5 // pred_fallthru
      _
    %p487 = scmp.le.s32.totalorder 2, %s11
    // Predicated region
    $region53: #{mha_block_forward.10} parent=5 // pred_check
      %p488 = pneg %p487
    $region54: #{mha_block_forward.10} parent=5 // pred_check_branch
      %490 = sbr.rel (%p488) target = $region56
    $region55: #{mha_block_forward.10} parent=5 // pred_region
      %s491 = ssub.s32 %s11, 2
      // Predicated region
      $region57: #{mha_block_forward.10} parent=55 // pred_check
        %p492 = pneg %p177
      $region58: #{mha_block_forward.10} parent=55 // pred_check_branch
        %494 = sbr.rel (%p492) target = $region60
      $region59: #{mha_block_forward.10} parent=55 // pred_region
        %p495 = scmp.lt.s32.totalorder %s22, 1
        %s496 = scalar_select %p495, %s22, 1
        %s497 = smul.addr %s496, 8
        %s498 = scalar_lea.vmem %s5, %s497
      $region60: #{mha_block_forward.10} parent=55 // pred_fallthru
        _
    $region56: #{mha_block_forward.10} parent=5 // pred_fallthru
      _
  $region6: #{mha_block_forward.10} parent=0 // loop_footer
    %s15 = sadd.s32 1, %s11
  $region7: #{mha_block_forward.10} parent=0 // loop_footer_branch
    %10 = sbr.rel target = $region3
  $region8: #{mha_block_forward.10} parent=0 // loop_exit
    _

// kernel: mha_block_forward.11
$region0: #{mha_block_forward.11}
  #allocation0 [shape = 'u32[]', space=smem, size = 0x4, offset = 0x4, fixed_abs, tag = 'smem constant byte address 0x4 - core index']
  #allocation1 [shape = 'u32[144,128]{1,0:T(1,128)}', space=vmem, size = 0x12000, scoped, tag = 'internal scratch']
  #allocation2 [shape = 'f32[8,32]{1,0:T(8,128)}', space=vmem, size = 0x1000, scoped, tag = 'scratch operand']
  %s0 = inlined_call_operand.vmem [shape: f32[16,32], index: 0, kind: input, shape index: {}]
  %s1 = inlined_call_operand.vmem [shape: f32[32,32], index: 1, kind: input, shape index: {}]
  %s2 = inlined_call_operand.vmem [shape: f32[1,32], index: 2, kind: input, shape index: {}]
  %s3 = inlined_call_operand.vmem [shape: f32[32,32], index: 3, kind: input, shape index: {}]
  %s4 = inlined_call_operand.vmem [shape: f32[1,32], index: 4, kind: input, shape index: {}]
  %s5 = inlined_call_operand.vmem [shape: f32[16,32], index: 5, kind: input, shape index: {}]
  %s6 = inlined_call_operand.vmem [shape: f32[1,32], index: 6, kind: input, shape index: {}]
  %s7 = inlined_call_operand.vmem [shape: f32[1,32], index: 7, kind: input, shape index: {}]
  %s8 = inlined_call_operand.hbm [shape: f32[16,32], index: 8, kind: output, shape index: {}]
  %s9 = sld [smem:[#allocation0]]
  $region73: #{mha_block_forward.11} parent=0
    _
  %s11 = ssub.s32 1, %s9
  %s12 = scalar_select 0, %s11, %s9
  $region1: #{mha_block_forward.11} parent=0
    #allocation3 [shape = 'u8[8192]{0}', space=vmem, size = 0x2000, scoped, tag = 'output window, operand 0']
    #allocation4 [shape = 's32[2]{0}', space=sflag, size = 0x8, scoped, tag = 'scoped memory for mha_block_forward.11']
    %13 = vsyncpa [#allocation4], 0
    %s14 = scalar_lea.sflag [#allocation4], 1
    %15 = vsyncpa %s14, 0
    loop: start=0, step=1, limit=4
    $region2: #{mha_block_forward.11} parent=1 // loop_pre_header
      _
    $region3: #{mha_block_forward.11} parent=1 // loop_header
      %s17 = sphi 0, %s21
      %p18 = scmp.ge.s32.totalorder %s17, 4
      %s24 = sphi 0, %s36
      %s25 = sphi 0, %s32
      %s26 = sphi 0, %s24
      %s27 = sphi 0, %s25
      %s28 = sphi 0, %s26
      %s29 = sphi 0, %s27
      %s39 = sphi 0, %s41
      %s42 = sphi 0, %s39
      %s43 = sphi 0, %s42
      %s59 = sphi 0, %s43
      %s65 = sphi 0, %s67
      %s68 = sphi 0, %s65
      %s69 = sphi 0, %s68
      %s85 = sphi 0, %s69
      %s91 = sphi 0, %s93
      %s94 = sphi 0, %s91
      %s95 = sphi 0, %s94
      %s111 = sphi 0, %s95
      %s117 = sphi 0, %s119
      %s120 = sphi 0, %s117
      %s121 = sphi 0, %s120
      %s137 = sphi 0, %s121
      %s141 = sphi 0, %s141
      %s143 = sphi 0, %s141
      %s144 = sphi 0, %s143
      %s158 = sphi 0, %s144
      %s164 = sphi 0, %s166
      %s167 = sphi 0, %s164
      %s168 = sphi 0, %s167
      %s184 = sphi 0, %s168
      %s188 = sphi 0, %s188
      %s190 = sphi 0, %s188
      %s191 = sphi 0, %s190
      %s205 = sphi 0, %s191
      %s209 = sphi 0, %s209
      %s211 = sphi 0, %s209
      %s212 = sphi 0, %s211
      %s226 = sphi 0, %s212
      %s232 = sphi 0, %s234
      %s235 = sphi 0, %s232
      %s236 = sphi 0, %s235
      %s252 = sphi 0, %s236
    $region4: #{mha_block_forward.11} parent=1 // loop_header_branch
      %20 = sbr.rel (%p18) target = $region8
    $region5: #{mha_block_forward.11} parent=1 // loop_body
      %s22 = ssub.s32 %s17, 1
      %s23 = ssub.s32 %s17, 2
      %s30 = sadd.s32 1, %s25
      %p31 = scmp.ge.s32.totalorder %s30, 1
      %s32 = scalar_select %p31, 0, %s30
      %s33 = sadd.s32 1, %s24
      %s34 = scalar_select %p31, %s33, %s24
      %p35 = scmp.ge.s32.totalorder %s34, 2
      %s36 = scalar_select %p35, 0, %s34
      %s37 = ssub.s32 %s24, %s36
      %p38 = scmp.eq.s32.totalorder %s37, 0
      %s40 = sadd.s32 %s39, 1
      %s41 = scalar_select %p38, %s39, %s40
      %p44 = pneg %p38
      %p45 = scmp.eq.s32.totalorder %s17, 1
      %p46 = por %p44, %p45
      %p47 = scmp.ne.s32.totalorder %s39, %s42
      %p48 = scmp.eq.s32.totalorder %s17, 0
      %p49 = por %p47, %p48
      %p50 = scmp.ne.s32.totalorder %s39, %s42
      %p51 = scmp.eq.s32.totalorder %s22, 1
      %p52 = por %p50, %p51
      %p53 = scmp.ne.s32.totalorder %s42, %s43
      %p54 = scmp.eq.s32.totalorder %s22, 0
      %p55 = por %p53, %p54
      %p56 = scmp.ne.s32.totalorder %s42, %s43
      %p57 = scmp.eq.s32.totalorder %s23, 1
      %p58 = por %p56, %p57
      %p60 = scmp.ne.s32.totalorder %s43, %s59
      %p61 = scmp.eq.s32.totalorder %s23, 0
      %p62 = por %p60, %p61
      %s63 = ssub.s32 %s25, %s32
      %p64 = scmp.eq.s32.totalorder %s63, 0
      %s66 = sadd.s32 %s65, 1
      %s67 = scalar_select %p64, %s65, %s66
      %p70 = pneg %p64
      %p71 = scmp.eq.s32.totalorder %s17, 1
      %p72 = por %p70, %p71
      %p73 = scmp.ne.s32.totalorder %s65, %s68
      %p74 = scmp.eq.s32.totalorder %s17, 0
      %p75 = por %p73, %p74
      %p76 = scmp.ne.s32.totalorder %s65, %s68
      %p77 = scmp.eq.s32.totalorder %s22, 1
      %p78 = por %p76, %p77
      %p79 = scmp.ne.s32.totalorder %s68, %s69
      %p80 = scmp.eq.s32.totalorder %s22, 0
      %p81 = por %p79, %p80
      %p82 = scmp.ne.s32.totalorder %s68, %s69
      %p83 = scmp.eq.s32.totalorder %s23, 1
      %p84 = por %p82, %p83
      %p86 = scmp.ne.s32.totalorder %s69, %s85
      %p87 = scmp.eq.s32.totalorder %s23, 0
      %p88 = por %p86, %p87
      %s89 = ssub.s32 %s25, %s32
      %p90 = scmp.eq.s32.totalorder %s89, 0
      %s92 = sadd.s32 %s91, 1
      %s93 = scalar_select %p90, %s91, %s92
      %p96 = pneg %p90
      %p97 = scmp.eq.s32.totalorder %s17, 1
      %p98 = por %p96, %p97
      %p99 = scmp.ne.s32.totalorder %s91, %s94
      %p100 = scmp.eq.s32.totalorder %s17, 0
      %p101 = por %p99, %p100
      %p102 = scmp.ne.s32.totalorder %s91, %s94
      %p103 = scmp.eq.s32.totalorder %s22, 1
      %p104 = por %p102, %p103
      %p105 = scmp.ne.s32.totalorder %s94, %s95
      %p106 = scmp.eq.s32.totalorder %s22, 0
      %p107 = por %p105, %p106
      %p108 = scmp.ne.s32.totalorder %s94, %s95
      %p109 = scmp.eq.s32.totalorder %s23, 1
      %p110 = por %p108, %p109
      %p112 = scmp.ne.s32.totalorder %s95, %s111
      %p113 = scmp.eq.s32.totalorder %s23, 0
      %p114 = por %p112, %p113
      %s115 = ssub.s32 %s25, %s32
      %p116 = scmp.eq.s32.totalorder %s115, 0
      %s118 = sadd.s32 %s117, 1
      %s119 = scalar_select %p116, %s117, %s118
      %p122 = pneg %p116
      %p123 = scmp.eq.s32.totalorder %s17, 1
      %p124 = por %p122, %p123
      %p125 = scmp.ne.s32.totalorder %s117, %s120
      %p126 = scmp.eq.s32.totalorder %s17, 0
      %p127 = por %p125, %p126
      %p128 = scmp.ne.s32.totalorder %s117, %s120
      %p129 = scmp.eq.s32.totalorder %s22, 1
      %p130 = por %p128, %p129
      %p131 = scmp.ne.s32.totalorder %s120, %s121
      %p132 = scmp.eq.s32.totalorder %s22, 0
      %p133 = por %p131, %p132
      %p134 = scmp.ne.s32.totalorder %s120, %s121
      %p135 = scmp.eq.s32.totalorder %s23, 1
      %p136 = por %p134, %p135
      %p138 = scmp.ne.s32.totalorder %s121, %s137
      %p139 = scmp.eq.s32.totalorder %s23, 0
      %p140 = por %p138, %p139
      %s142 = sadd.s32 %s141, 1
      %p145 = scmp.eq.s32.totalorder %s17, 1
      %p146 = scmp.ne.s32.totalorder %s141, %s143
      %p147 = scmp.eq.s32.totalorder %s17, 0
      %p148 = por %p146, %p147
      %p149 = scmp.ne.s32.totalorder %s141, %s143
      %p150 = scmp.eq.s32.totalorder %s22, 1
      %p151 = por %p149, %p150
      %p152 = scmp.ne.s32.totalorder %s143, %s144
      %p153 = scmp.eq.s32.totalorder %s22, 0
      %p154 = por %p152, %p153
      %p155 = scmp.ne.s32.totalorder %s143, %s144
      %p156 = scmp.eq.s32.totalorder %s23, 1
      %p157 = por %p155, %p156
      %p159 = scmp.ne.s32.totalorder %s144, %s158
      %p160 = scmp.eq.s32.totalorder %s23, 0
      %p161 = por %p159, %p160
      %s162 = ssub.s32 %s24, %s36
      %p163 = scmp.eq.s32.totalorder %s162, 0
      %s165 = sadd.s32 %s164, 1
      %s166 = scalar_select %p163, %s164, %s165
      %p169 = pneg %p163
      %p170 = scmp.eq.s32.totalorder %s17, 1
      %p171 = por %p169, %p170
      %p172 = scmp.ne.s32.totalorder %s164, %s167
      %p173 = scmp.eq.s32.totalorder %s17, 0
      %p174 = por %p172, %p173
      %p175 = scmp.ne.s32.totalorder %s164, %s167
      %p176 = scmp.eq.s32.totalorder %s22, 1
      %p177 = por %p175, %p176
      %p178 = scmp.ne.s32.totalorder %s167, %s168
      %p179 = scmp.eq.s32.totalorder %s22, 0
      %p180 = por %p178, %p179
      %p181 = scmp.ne.s32.totalorder %s167, %s168
      %p182 = scmp.eq.s32.totalorder %s23, 1
      %p183 = por %p181, %p182
      %p185 = scmp.ne.s32.totalorder %s168, %s184
      %p186 = scmp.eq.s32.totalorder %s23, 0
      %p187 = por %p185, %p186
      %s189 = sadd.s32 %s188, 1
      %p192 = scmp.eq.s32.totalorder %s17, 1
      %p193 = scmp.ne.s32.totalorder %s188, %s190
      %p194 = scmp.eq.s32.totalorder %s17, 0
      %p195 = por %p193, %p194
      %p196 = scmp.ne.s32.totalorder %s188, %s190
      %p197 = scmp.eq.s32.totalorder %s22, 1
      %p198 = por %p196, %p197
      %p199 = scmp.ne.s32.totalorder %s190, %s191
      %p200 = scmp.eq.s32.totalorder %s22, 0
      %p201 = por %p199, %p200
      %p202 = scmp.ne.s32.totalorder %s190, %s191
      %p203 = scmp.eq.s32.totalorder %s23, 1
      %p204 = por %p202, %p203
      %p206 = scmp.ne.s32.totalorder %s191, %s205
      %p207 = scmp.eq.s32.totalorder %s23, 0
      %p208 = por %p206, %p207
      %s210 = sadd.s32 %s209, 1
      %p213 = scmp.eq.s32.totalorder %s17, 1
      %p214 = scmp.ne.s32.totalorder %s209, %s211
      %p215 = scmp.eq.s32.totalorder %s17, 0
      %p216 = por %p214, %p215
      %p217 = scmp.ne.s32.totalorder %s209, %s211
      %p218 = scmp.eq.s32.totalorder %s22, 1
      %p219 = por %p217, %p218
      %p220 = scmp.ne.s32.totalorder %s211, %s212
      %p221 = scmp.eq.s32.totalorder %s22, 0
      %p222 = por %p220, %p221
      %p223 = scmp.ne.s32.totalorder %s211, %s212
      %p224 = scmp.eq.s32.totalorder %s23, 1
      %p225 = por %p223, %p224
      %p227 = scmp.ne.s32.totalorder %s212, %s226
      %p228 = scmp.eq.s32.totalorder %s23, 0
      %p229 = por %p227, %p228
      %s230 = ssub.s32 %s24, %s36
      %p231 = scmp.eq.s32.totalorder %s230, 0
      %s233 = sadd.s32 %s232, 1
      %s234 = scalar_select %p231, %s232, %s233
      %p237 = pneg %p231
      %p238 = scmp.eq.s32.totalorder %s17, 1
      %p239 = por %p237, %p238
      %p240 = scmp.ne.s32.totalorder %s232, %s235
      %p241 = scmp.eq.s32.totalorder %s17, 0
      %p242 = por %p240, %p241
      %p243 = scmp.ne.s32.totalorder %s232, %s235
      %p244 = scmp.eq.s32.totalorder %s22, 1
      %p245 = por %p243, %p244
      %p246 = scmp.ne.s32.totalorder %s235, %s236
      %p247 = scmp.eq.s32.totalorder %s22, 0
      %p248 = por %p246, %p247
      %p249 = scmp.ne.s32.totalorder %s235, %s236
      %p250 = scmp.eq.s32.totalorder %s23, 1
      %p251 = por %p249, %p250
      %p253 = scmp.ne.s32.totalorder %s236, %s252
      %p254 = scmp.eq.s32.totalorder %s23, 0
      %p255 = por %p253, %p254
      %p256 = scmp.le.s32.totalorder 1, %s17
      %p257 = scmp.lt.s32.totalorder %s17, 3
      %p258 = pnand %p256, %p257
      %p259 = pneg %p258
      // Predicated region
      $region9: #{mha_block_forward.11} parent=5 // pred_check
        _
      $region10: #{mha_block_forward.11} parent=5 // pred_check_branch
        %261 = sbr.rel (%p258) target = $region12
      $region11: #{mha_block_forward.11} parent=5 // pred_region
        %s262 = ssub.s32 %s17, 1
        // Predicated region
        $region13: #{mha_block_forward.11} parent=11 // pred_check
          %p263 = pneg %p81
        $region14: #{mha_block_forward.11} parent=11 // pred_check_branch
          %265 = sbr.rel (%p263) target = $region16
        $region15: #{mha_block_forward.11} parent=11 // pred_region
          %p266 = scmp.lt.s32.totalorder %s27, 0
          %s267 = scalar_select %p266, %s27, 0
          %s268 = smul.addr %s267, 8
          %s269 = scalar_lea.vmem %s1, %s268
        $region16: #{mha_block_forward.11} parent=11 // pred_fallthru
          _
        // Predicated region
        $region17: #{mha_block_forward.11} parent=11 // pred_check
          %p270 = pneg %p107
        $region18: #{mha_block_forward.11} parent=11 // pred_check_branch
          %272 = sbr.rel (%p270) target = $region20
        $region19: #{mha_block_forward.11} parent=11 // pred_region
          %p273 = scmp.lt.s32.totalorder %s27, 0
          %s274 = scalar_select %p273, %s27, 0
          %s275 = scalar_lea.vmem %s2, %s274
        $region20: #{mha_block_forward.11} parent=11 // pred_fallthru
          _
        // Predicated region
        $region21: #{mha_block_forward.11} parent=11 // pred_check
          %p276 = pneg %p133
        $region22: #{mha_block_forward.11} parent=11 // pred_check_branch
          %278 = sbr.rel (%p276) target = $region24
        $region23: #{mha_block_forward.11} parent=11 // pred_region
          %s279 = smul.u32 4, %s27
          %p280 = scmp.lt.s32.totalorder %s279, 3
          %s281 = scalar_select %p280, %s279, 3
          %s282 = smul.addr %s281, 8
          %s283 = scalar_lea.vmem %s3, %s282
          %s284 = smul.u32 4, %s27
        $region24: #{mha_block_forward.11} parent=11 // pred_fallthru
          _
        // Predicated region
        $region25: #{mha_block_forward.11} parent=11 // pred_check
          %p285 = pneg %p154
        $region26: #{mha_block_forward.11} parent=11 // pred_check_branch
          %287 = sbr.rel (%p285) target = $region28
        $region27: #{mha_block_forward.11} parent=11 // pred_region
          _
        $region28: #{mha_block_forward.11} parent=11 // pred_fallthru
          _
        // Predicated region
        $region29: #{mha_block_forward.11} parent=11 // pred_check
          %p288 = pneg %p201
        $region30: #{mha_block_forward.11} parent=11 // pred_check_branch
          %290 = sbr.rel (%p288) target = $region32
        $region31: #{mha_block_forward.11} parent=11 // pred_region
          _
        $region32: #{mha_block_forward.11} parent=11 // pred_fallthru
          _
        // Predicated region
        $region33: #{mha_block_forward.11} parent=11 // pred_check
          %p291 = pneg %p222
        $region34: #{mha_block_forward.11} parent=11 // pred_check_branch
          %293 = sbr.rel (%p291) target = $region36
        $region35: #{mha_block_forward.11} parent=11 // pred_region
          _
        $region36: #{mha_block_forward.11} parent=11 // pred_fallthru
          _
      $region12: #{mha_block_forward.11} parent=5 // pred_fallthru
        _
      %p294 = scmp.lt.s32.totalorder %s17, 2
      // Predicated region
      $region37: #{mha_block_forward.11} parent=5 // pred_check
        %p295 = pneg %p294
      $region38: #{mha_block_forward.11} parent=5 // pred_check_branch
        %297 = sbr.rel (%p295) target = $region40
      $region39: #{mha_block_forward.11} parent=5 // pred_region
        // Predicated region
        $region41: #{mha_block_forward.11} parent=39 // pred_check
          %p298 = pneg %p49
        $region42: #{mha_block_forward.11} parent=39 // pred_check_branch
          %300 = sbr.rel (%p298) target = $region44
        $region43: #{mha_block_forward.11} parent=39 // pred_region
          %p301 = scmp.lt.s32.totalorder %s24, 1
          %s302 = scalar_select %p301, %s24, 1
          %s303 = smul.addr %s302, 8
          %s304 = scalar_lea.vmem %s0, %s303
        $region44: #{mha_block_forward.11} parent=39 // pred_fallthru
          _
        // Predicated region
        $region45: #{mha_block_forward.11} parent=39 // pred_check
          %p305 = pneg %p174
        $region46: #{mha_block_forward.11} parent=39 // pred_check_branch
          %307 = sbr.rel (%p305) target = $region48
        $region47: #{mha_block_forward.11} parent=39 // pred_region
          %p308 = scmp.lt.s32.totalorder %s24, 1
          %s309 = scalar_select %p308, %s24, 1
          %s310 = smul.addr %s309, 8
          %s311 = scalar_lea.vmem %s5, %s310
        $region48: #{mha_block_forward.11} parent=39 // pred_fallthru
          _
      $region40: #{mha_block_forward.11} parent=5 // pred_fallthru
        _
      %p312 = scmp.le.s32.totalorder 1, %s17
      %p313 = scmp.lt.s32.totalorder %s17, 3
      %p314 = pnand %p312, %p313
      %p315 = pneg %p314
      // Predicated region
      $region49: #{mha_block_forward.11} parent=5 // pred_check
        _
      $region50: #{mha_block_forward.11} parent=5 // pred_check_branch
        %317 = sbr.rel (%p314) target = $region52
      $region51: #{mha_block_forward.11} parent=5 // pred_region
        %s318 = ssub.s32 %s17, 1
        %p319 = scmp.lt.s32.totalorder %s26, 1
        %s320 = scalar_select %p319, %s26, 1
        %s321 = smul.addr %s320, 8
        %s322 = scalar_lea.vmem %s0, %s321
        %p323 = pneg %p55
        %p324 = pneg %p52
        %p325 = scmp.lt.s32.totalorder %s27, 0
        %s326 = scalar_select %p325, %s27, 0
        %s327 = smul.addr %s326, 8
        %s328 = scalar_lea.vmem %s1, %s327
        %p329 = pneg %p81
        %p330 = pneg %p78
        %p331 = scmp.lt.s32.totalorder %s27, 0
        %s332 = scalar_select %p331, %s27, 0
        %s333 = scalar_lea.vmem %s2, %s332
        %p334 = pneg %p107
        %p335 = pneg %p104
        %s336 = smul.u32 4, %s27
        %p337 = scmp.lt.s32.totalorder %s336, 3
        %s338 = scalar_select %p337, %s336, 3
        %s339 = smul.addr %s338, 8
        %s340 = scalar_lea.vmem %s3, %s339
        %p341 = pneg %p133
        %p342 = pneg %p130
        %p343 = pneg %p154
        %p344 = pneg %p151
        %p345 = scmp.lt.s32.totalorder %s26, 1
        %s346 = scalar_select %p345, %s26, 1
        %s347 = smul.addr %s346, 8
        %s348 = scalar_lea.vmem %s5, %s347
        %p349 = pneg %p180
        %p350 = pneg %p177
        %p351 = pneg %p201
        %p352 = pneg %p198
        %p353 = pneg %p222
        %p354 = pneg %p219
        %p355 = pneg %p248
        %p356 = pneg %p245
        %s357 = sand.u32 %s235, 1
        %s358 = scalar_lea.sflag [#allocation4], %s357
        %s359 = sand.u32 %s235, 1
        %s360 = smul.addr %s359, 8
        %s361 = scalar_lea.vmem [#allocation3], %s360
        %p362 = scmp.lt.s32.totalorder %s26, 1
        %s363 = scalar_select %p362, %s26, 1
        %s364 = smul.addr %s363, 8
        %s365 = scalar_lea.vmem %s0, %s364
        %p366 = scmp.lt.s32.totalorder %s27, 0
        %s367 = scalar_select %p366, %s27, 0
        %s368 = smul.addr %s367, 8
        %s369 = scalar_lea.vmem %s1, %s368
        %p370 = scmp.lt.s32.totalorder %s27, 0
        %s371 = scalar_select %p370, %s27, 0
        %s372 = scalar_lea.vmem %s2, %s371
        %s373 = smul.u32 4, %s27
        %p374 = scmp.lt.s32.totalorder %s373, 3
        %s375 = scalar_select %p374, %s373, 3
        %s376 = smul.addr %s375, 8
        %s377 = scalar_lea.vmem %s3, %s376
        %s378 = smul.u32 4, %s27
        %p379 = scmp.lt.s32.totalorder %s26, 1
        %s380 = scalar_select %p379, %s26, 1
        %s381 = smul.addr %s380, 8
        %s382 = scalar_lea.vmem %s5, %s381
        %p383 = scmp.eq.s32.totalorder %s27, 0
        // Predicated region
        $region53: #{mha_block_forward.11} parent=51 // pred_check
          %p384 = pneg %p383
        $region54: #{mha_block_forward.11} parent=51 // pred_check_branch
          %386 = sbr.rel (%p384) target = $region56
        $region55: #{mha_block_forward.11} parent=51 // pred_region
          %vm387 = vcmask 261120
          %388 = vst.msk [vmem:[#allocation2] sm:$0xff] %vm387, 0.0
        $region56: #{mha_block_forward.11} parent=51 // pred_fallthru
          _
        %v389 = vld [vmem:[%s365] sm:$0xff]
        %v390 = vld [vmem:[%s369] sm:$0xff]
        %v391 = vld [vmem:[%s369 + $0x8] sm:$0xff]
        %v392 = vld [vmem:[%s369 + $0x10] sm:$0xff]
        %v393 = vld [vmem:[%s369 + $0x18] sm:$0xff]
        %v394 = vld [vmem:[%s372] sm:$0x1]
        %v396 = vlaneseq
        %v397 = vshrl.u32 %v396, 7
        %v398 = vsub.s32 0, %v397
        %v399 = vrot.slane %v394, %v398
        %vm401 = vcmask 261120
        %v403 = vsel %vm401, %v389, 0
        %405 = vmatprep.subr.mxu0 0.0
        %406 = vmatpush1.msra.mxu0 0.0
        %407 = vmatprep.subr.mxu0 0.0
        %408 = vmatpush1.msra.mxu0 0.0
        %409 = vmatprep.subr.mxu0 0.0
        %410 = vmatpush1.msra.mxu0 0.0
        %411 = vmatprep.subr.mxu0 0.0
        %412 = vmatpush1.msra.mxu0 0.0
        %413 = vmatprep.subr.mxu0 0.0
        %414 = vmatpush1.msra.mxu0 0.0
        %415 = vmatprep.subr.mxu0 0.0
        %416 = vmatpush1.msra.mxu0 0.0
        %417 = vmatprep.subr.mxu0 0.0
        %418 = vmatpush1.msra.mxu0 0.0
        %419 = vmatprep.subr.mxu0 0.0
        %420 = vmatpush1.msra.mxu0 0.0
        %421 = vmatprep.subr.mxu0 0.0
        %422 = vmatpush1.msra.mxu0 0.0
        %423 = vmatprep.subr.mxu0 0.0
        %424 = vmatpush1.msra.mxu0 0.0
        %425 = vmatprep.subr.mxu0 0.0
        %426 = vmatpush1.msra.mxu0 0.0
        %427 = vmatprep.subr.mxu0 0.0
        %428 = vmatpush1.msra.mxu0 0.0
        %429 = vmatprep.subr.mxu0 0.0
        %430 = vmatpush1.msra.mxu0 %v393
        %431 = vmatprep.subr.mxu0 0.0
        %432 = vmatpush1.msra.mxu0 %v392
        %433 = vmatprep.subr.mxu0 0.0
        %434 = vmatpush1.msra.mxu0 %v391
        %435 = vmatprep.subr.mxu0 0.0
        %436 = vmatpush1.msra.mxu0 %v390
        %437 = vmatprep.subr.mxu0 0.0
        %438 = vmatpush2.msra.mxu0 0.0
        %439 = vmatprep.subr.mxu0 0.0
        %440 = vmatpush2.msra.mxu0 0.0
        %441 = vmatprep.subr.mxu0 0.0
        %442 = vmatpush2.msra.mxu0 0.0
        %443 = vmatprep.subr.mxu0 0.0
        %444 = vmatpush2.msra.mxu0 0.0
        %445 = vmatprep.subr.mxu0 0.0
        %446 = vmatpush2.msra.mxu0 0.0
        %447 = vmatprep.subr.mxu0 0.0
        %448 = vmatpush2.msra.mxu0 0.0
        %449 = vmatprep.subr.mxu0 0.0
        %450 = vmatpush2.msra.mxu0 0.0
        %451 = vmatprep.subr.mxu0 0.0
        %452 = vmatpush2.msra.mxu0 0.0
        %453 = vmatprep.subr.mxu0 0.0
        %454 = vmatpush2.msra.mxu0 0.0
        %455 = vmatprep.subr.mxu0 0.0
        %456 = vmatpush2.msra.mxu0 0.0
        %457 = vmatprep.subr.mxu0 0.0
        %458 = vmatpush2.msra.mxu0 0.0
        %459 = vmatprep.subr.mxu0 0.0
        %460 = vmatpush2.msra.mxu0 0.0
        %461 = vmatprep.subr.mxu0 0.0
        %462 = vmatpush2.msra.mxu0 0.0
        %463 = vmatprep.subr.mxu0 0.0
        %464 = vmatpush2.msra.mxu0 0.0
        %465 = vmatprep.subr.mxu0 0.0
        %466 = vmatpush2.msra.mxu0 0.0
        %467 = vmatprep.subr.mxu0 0.0
        %468 = vmatpush2.msra.mxu0 0.0
        %469 = vmatprep.mubr.f32.mxu0 0.0
        %470 = vmatmul.mubr.f32.gmra.mxu0 %v403
        %v471 = vpop.f32.mrf.mxu0
        %v472 = vadd.f32 %v399, %v471
        %v473 = vpop.f32.mrf.mxu0
        %474 = vdwg.mxu0
        %v475 = vmul.f32 %v472, 0.5
        %v476 = vmul.f32 %v472, 0.70710677
        %v477 = verf.f32.pop %v476
        %v478 = vadd.f32 %v477, 1.0
        %v479 = vmul.f32 %v475, %v478
        %v480 = vld [vmem:[#allocation2] sm:$0xff]
        %v481 = vld [vmem:[%s377] sm:$0xff]
        %v482 = vld [vmem:[%s377 + $0x8] sm:$0xff]
        %v483 = vld [vmem:[%s377 + $0x10] sm:$0xff]
        %v484 = vld [vmem:[%s377 + $0x18] sm:$0xff]
        %v486 = vsel %vm401, %v479, 0
        %488 = vmatprep.subr.mxu0 0.0
        %489 = vmatpush1.msra.mxu0 0.0
        %490 = vmatprep.subr.mxu0 0.0
        %491 = vmatpush1.msra.mxu0 0.0
        %492 = vmatprep.subr.mxu0 0.0
        %493 = vmatpush1.msra.mxu0 0.0
        %494 = vmatprep.subr.mxu0 0.0
        %495 = vmatpush1.msra.mxu0 0.0
        %496 = vmatprep.subr.mxu0 0.0
        %497 = vmatpush1.msra.mxu0 0.0
        %498 = vmatprep.subr.mxu0 0.0
        %499 = vmatpush1.msra.mxu0 0.0
        %500 = vmatprep.subr.mxu0 0.0
        %501 = vmatpush1.msra.mxu0 0.0
        %502 = vmatprep.subr.mxu0 0.0
        %503 = vmatpush1.msra.mxu0 0.0
        %504 = vmatprep.subr.mxu0 0.0
        %505 = vmatpush1.msra.mxu0 0.0
        %506 = vmatprep.subr.mxu0 0.0
        %507 = vmatpush1.msra.mxu0 0.0
        %508 = vmatprep.subr.mxu0 0.0
        %509 = vmatpush1.msra.mxu0 0.0
        %510 = vmatprep.subr.mxu0 0.0
        %511 = vmatpush1.msra.mxu0 0.0
        %512 = vmatprep.subr.mxu0 0.0
        %513 = vmatpush1.msra.mxu0 %v484
        %514 = vmatprep.subr.mxu0 0.0
        %515 = vmatpush1.msra.mxu0 %v483
        %516 = vmatprep.subr.mxu0 0.0
        %517 = vmatpush1.msra.mxu0 %v482
        %518 = vmatprep.subr.mxu0 0.0
        %519 = vmatpush1.msra.mxu0 %v481
        %520 = vmatprep.subr.mxu0 0.0
        %521 = vmatpush2.msra.mxu0 0.0
        %522 = vmatprep.subr.mxu0 0.0
        %523 = vmatpush2.msra.mxu0 0.0
        %524 = vmatprep.subr.mxu0 0.0
        %525 = vmatpush2.msra.mxu0 0.0
        %526 = vmatprep.subr.mxu0 0.0
        %527 = vmatpush2.msra.mxu0 0.0
        %528 = vmatprep.subr.mxu0 0.0
        %529 = vmatpush2.msra.mxu0 0.0
        %530 = vmatprep.subr.mxu0 0.0
        %531 = vmatpush2.msra.mxu0 0.0
        %532 = vmatprep.subr.mxu0 0.0
        %533 = vmatpush2.msra.mxu0 0.0
        %534 = vmatprep.subr.mxu0 0.0
        %535 = vmatpush2.msra.mxu0 0.0
        %536 = vmatprep.subr.mxu0 0.0
        %537 = vmatpush2.msra.mxu0 0.0
        %538 = vmatprep.subr.mxu0 0.0
        %539 = vmatpush2.msra.mxu0 0.0
        %540 = vmatprep.subr.mxu0 0.0
        %541 = vmatpush2.msra.mxu0 0.0
        %542 = vmatprep.subr.mxu0 0.0
        %543 = vmatpush2.msra.mxu0 0.0
        %544 = vmatprep.subr.mxu0 0.0
        %545 = vmatpush2.msra.mxu0 0.0
        %546 = vmatprep.subr.mxu0 0.0
        %547 = vmatpush2.msra.mxu0 0.0
        %548 = vmatprep.subr.mxu0 0.0
        %549 = vmatpush2.msra.mxu0 0.0
        %550 = vmatprep.subr.mxu0 0.0
        %551 = vmatpush2.msra.mxu0 0.0
        %552 = vmatprep.mubr.f32.mxu0 0.0
        %553 = vmatmul.mubr.f32.gmra.mxu0 %v486
        %v554 = vpop.f32.mrf.mxu0
        %v555 = vadd.f32 0.0, %v554
        %v556 = vpop.f32.mrf.mxu0
        %557 = vdwg.mxu0
        %v558 = vadd.f32 %v480, %v555
        %559 = vst.msk [vmem:[#allocation2] sm:$0xff] %vm401, %v558
        // Predicated region
        $region57: #{mha_block_forward.11} parent=51 // pred_check
          %p560 = pneg %p383
        $region58: #{mha_block_forward.11} parent=51 // pred_check_branch
          %562 = sbr.rel (%p560) target = $region60
        $region59: #{mha_block_forward.11} parent=51 // pred_region
          %v563 = vld [vmem:[#allocation2] sm:$0xff]
          %v564 = vld [vmem:[%s4] sm:$0x1]
          %v566 = vlaneseq
          %v567 = vshrl.u32 %v566, 7
          %v568 = vsub.s32 0, %v567
          %v569 = vrot.slane %v564, %v568
          %v571 = vadd.f32 %v563, %v569
          %v572 = vld [vmem:[%s382] sm:$0xff]
          %v573 = vadd.f32 %v571, %v572
          %v574 = vsel %vm401, %v573, 0.0
          %575 = vadd.xlane.f32.xlu0 %v574
          %v576 = vpop.xlane.xlu0 %575
          %v577 = vrcp.pop 32.0
          %v578 = vmul.f32 %v576, %v577
          %v579 = vsub.f32 %v573, %v578
          %v580 = vmul.f32 %v579, %v579
          %v581 = vsel %vm401, %v580, 0.0
          %582 = vadd.xlane.f32.xlu0 %v581
          %v583 = vpop.xlane.xlu0 %582
          %v584 = vmul.f32 %v583, %v577
          %v585 = vadd.f32 %v584, 1e-05
          %v586 = vrsqrt.pop %v585
          %v587 = vmul.f32 %v579, %v586
          %v588 = vld [vmem:[%s6] sm:$0x1]
          %v590 = vlaneseq
          %v591 = vshrl.u32 %v590, 7
          %v592 = vsub.s32 0, %v591
          %v593 = vrot.slane %v588, %v592
          %v595 = vmul.f32 %v587, %v593
          %v596 = vld [vmem:[%s7] sm:$0x1]
          %v598 = vlaneseq
          %v599 = vshrl.u32 %v598, 7
          %v600 = vsub.s32 0, %v599
          %v601 = vrot.slane %v596, %v600
          %v603 = vadd.f32 %v595, %v601
          %604 = vst.msk [vmem:[%s361] sm:$0xff] %vm401, %v603
        $region60: #{mha_block_forward.11} parent=51 // pred_fallthru
          _
        %s605 = sand.u32 %s235, 1
        %s606 = scalar_lea.sflag [#allocation4], %s605
        %s607 = sand.u32 %s235, 1
        %s608 = smul.addr %s607, 8
        %s609 = scalar_lea.vmem [#allocation3], %s608
        // Predicated region
        $region61: #{mha_block_forward.11} parent=51 // pred_check
          %p610 = pneg %p245
        $region62: #{mha_block_forward.11} parent=51 // pred_check_branch
          %612 = sbr.rel (%p610) target = $region64
        $region63: #{mha_block_forward.11} parent=51 // pred_region
          %s614 = ssub.s32 128, 128
          %615 = vsyncadd %s606, %s614
          %s616 = smul.addr %s26, 128
          %s617 = scalar_lea.hbm %s8, %s616
          %s619 = sshll.u32 %s609, 4
          %s620 = int_to_ptr.vmem [resolvable:$true] %s619
          %622 = dma.vmem_to_hbm [thread:$0]  %s620, 128, %s617, %s606
        $region64: #{mha_block_forward.11} parent=51 // pred_fallthru
          _
      $region52: #{mha_block_forward.11} parent=5 // pred_fallthru
        _
      %p623 = scmp.le.s32.totalorder 2, %s17
      // Predicated region
      $region65: #{mha_block_forward.11} parent=5 // pred_check
        %p624 = pneg %p623
      $region66: #{mha_block_forward.11} parent=5 // pred_check_branch
        %626 = sbr.rel (%p624) target = $region68
      $region67: #{mha_block_forward.11} parent=5 // pred_region
        %s627 = ssub.s32 %s17, 2
        // Predicated region
        $region69: #{mha_block_forward.11} parent=67 // pred_check
          %p628 = pneg %p251
        $region70: #{mha_block_forward.11} parent=67 // pred_check_branch
          %630 = sbr.rel (%p628) target = $region72
        $region71: #{mha_block_forward.11} parent=67 // pred_region
          %s631 = sand.u32 %s236, 1
          %s632 = scalar_lea.sflag [#allocation4], %s631
          %s633 = sand.u32 %s236, 1
          %s634 = smul.addr %s633, 8
          %s635 = scalar_lea.vmem [#allocation3], %s634
          %636 = dma.done %s632, 128
        $region72: #{mha_block_forward.11} parent=67 // pred_fallthru
          _
      $region68: #{mha_block_forward.11} parent=5 // pred_fallthru
        _
    $region6: #{mha_block_forward.11} parent=1 // loop_footer
      %s21 = sadd.s32 1, %s17
    $region7: #{mha_block_forward.11} parent=1 // loop_footer_branch
      %16 = sbr.rel target = $region3
    $region8: #{mha_block_forward.11} parent=1 // loop_exit
      _
    %637 = vsyncpa [#allocation4], 1
    %s638 = scalar_lea.sflag [#allocation4], 1
    %639 = vsyncpa %s638, 1

// kernel: mha_block_forward.8
$region0: #{mha_block_forward.8}
  #allocation0 [shape = 'u32[]', space=smem, size = 0x4, offset = 0x4, fixed_abs, tag = 'smem constant byte address 0x4 - core index']
  #allocation1 [shape = 'u32[144,128]{1,0:T(1,128)}', space=vmem, size = 0x12000, scoped, tag = 'internal scratch']
  %s0 = inlined_call_operand.vmem [shape: f32[32,2,8], index: 0, kind: input, shape index: {}]
  %s1 = inlined_call_operand.vmem [shape: f32[32,2,8], index: 1, kind: input, shape index: {}]
  %s2 = inlined_call_operand.vmem [shape: f32[32,2,8], index: 2, kind: input, shape index: {}]
  %s3 = inlined_call_operand.vmem [shape: f32[32,2,8], index: 3, kind: output, shape index: {}]
  %s4 = sld [smem:[#allocation0]]
  $region45: #{mha_block_forward.8} parent=0
    _
  %s6 = ssub.s32 1, %s4
  %s7 = scalar_select 0, %s6, %s4
  loop: start=0, step=1, limit=4
  $region2: #{mha_block_forward.8} parent=0 // loop_pre_header
    _
  $region3: #{mha_block_forward.8} parent=0 // loop_header
    %s9 = sphi 0, %s13
    %p10 = scmp.ge.s32.totalorder %s9, 4
    %s19 = sphi 0, %s21
    %s22 = sphi 0, %s19
    %s23 = sphi 0, %s22
    %s39 = sphi 0, %s23
    %s45 = sphi 0, %s47
    %s48 = sphi 0, %s45
    %s49 = sphi 0, %s48
    %s65 = sphi 0, %s49
    %s71 = sphi 0, %s73
    %s74 = sphi 0, %s71
    %s75 = sphi 0, %s74
    %s91 = sphi 0, %s75
    %s97 = sphi 0, %s99
    %s100 = sphi 0, %s97
    %s101 = sphi 0, %s100
    %s117 = sphi 0, %s101
  $region4: #{mha_block_forward.8} parent=0 // loop_header_branch
    %12 = sbr.rel (%p10) target = $region8
  $region5: #{mha_block_forward.8} parent=0 // loop_body
    %s14 = ssub.s32 %s9, 1
    %s15 = ssub.s32 %s9, 2
    %s16 = sadd.s32 %s9, 1
    %s17 = ssub.s32 %s9, %s16
    %p18 = scmp.eq.s32.totalorder %s17, 0
    %s20 = sadd.s32 %s19, 1
    %s21 = scalar_select %p18, %s19, %s20
    %p24 = pneg %p18
    %p25 = scmp.eq.s32.totalorder %s9, 1
    %p26 = por %p24, %p25
    %p27 = scmp.ne.s32.totalorder %s19, %s22
    %p28 = scmp.eq.s32.totalorder %s9, 0
    %p29 = por %p27, %p28
    %p30 = scmp.ne.s32.totalorder %s19, %s22
    %p31 = scmp.eq.s32.totalorder %s14, 1
    %p32 = por %p30, %p31
    %p33 = scmp.ne.s32.totalorder %s22, %s23
    %p34 = scmp.eq.s32.totalorder %s14, 0
    %p35 = por %p33, %p34
    %p36 = scmp.ne.s32.totalorder %s22, %s23
    %p37 = scmp.eq.s32.totalorder %s15, 1
    %p38 = por %p36, %p37
    %p40 = scmp.ne.s32.totalorder %s23, %s39
    %p41 = scmp.eq.s32.totalorder %s15, 0
    %p42 = por %p40, %p41
    %s43 = ssub.s32 %s9, %s16
    %p44 = scmp.eq.s32.totalorder %s43, 0
    %s46 = sadd.s32 %s45, 1
    %s47 = scalar_select %p44, %s45, %s46
    %p50 = pneg %p44
    %p51 = scmp.eq.s32.totalorder %s9, 1
    %p52 = por %p50, %p51
    %p53 = scmp.ne.s32.totalorder %s45, %s48
    %p54 = scmp.eq.s32.totalorder %s9, 0
    %p55 = por %p53, %p54
    %p56 = scmp.ne.s32.totalorder %s45, %s48
    %p57 = scmp.eq.s32.totalorder %s14, 1
    %p58 = por %p56, %p57
    %p59 = scmp.ne.s32.totalorder %s48, %s49
    %p60 = scmp.eq.s32.totalorder %s14, 0
    %p61 = por %p59, %p60
    %p62 = scmp.ne.s32.totalorder %s48, %s49
    %p63 = scmp.eq.s32.totalorder %s15, 1
    %p64 = por %p62, %p63
    %p66 = scmp.ne.s32.totalorder %s49, %s65
    %p67 = scmp.eq.s32.totalorder %s15, 0
    %p68 = por %p66, %p67
    %s69 = ssub.s32 %s9, %s16
    %p70 = scmp.eq.s32.totalorder %s69, 0
    %s72 = sadd.s32 %s71, 1
    %s73 = scalar_select %p70, %s71, %s72
    %p76 = pneg %p70
    %p77 = scmp.eq.s32.totalorder %s9, 1
    %p78 = por %p76, %p77
    %p79 = scmp.ne.s32.totalorder %s71, %s74
    %p80 = scmp.eq.s32.totalorder %s9, 0
    %p81 = por %p79, %p80
    %p82 = scmp.ne.s32.totalorder %s71, %s74
    %p83 = scmp.eq.s32.totalorder %s14, 1
    %p84 = por %p82, %p83
    %p85 = scmp.ne.s32.totalorder %s74, %s75
    %p86 = scmp.eq.s32.totalorder %s14, 0
    %p87 = por %p85, %p86
    %p88 = scmp.ne.s32.totalorder %s74, %s75
    %p89 = scmp.eq.s32.totalorder %s15, 1
    %p90 = por %p88, %p89
    %p92 = scmp.ne.s32.totalorder %s75, %s91
    %p93 = scmp.eq.s32.totalorder %s15, 0
    %p94 = por %p92, %p93
    %s95 = ssub.s32 %s9, %s16
    %p96 = scmp.eq.s32.totalorder %s95, 0
    %s98 = sadd.s32 %s97, 1
    %s99 = scalar_select %p96, %s97, %s98
    %p102 = pneg %p96
    %p103 = scmp.eq.s32.totalorder %s9, 1
    %p104 = por %p102, %p103
    %p105 = scmp.ne.s32.totalorder %s97, %s100
    %p106 = scmp.eq.s32.totalorder %s9, 0
    %p107 = por %p105, %p106
    %p108 = scmp.ne.s32.totalorder %s97, %s100
    %p109 = scmp.eq.s32.totalorder %s14, 1
    %p110 = por %p108, %p109
    %p111 = scmp.ne.s32.totalorder %s100, %s101
    %p112 = scmp.eq.s32.totalorder %s14, 0
    %p113 = por %p111, %p112
    %p114 = scmp.ne.s32.totalorder %s100, %s101
    %p115 = scmp.eq.s32.totalorder %s15, 1
    %p116 = por %p114, %p115
    %p118 = scmp.ne.s32.totalorder %s101, %s117
    %p119 = scmp.eq.s32.totalorder %s15, 0
    %p120 = por %p118, %p119
    %p121 = scmp.le.s32.totalorder 1, %s9
    %p122 = scmp.lt.s32.totalorder %s9, 3
    %p123 = pnand %p121, %p122
    %p124 = pneg %p123
    // Predicated region
    $region9: #{mha_block_forward.8} parent=5 // pred_check
      _
    $region10: #{mha_block_forward.8} parent=5 // pred_check_branch
      %126 = sbr.rel (%p123) target = $region12
    $region11: #{mha_block_forward.8} parent=5 // pred_region
      %s127 = ssub.s32 %s9, 1
    $region12: #{mha_block_forward.8} parent=5 // pred_fallthru
      _
    %p128 = scmp.lt.s32.totalorder %s9, 2
    // Predicated region
    $region13: #{mha_block_forward.8} parent=5 // pred_check
      %p129 = pneg %p128
    $region14: #{mha_block_forward.8} parent=5 // pred_check_branch
      %131 = sbr.rel (%p129) target = $region16
    $region15: #{mha_block_forward.8} parent=5 // pred_region
      // Predicated region
      $region17: #{mha_block_forward.8} parent=15 // pred_check
        %p132 = pneg %p29
      $region18: #{mha_block_forward.8} parent=15 // pred_check_branch
        %134 = sbr.rel (%p132) target = $region20
      $region19: #{mha_block_forward.8} parent=15 // pred_region
        %s135 = smul.u32 16, %s9
        %p136 = scmp.lt.s32.totalorder %s135, 31
        %s137 = scalar_select %p136, %s135, 31
        %s138 = smul.addr %s137, 2
        %s139 = scalar_lea.vmem %s0, %s138
        %s140 = smul.u32 16, %s9
      $region20: #{mha_block_forward.8} parent=15 // pred_fallthru
        _
      // Predicated region
      $region21: #{mha_block_forward.8} parent=15 // pred_check
        %p141 = pneg %p55
      $region22: #{mha_block_forward.8} parent=15 // pred_check_branch
        %143 = sbr.rel (%p141) target = $region24
      $region23: #{mha_block_forward.8} parent=15 // pred_region
        %s144 = smul.u32 16, %s9
        %p145 = scmp.lt.s32.totalorder %s144, 31
        %s146 = scalar_select %p145, %s144, 31
        %s147 = smul.addr %s146, 2
        %s148 = scalar_lea.vmem %s1, %s147
        %s149 = smul.u32 16, %s9
      $region24: #{mha_block_forward.8} parent=15 // pred_fallthru
        _
      // Predicated region
      $region25: #{mha_block_forward.8} parent=15 // pred_check
        %p150 = pneg %p81
      $region26: #{mha_block_forward.8} parent=15 // pred_check_branch
        %152 = sbr.rel (%p150) target = $region28
      $region27: #{mha_block_forward.8} parent=15 // pred_region
        %s153 = smul.u32 16, %s9
        %p154 = scmp.lt.s32.totalorder %s153, 31
        %s155 = scalar_select %p154, %s153, 31
        %s156 = smul.addr %s155, 2
        %s157 = scalar_lea.vmem %s2, %s156
        %s158 = smul.u32 16, %s9
      $region28: #{mha_block_forward.8} parent=15 // pred_fallthru
        _
    $region16: #{mha_block_forward.8} parent=5 // pred_fallthru
      _
    %p159 = scmp.le.s32.totalorder 1, %s9
    %p160 = scmp.lt.s32.totalorder %s9, 3
    %p161 = pnand %p159, %p160
    %p162 = pneg %p161
    // Predicated region
    $region29: #{mha_block_forward.8} parent=5 // pred_check
      _
    $region30: #{mha_block_forward.8} parent=5 // pred_check_branch
      %164 = sbr.rel (%p161) target = $region32
    $region31: #{mha_block_forward.8} parent=5 // pred_region
      %s165 = ssub.s32 %s9, 1
      %s166 = smul.u32 16, %s14
      %p167 = scmp.lt.s32.totalorder %s166, 31
      %s168 = scalar_select %p167, %s166, 31
      %s169 = smul.addr %s168, 2
      %s170 = scalar_lea.vmem %s0, %s169
      %p171 = pneg %p35
      %p172 = pneg %p32
      %s173 = smul.u32 16, %s14
      %p174 = scmp.lt.s32.totalorder %s173, 31
      %s175 = scalar_select %p174, %s173, 31
      %s176 = smul.addr %s175, 2
      %s177 = scalar_lea.vmem %s1, %s176
      %p178 = pneg %p61
      %p179 = pneg %p58
      %s180 = smul.u32 16, %s14
      %p181 = scmp.lt.s32.totalorder %s180, 31
      %s182 = scalar_select %p181, %s180, 31
      %s183 = smul.addr %s182, 2
      %s184 = scalar_lea.vmem %s2, %s183
      %p185 = pneg %p87
      %p186 = pneg %p84
      %p187 = pneg %p113
      %p188 = pneg %p110
      %s189 = smul.u32 16, %s14
      %p190 = scmp.lt.s32.totalorder %s189, 31
      %s191 = scalar_select %p190, %s189, 31
      %s192 = smul.addr %s191, 2
      %s193 = scalar_lea.vmem %s3, %s192
      %s194 = smul.u32 16, %s14
      %p195 = scmp.lt.s32.totalorder %s194, 31
      %s196 = scalar_select %p195, %s194, 31
      %s197 = smul.addr %s196, 2
      %s198 = scalar_lea.vmem %s0, %s197
      %s199 = smul.u32 16, %s14
      %s200 = smul.u32 16, %s14
      %p201 = scmp.lt.s32.totalorder %s200, 31
      %s202 = scalar_select %p201, %s200, 31
      %s203 = smul.addr %s202, 2
      %s204 = scalar_lea.vmem %s1, %s203
      %s205 = smul.u32 16, %s14
      %s206 = smul.u32 16, %s14
      %p207 = scmp.lt.s32.totalorder %s206, 31
      %s208 = scalar_select %p207, %s206, 31
      %s209 = smul.addr %s208, 2
      %s210 = scalar_lea.vmem %s2, %s209
      %s211 = smul.u32 16, %s14
      %s212 = smul.u32 16, %s14
      %p213 = scmp.lt.s32.totalorder %s212, 31
      %s214 = scalar_select %p213, %s212, 31
      %s215 = smul.addr %s214, 2
      %s216 = scalar_lea.vmem %s3, %s215
      %s217 = smul.u32 16, %s14
      %v218 = vld [vmem:[%s198] sm:$0x3]
      %v219 = vld [vmem:[%s198 + $0x2] sm:$0x3]
      %v220 = vld [vmem:[%s198 + $0x4] sm:$0x3]
      %v221 = vld [vmem:[%s198 + $0x6] sm:$0x3]
      %v222 = vld [vmem:[%s198 + $0x8] sm:$0x3]
      %v223 = vld [vmem:[%s198 + $0xa] sm:$0x3]
      %v224 = vld [vmem:[%s198 + $0xc] sm:$0x3]
      %v225 = vld [vmem:[%s198 + $0xe] sm:$0x3]
      %v226 = vld [vmem:[%s198 + $0x10] sm:$0x3]
      %v227 = vld [vmem:[%s198 + $0x12] sm:$0x3]
      %v228 = vld [vmem:[%s198 + $0x14] sm:$0x3]
      %v229 = vld [vmem:[%s198 + $0x16] sm:$0x3]
      %v230 = vld [vmem:[%s198 + $0x18] sm:$0x3]
      %v231 = vld [vmem:[%s198 + $0x1a] sm:$0x3]
      %v232 = vld [vmem:[%s198 + $0x1c] sm:$0x3]
      %v233 = vld [vmem:[%s198 + $0x1e] sm:$0x3]
      %v234 = vld [vmem:[%s204] sm:$0x3]
      %v235 = vld [vmem:[%s204 + $0x2] sm:$0x3]
      %v236 = vld [vmem:[%s204 + $0x4] sm:$0x3]
      %v237 = vld [vmem:[%s204 + $0x6] sm:$0x3]
      %v238 = vld [vmem:[%s204 + $0x8] sm:$0x3]
      %v239 = vld [vmem:[%s204 + $0xa] sm:$0x3]
      %v240 = vld [vmem:[%s204 + $0xc] sm:$0x3]
      %v241 = vld [vmem:[%s204 + $0xe] sm:$0x3]
      %v242 = vld [vmem:[%s204 + $0x10] sm:$0x3]
      %v243 = vld [vmem:[%s204 + $0x12] sm:$0x3]
      %v244 = vld [vmem:[%s204 + $0x14] sm:$0x3]
      %v245 = vld [vmem:[%s204 + $0x16] sm:$0x3]
      %v246 = vld [vmem:[%s204 + $0x18] sm:$0x3]
      %v247 = vld [vmem:[%s204 + $0x1a] sm:$0x3]
      %v248 = vld [vmem:[%s204 + $0x1c] sm:$0x3]
      %v249 = vld [vmem:[%s204 + $0x1e] sm:$0x3]
      %v250 = vld [vmem:[%s210] sm:$0x3]
      %v251 = vld [vmem:[%s210 + $0x2] sm:$0x3]
      %v252 = vld [vmem:[%s210 + $0x4] sm:$0x3]
      %v253 = vld [vmem:[%s210 + $0x6] sm:$0x3]
      %v254 = vld [vmem:[%s210 + $0x8] sm:$0x3]
      %v255 = vld [vmem:[%s210 + $0xa] sm:$0x3]
      %v256 = vld [vmem:[%s210 + $0xc] sm:$0x3]
      %v257 = vld [vmem:[%s210 + $0xe] sm:$0x3]
      %v258 = vld [vmem:[%s210 + $0x10] sm:$0x3]
      %v259 = vld [vmem:[%s210 + $0x12] sm:$0x3]
      %v260 = vld [vmem:[%s210 + $0x14] sm:$0x3]
      %v261 = vld [vmem:[%s210 + $0x16] sm:$0x3]
      %v262 = vld [vmem:[%s210 + $0x18] sm:$0x3]
      %v263 = vld [vmem:[%s210 + $0x1a] sm:$0x3]
      %v264 = vld [vmem:[%s210 + $0x1c] sm:$0x3]
      %v265 = vld [vmem:[%s210 + $0x1e] sm:$0x3]
      %vm266 = vcmask 64512
      %v268 = vsel %vm266, %v218, 0
      %v271 = vsel %vm266, %v234, 0
      %273 = vmatprep.subr.mxu0 0.0
      %274 = vmatpush1.xpose.msra.mxu0 0.0
      %275 = vmatprep.subr.mxu0 0.0
      %276 = vmatpush1.xpose.msra.mxu0 0.0
      %277 = vmatprep.subr.mxu0 0.0
      %278 = vmatpush1.xpose.msra.mxu0 0.0
      %279 = vmatprep.subr.mxu0 0.0
      %280 = vmatpush1.xpose.msra.mxu0 0.0
      %281 = vmatprep.subr.mxu0 0.0
      %282 = vmatpush1.xpose.msra.mxu0 0.0
      %283 = vmatprep.subr.mxu0 0.0
      %284 = vmatpush1.xpose.msra.mxu0 0.0
      %285 = vmatprep.subr.mxu0 0.0
      %286 = vmatpush1.xpose.msra.mxu0 0.0
      %287 = vmatprep.subr.mxu0 0.0
      %288 = vmatpush1.xpose.msra.mxu0 0.0
      %289 = vmatprep.subr.mxu0 0.0
      %290 = vmatpush1.xpose.msra.mxu0 0.0
      %291 = vmatprep.subr.mxu0 0.0
      %292 = vmatpush1.xpose.msra.mxu0 0.0
      %293 = vmatprep.subr.mxu0 0.0
      %294 = vmatpush1.xpose.msra.mxu0 0.0
      %295 = vmatprep.subr.mxu0 0.0
      %296 = vmatpush1.xpose.msra.mxu0 0.0
      %297 = vmatprep.subr.mxu0 0.0
      %298 = vmatpush1.xpose.msra.mxu0 0.0
      %299 = vmatprep.subr.mxu0 0.0
      %300 = vmatpush1.xpose.msra.mxu0 0.0
      %301 = vmatprep.subr.mxu0 0.0
      %302 = vmatpush1.xpose.msra.mxu0 0.0
      %303 = vmatprep.subr.mxu0 0.0
      %304 = vmatpush1.xpose.msra.mxu0 %v271
      %305 = vmatprep.subr.mxu0 0.0
      %306 = vmatpush2.xpose.msra.mxu0 0.0
      %307 = vmatprep.subr.mxu0 0.0
      %308 = vmatpush2.xpose.msra.mxu0 0.0
      %309 = vmatprep.subr.mxu0 0.0
      %310 = vmatpush2.xpose.msra.mxu0 0.0
      %311 = vmatprep.subr.mxu0 0.0
      %312 = vmatpush2.xpose.msra.mxu0 0.0
      %313 = vmatprep.subr.mxu0 0.0
      %314 = vmatpush2.xpose.msra.mxu0 0.0
      %315 = vmatprep.subr.mxu0 0.0
      %316 = vmatpush2.xpose.msra.mxu0 0.0
      %317 = vmatprep.subr.mxu0 0.0
      %318 = vmatpush2.xpose.msra.mxu0 0.0
      %319 = vmatprep.subr.mxu0 0.0
      %320 = vmatpush2.xpose.msra.mxu0 0.0
      %321 = vmatprep.subr.mxu0 0.0
      %322 = vmatpush2.xpose.msra.mxu0 0.0
      %323 = vmatprep.subr.mxu0 0.0
      %324 = vmatpush2.xpose.msra.mxu0 0.0
      %325 = vmatprep.subr.mxu0 0.0
      %326 = vmatpush2.xpose.msra.mxu0 0.0
      %327 = vmatprep.subr.mxu0 0.0
      %328 = vmatpush2.xpose.msra.mxu0 0.0
      %329 = vmatprep.subr.mxu0 0.0
      %330 = vmatpush2.xpose.msra.mxu0 0.0
      %331 = vmatprep.subr.mxu0 0.0
      %332 = vmatpush2.xpose.msra.mxu0 0.0
      %333 = vmatprep.subr.mxu0 0.0
      %334 = vmatpush2.xpose.msra.mxu0 0.0
      %335 = vmatprep.subr.mxu0 0.0
      %336 = vmatpush2.xpose.msra.mxu0 0.0
      %337 = vmatprep.mubr.f32.mxu0 0.0
      %338 = vmatmul.mubr.f32.gmra.mxu0 %v268
      %v339 = vpop.f32.mrf.mxu0
      %v340 = vadd.f32 0.0, %v339
      %v341 = vpop.f32.mrf.mxu0
      %342 = vdwg.mxu0
      %v344 = vsel %vm266, %v219, 0
      %v347 = vsel %vm266, %v235, 0
      %349 = vmatprep.subr.mxu0 0.0
      %350 = vmatpush1.xpose.msra.mxu0 0.0
      %351 = vmatprep.subr.mxu0 0.0
      %352 = vmatpush1.xpose.msra.mxu0 0.0
      %353 = vmatprep.subr.mxu0 0.0
      %354 = vmatpush1.xpose.msra.mxu0 0.0
      %355 = vmatprep.subr.mxu0 0.0
      %356 = vmatpush1.xpose.msra.mxu0 0.0
      %357 = vmatprep.subr.mxu0 0.0
      %358 = vmatpush1.xpose.msra.mxu0 0.0
      %359 = vmatprep.subr.mxu0 0.0
      %360 = vmatpush1.xpose.msra.mxu0 0.0
      %361 = vmatprep.subr.mxu0 0.0
      %362 = vmatpush1.xpose.msra.mxu0 0.0
      %363 = vmatprep.subr.mxu0 0.0
      %364 = vmatpush1.xpose.msra.mxu0 0.0
      %365 = vmatprep.subr.mxu0 0.0
      %366 = vmatpush1.xpose.msra.mxu0 0.0
      %367 = vmatprep.subr.mxu0 0.0
      %368 = vmatpush1.xpose.msra.mxu0 0.0
      %369 = vmatprep.subr.mxu0 0.0
      %370 = vmatpush1.xpose.msra.mxu0 0.0
      %371 = vmatprep.subr.mxu0 0.0
      %372 = vmatpush1.xpose.msra.mxu0 0.0
      %373 = vmatprep.subr.mxu0 0.0
      %374 = vmatpush1.xpose.msra.mxu0 0.0
      %375 = vmatprep.subr.mxu0 0.0
      %376 = vmatpush1.xpose.msra.mxu0 0.0
      %377 = vmatprep.subr.mxu0 0.0
      %378 = vmatpush1.xpose.msra.mxu0 0.0
      %379 = vmatprep.subr.mxu0 0.0
      %380 = vmatpush1.xpose.msra.mxu0 %v347
      %381 = vmatprep.subr.mxu0 0.0
      %382 = vmatpush2.xpose.msra.mxu0 0.0
      %383 = vmatprep.subr.mxu0 0.0
      %384 = vmatpush2.xpose.msra.mxu0 0.0
      %385 = vmatprep.subr.mxu0 0.0
      %386 = vmatpush2.xpose.msra.mxu0 0.0
      %387 = vmatprep.subr.mxu0 0.0
      %388 = vmatpush2.xpose.msra.mxu0 0.0
      %389 = vmatprep.subr.mxu0 0.0
      %390 = vmatpush2.xpose.msra.mxu0 0.0
      %391 = vmatprep.subr.mxu0 0.0
      %392 = vmatpush2.xpose.msra.mxu0 0.0
      %393 = vmatprep.subr.mxu0 0.0
      %394 = vmatpush2.xpose.msra.mxu0 0.0
      %395 = vmatprep.subr.mxu0 0.0
      %396 = vmatpush2.xpose.msra.mxu0 0.0
      %397 = vmatprep.subr.mxu0 0.0
      %398 = vmatpush2.xpose.msra.mxu0 0.0
      %399 = vmatprep.subr.mxu0 0.0
      %400 = vmatpush2.xpose.msra.mxu0 0.0
      %401 = vmatprep.subr.mxu0 0.0
      %402 = vmatpush2.xpose.msra.mxu0 0.0
      %403 = vmatprep.subr.mxu0 0.0
      %404 = vmatpush2.xpose.msra.mxu0 0.0
      %405 = vmatprep.subr.mxu0 0.0
      %406 = vmatpush2.xpose.msra.mxu0 0.0
      %407 = vmatprep.subr.mxu0 0.0
      %408 = vmatpush2.xpose.msra.mxu0 0.0
      %409 = vmatprep.subr.mxu0 0.0
      %410 = vmatpush2.xpose.msra.mxu0 0.0
      %411 = vmatprep.subr.mxu0 0.0
      %412 = vmatpush2.xpose.msra.mxu0 0.0
      %413 = vmatprep.mubr.f32.mxu0 0.0
      %414 = vmatmul.mubr.f32.gmra.mxu0 %v344
      %v415 = vpop.f32.mrf.mxu0
      %v416 = vadd.f32 0.0, %v415
      %v417 = vpop.f32.mrf.mxu0
      %418 = vdwg.mxu0
      %v420 = vsel %vm266, %v220, 0
      %v423 = vsel %vm266, %v236, 0
      %425 = vmatprep.subr.mxu0 0.0
      %426 = vmatpush1.xpose.msra.mxu0 0.0
      %427 = vmatprep.subr.mxu0 0.0
      %428 = vmatpush1.xpose.msra.mxu0 0.0
      %429 = vmatprep.subr.mxu0 0.0
      %430 = vmatpush1.xpose.msra.mxu0 0.0
      %431 = vmatprep.subr.mxu0 0.0
      %432 = vmatpush1.xpose.msra.mxu0 0.0
      %433 = vmatprep.subr.mxu0 0.0
      %434 = vmatpush1.xpose.msra.mxu0 0.0
      %435 = vmatprep.subr.mxu0 0.0
      %436 = vmatpush1.xpose.msra.mxu0 0.0
      %437 = vmatprep.subr.mxu0 0.0
      %438 = vmatpush1.xpose.msra.mxu0 0.0
      %439 = vmatprep.subr.mxu0 0.0
      %440 = vmatpush1.xpose.msra.mxu0 0.0
      %441 = vmatprep.subr.mxu0 0.0
      %442 = vmatpush1.xpose.msra.mxu0 0.0
      %443 = vmatprep.subr.mxu0 0.0
      %444 = vmatpush1.xpose.msra.mxu0 0.0
      %445 = vmatprep.subr.mxu0 0.0
      %446 = vmatpush1.xpose.msra.mxu0 0.0
      %447 = vmatprep.subr.mxu0 0.0
      %448 = vmatpush1.xpose.msra.mxu0 0.0
      %449 = vmatprep.subr.mxu0 0.0
      %450 = vmatpush1.xpose.msra.mxu0 0.0
      %451 = vmatprep.subr.mxu0 0.0
      %452 = vmatpush1.xpose.msra.mxu0 0.0
      %453 = vmatprep.subr.mxu0 0.0
      %454 = vmatpush1.xpose.msra.mxu0 0.0
      %455 = vmatprep.subr.mxu0 0.0
      %456 = vmatpush1.xpose.msra.mxu0 %v423
      %457 = vmatprep.subr.mxu0 0.0
      %458 = vmatpush2.xpose.msra.mxu0 0.0
      %459 = vmatprep.subr.mxu0 0.0
      %460 = vmatpush2.xpose.msra.mxu0 0.0
      %461 = vmatprep.subr.mxu0 0.0
      %462 = vmatpush2.xpose.msra.mxu0 0.0
      %463 = vmatprep.subr.mxu0 0.0
      %464 = vmatpush2.xpose.msra.mxu0 0.0
      %465 = vmatprep.subr.mxu0 0.0
      %466 = vmatpush2.xpose.msra.mxu0 0.0
      %467 = vmatprep.subr.mxu0 0.0
      %468 = vmatpush2.xpose.msra.mxu0 0.0
      %469 = vmatprep.subr.mxu0 0.0
      %470 = vmatpush2.xpose.msra.mxu0 0.0
      %471 = vmatprep.subr.mxu0 0.0
      %472 = vmatpush2.xpose.msra.mxu0 0.0
      %473 = vmatprep.subr.mxu0 0.0
      %474 = vmatpush2.xpose.msra.mxu0 0.0
      %475 = vmatprep.subr.mxu0 0.0
      %476 = vmatpush2.xpose.msra.mxu0 0.0
      %477 = vmatprep.subr.mxu0 0.0
      %478 = vmatpush2.xpose.msra.mxu0 0.0
      %479 = vmatprep.subr.mxu0 0.0
      %480 = vmatpush2.xpose.msra.mxu0 0.0
      %481 = vmatprep.subr.mxu0 0.0
      %482 = vmatpush2.xpose.msra.mxu0 0.0
      %483 = vmatprep.subr.mxu0 0.0
      %484 = vmatpush2.xpose.msra.mxu0 0.0
      %485 = vmatprep.subr.mxu0 0.0
      %486 = vmatpush2.xpose.msra.mxu0 0.0
      %487 = vmatprep.subr.mxu0 0.0
      %488 = vmatpush2.xpose.msra.mxu0 0.0
      %489 = vmatprep.mubr.f32.mxu0 0.0
      %490 = vmatmul.mubr.f32.gmra.mxu0 %v420
      %v491 = vpop.f32.mrf.mxu0
      %v492 = vadd.f32 0.0, %v491
      %v493 = vpop.f32.mrf.mxu0
      %494 = vdwg.mxu0
      %v496 = vsel %vm266, %v221, 0
      %v499 = vsel %vm266, %v237, 0
      %501 = vmatprep.subr.mxu0 0.0
      %502 = vmatpush1.xpose.msra.mxu0 0.0
      %503 = vmatprep.subr.mxu0 0.0
      %504 = vmatpush1.xpose.msra.mxu0 0.0
      %505 = vmatprep.subr.mxu0 0.0
      %506 = vmatpush1.xpose.msra.mxu0 0.0
      %507 = vmatprep.subr.mxu0 0.0
      %508 = vmatpush1.xpose.msra.mxu0 0.0
      %509 = vmatprep.subr.mxu0 0.0
      %510 = vmatpush1.xpose.msra.mxu0 0.0
      %511 = vmatprep.subr.mxu0 0.0
      %512 = vmatpush1.xpose.msra.mxu0 0.0
      %513 = vmatprep.subr.mxu0 0.0
      %514 = vmatpush1.xpose.msra.mxu0 0.0
      %515 = vmatprep.subr.mxu0 0.0
      %516 = vmatpush1.xpose.msra.mxu0 0.0
      %517 = vmatprep.subr.mxu0 0.0
      %518 = vmatpush1.xpose.msra.mxu0 0.0
      %519 = vmatprep.subr.mxu0 0.0
      %520 = vmatpush1.xpose.msra.mxu0 0.0
      %521 = vmatprep.subr.mxu0 0.0
      %522 = vmatpush1.xpose.msra.mxu0 0.0
      %523 = vmatprep.subr.mxu0 0.0
      %524 = vmatpush1.xpose.msra.mxu0 0.0
      %525 = vmatprep.subr.mxu0 0.0
      %526 = vmatpush1.xpose.msra.mxu0 0.0
      %527 = vmatprep.subr.mxu0 0.0
      %528 = vmatpush1.xpose.msra.mxu0 0.0
      %529 = vmatprep.subr.mxu0 0.0
      %530 = vmatpush1.xpose.msra.mxu0 0.0
      %531 = vmatprep.subr.mxu0 0.0
      %532 = vmatpush1.xpose.msra.mxu0 %v499
      %533 = vmatprep.subr.mxu0 0.0
      %534 = vmatpush2.xpose.msra.mxu0 0.0
      %535 = vmatprep.subr.mxu0 0.0
      %536 = vmatpush2.xpose.msra.mxu0 0.0
      %537 = vmatprep.subr.mxu0 0.0
      %538 = vmatpush2.xpose.msra.mxu0 0.0
      %539 = vmatprep.subr.mxu0 0.0
      %540 = vmatpush2.xpose.msra.mxu0 0.0
      %541 = vmatprep.subr.mxu0 0.0
      %542 = vmatpush2.xpose.msra.mxu0 0.0
      %543 = vmatprep.subr.mxu0 0.0
      %544 = vmatpush2.xpose.msra.mxu0 0.0
      %545 = vmatprep.subr.mxu0 0.0
      %546 = vmatpush2.xpose.msra.mxu0 0.0
      %547 = vmatprep.subr.mxu0 0.0
      %548 = vmatpush2.xpose.msra.mxu0 0.0
      %549 = vmatprep.subr.mxu0 0.0
      %550 = vmatpush2.xpose.msra.mxu0 0.0
      %551 = vmatprep.subr.mxu0 0.0
      %552 = vmatpush2.xpose.msra.mxu0 0.0
      %553 = vmatprep.subr.mxu0 0.0
      %554 = vmatpush2.xpose.msra.mxu0 0.0
      %555 = vmatprep.subr.mxu0 0.0
      %556 = vmatpush2.xpose.msra.mxu0 0.0
      %557 = vmatprep.subr.mxu0 0.0
      %558 = vmatpush2.xpose.msra.mxu0 0.0
      %559 = vmatprep.subr.mxu0 0.0
      %560 = vmatpush2.xpose.msra.mxu0 0.0
      %561 = vmatprep.subr.mxu0 0.0
      %562 = vmatpush2.xpose.msra.mxu0 0.0
      %563 = vmatprep.subr.mxu0 0.0
      %564 = vmatpush2.xpose.msra.mxu0 0.0
      %565 = vmatprep.mubr.f32.mxu0 0.0
      %566 = vmatmul.mubr.f32.gmra.mxu0 %v496
      %v567 = vpop.f32.mrf.mxu0
      %v568 = vadd.f32 0.0, %v567
      %v569 = vpop.f32.mrf.mxu0
      %570 = vdwg.mxu0
      %v572 = vsel %vm266, %v222, 0
      %v575 = vsel %vm266, %v238, 0
      %577 = vmatprep.subr.mxu0 0.0
      %578 = vmatpush1.xpose.msra.mxu0 0.0
      %579 = vmatprep.subr.mxu0 0.0
      %580 = vmatpush1.xpose.msra.mxu0 0.0
      %581 = vmatprep.subr.mxu0 0.0
      %582 = vmatpush1.xpose.msra.mxu0 0.0
      %583 = vmatprep.subr.mxu0 0.0
      %584 = vmatpush1.xpose.msra.mxu0 0.0
      %585 = vmatprep.subr.mxu0 0.0
      %586 = vmatpush1.xpose.msra.mxu0 0.0
      %587 = vmatprep.subr.mxu0 0.0
      %588 = vmatpush1.xpose.msra.mxu0 0.0
      %589 = vmatprep.subr.mxu0 0.0
      %590 = vmatpush1.xpose.msra.mxu0 0.0
      %591 = vmatprep.subr.mxu0 0.0
      %592 = vmatpush1.xpose.msra.mxu0 0.0
      %593 = vmatprep.subr.mxu0 0.0
      %594 = vmatpush1.xpose.msra.mxu0 0.0
      %595 = vmatprep.subr.mxu0 0.0
      %596 = vmatpush1.xpose.msra.mxu0 0.0
      %597 = vmatprep.subr.mxu0 0.0
      %598 = vmatpush1.xpose.msra.mxu0 0.0
      %599 = vmatprep.subr.mxu0 0.0
      %600 = vmatpush1.xpose.msra.mxu0 0.0
      %601 = vmatprep.subr.mxu0 0.0
      %602 = vmatpush1.xpose.msra.mxu0 0.0
      %603 = vmatprep.subr.mxu0 0.0
      %604 = vmatpush1.xpose.msra.mxu0 0.0
      %605 = vmatprep.subr.mxu0 0.0
      %606 = vmatpush1.xpose.msra.mxu0 0.0
      %607 = vmatprep.subr.mxu0 0.0
      %608 = vmatpush1.xpose.msra.mxu0 %v575
      %609 = vmatprep.subr.mxu0 0.0
      %610 = vmatpush2.xpose.msra.mxu0 0.0
      %611 = vmatprep.subr.mxu0 0.0
      %612 = vmatpush2.xpose.msra.mxu0 0.0
      %613 = vmatprep.subr.mxu0 0.0
      %614 = vmatpush2.xpose.msra.mxu0 0.0
      %615 = vmatprep.subr.mxu0 0.0
      %616 = vmatpush2.xpose.msra.mxu0 0.0
      %617 = vmatprep.subr.mxu0 0.0
      %618 = vmatpush2.xpose.msra.mxu0 0.0
      %619 = vmatprep.subr.mxu0 0.0
      %620 = vmatpush2.xpose.msra.mxu0 0.0
      %621 = vmatprep.subr.mxu0 0.0
      %622 = vmatpush2.xpose.msra.mxu0 0.0
      %623 = vmatprep.subr.mxu0 0.0
      %624 = vmatpush2.xpose.msra.mxu0 0.0
      %625 = vmatprep.subr.mxu0 0.0
      %626 = vmatpush2.xpose.msra.mxu0 0.0
      %627 = vmatprep.subr.mxu0 0.0
      %628 = vmatpush2.xpose.msra.mxu0 0.0
      %629 = vmatprep.subr.mxu0 0.0
      %630 = vmatpush2.xpose.msra.mxu0 0.0
      %631 = vmatprep.subr.mxu0 0.0
      %632 = vmatpush2.xpose.msra.mxu0 0.0
      %633 = vmatprep.subr.mxu0 0.0
      %634 = vmatpush2.xpose.msra.mxu0 0.0
      %635 = vmatprep.subr.mxu0 0.0
      %636 = vmatpush2.xpose.msra.mxu0 0.0
      %637 = vmatprep.subr.mxu0 0.0
      %638 = vmatpush2.xpose.msra.mxu0 0.0
      %639 = vmatprep.subr.mxu0 0.0
      %640 = vmatpush2.xpose.msra.mxu0 0.0
      %641 = vmatprep.mubr.f32.mxu0 0.0
      %642 = vmatmul.mubr.f32.gmra.mxu0 %v572
      %v643 = vpop.f32.mrf.mxu0
      %v644 = vadd.f32 0.0, %v643
      %v645 = vpop.f32.mrf.mxu0
      %646 = vdwg.mxu0
      %v648 = vsel %vm266, %v223, 0
      %v651 = vsel %vm266, %v239, 0
      %653 = vmatprep.subr.mxu0 0.0
      %654 = vmatpush1.xpose.msra.mxu0 0.0
      %655 = vmatprep.subr.mxu0 0.0
      %656 = vmatpush1.xpose.msra.mxu0 0.0
      %657 = vmatprep.subr.mxu0 0.0
      %658 = vmatpush1.xpose.msra.mxu0 0.0
      %659 = vmatprep.subr.mxu0 0.0
      %660 = vmatpush1.xpose.msra.mxu0 0.0
      %661 = vmatprep.subr.mxu0 0.0
      %662 = vmatpush1.xpose.msra.mxu0 0.0
      %663 = vmatprep.subr.mxu0 0.0
      %664 = vmatpush1.xpose.msra.mxu0 0.0
      %665 = vmatprep.subr.mxu0 0.0
      %666 = vmatpush1.xpose.msra.mxu0 0.0
      %667 = vmatprep.subr.mxu0 0.0
      %668 = vmatpush1.xpose.msra.mxu0 0.0
      %669 = vmatprep.subr.mxu0 0.0
      %670 = vmatpush1.xpose.msra.mxu0 0.0
      %671 = vmatprep.subr.mxu0 0.0
      %672 = vmatpush1.xpose.msra.mxu0 0.0
      %673 = vmatprep.subr.mxu0 0.0
      %674 = vmatpush1.xpose.msra.mxu0 0.0
      %675 = vmatprep.subr.mxu0 0.0
      %676 = vmatpush1.xpose.msra.mxu0 0.0
      %677 = vmatprep.subr.mxu0 0.0
      %678 = vmatpush1.xpose.msra.mxu0 0.0
      %679 = vmatprep.subr.mxu0 0.0
      %680 = vmatpush1.xpose.msra.mxu0 0.0
      %681 = vmatprep.subr.mxu0 0.0
      %682 = vmatpush1.xpose.msra.mxu0 0.0
      %683 = vmatprep.subr.mxu0 0.0
      %684 = vmatpush1.xpose.msra.mxu0 %v651
      %685 = vmatprep.subr.mxu0 0.0
      %686 = vmatpush2.xpose.msra.mxu0 0.0
      %687 = vmatprep.subr.mxu0 0.0
      %688 = vmatpush2.xpose.msra.mxu0 0.0
      %689 = vmatprep.subr.mxu0 0.0
      %690 = vmatpush2.xpose.msra.mxu0 0.0
      %691 = vmatprep.subr.mxu0 0.0
      %692 = vmatpush2.xpose.msra.mxu0 0.0
      %693 = vmatprep.subr.mxu0 0.0
      %694 = vmatpush2.xpose.msra.mxu0 0.0
      %695 = vmatprep.subr.mxu0 0.0
      %696 = vmatpush2.xpose.msra.mxu0 0.0
      %697 = vmatprep.subr.mxu0 0.0
      %698 = vmatpush2.xpose.msra.mxu0 0.0
      %699 = vmatprep.subr.mxu0 0.0
      %700 = vmatpush2.xpose.msra.mxu0 0.0
      %701 = vmatprep.subr.mxu0 0.0
      %702 = vmatpush2.xpose.msra.mxu0 0.0
      %703 = vmatprep.subr.mxu0 0.0
      %704 = vmatpush2.xpose.msra.mxu0 0.0
      %705 = vmatprep.subr.mxu0 0.0
      %706 = vmatpush2.xpose.msra.mxu0 0.0
      %707 = vmatprep.subr.mxu0 0.0
      %708 = vmatpush2.xpose.msra.mxu0 0.0
      %709 = vmatprep.subr.mxu0 0.0
      %710 = vmatpush2.xpose.msra.mxu0 0.0
      %711 = vmatprep.subr.mxu0 0.0
      %712 = vmatpush2.xpose.msra.mxu0 0.0
      %713 = vmatprep.subr.mxu0 0.0
      %714 = vmatpush2.xpose.msra.mxu0 0.0
      %715 = vmatprep.subr.mxu0 0.0
      %716 = vmatpush2.xpose.msra.mxu0 0.0
      %717 = vmatprep.mubr.f32.mxu0 0.0
      %718 = vmatmul.mubr.f32.gmra.mxu0 %v648
      %v719 = vpop.f32.mrf.mxu0
      %v720 = vadd.f32 0.0, %v719
      %v721 = vpop.f32.mrf.mxu0
      %722 = vdwg.mxu0
      %v724 = vsel %vm266, %v224, 0
      %v727 = vsel %vm266, %v240, 0
      %729 = vmatprep.subr.mxu0 0.0
      %730 = vmatpush1.xpose.msra.mxu0 0.0
      %731 = vmatprep.subr.mxu0 0.0
      %732 = vmatpush1.xpose.msra.mxu0 0.0
      %733 = vmatprep.subr.mxu0 0.0
      %734 = vmatpush1.xpose.msra.mxu0 0.0
      %735 = vmatprep.subr.mxu0 0.0
      %736 = vmatpush1.xpose.msra.mxu0 0.0
      %737 = vmatprep.subr.mxu0 0.0
      %738 = vmatpush1.xpose.msra.mxu0 0.0
      %739 = vmatprep.subr.mxu0 0.0
      %740 = vmatpush1.xpose.msra.mxu0 0.0
      %741 = vmatprep.subr.mxu0 0.0
      %742 = vmatpush1.xpose.msra.mxu0 0.0
      %743 = vmatprep.subr.mxu0 0.0
      %744 = vmatpush1.xpose.msra.mxu0 0.0
      %745 = vmatprep.subr.mxu0 0.0
      %746 = vmatpush1.xpose.msra.mxu0 0.0
      %747 = vmatprep.subr.mxu0 0.0
      %748 = vmatpush1.xpose.msra.mxu0 0.0
      %749 = vmatprep.subr.mxu0 0.0
      %750 = vmatpush1.xpose.msra.mxu0 0.0
      %751 = vmatprep.subr.mxu0 0.0
      %752 = vmatpush1.xpose.msra.mxu0 0.0
      %753 = vmatprep.subr.mxu0 0.0
      %754 = vmatpush1.xpose.msra.mxu0 0.0
      %755 = vmatprep.subr.mxu0 0.0
      %756 = vmatpush1.xpose.msra.mxu0 0.0
      %757 = vmatprep.subr.mxu0 0.0
      %758 = vmatpush1.xpose.msra.mxu0 0.0
      %759 = vmatprep.subr.mxu0 0.0
      %760 = vmatpush1.xpose.msra.mxu0 %v727
      %761 = vmatprep.subr.mxu0 0.0
      %762 = vmatpush2.xpose.msra.mxu0 0.0
      %763 = vmatprep.subr.mxu0 0.0
      %764 = vmatpush2.xpose.msra.mxu0 0.0
      %765 = vmatprep.subr.mxu0 0.0
      %766 = vmatpush2.xpose.msra.mxu0 0.0
      %767 = vmatprep.subr.mxu0 0.0
      %768 = vmatpush2.xpose.msra.mxu0 0.0
      %769 = vmatprep.subr.mxu0 0.0
      %770 = vmatpush2.xpose.msra.mxu0 0.0
      %771 = vmatprep.subr.mxu0 0.0
      %772 = vmatpush2.xpose.msra.mxu0 0.0
      %773 = vmatprep.subr.mxu0 0.0
      %774 = vmatpush2.xpose.msra.mxu0 0.0
      %775 = vmatprep.subr.mxu0 0.0
      %776 = vmatpush2.xpose.msra.mxu0 0.0
      %777 = vmatprep.subr.mxu0 0.0
      %778 = vmatpush2.xpose.msra.mxu0 0.0
      %779 = vmatprep.subr.mxu0 0.0
      %780 = vmatpush2.xpose.msra.mxu0 0.0
      %781 = vmatprep.subr.mxu0 0.0
      %782 = vmatpush2.xpose.msra.mxu0 0.0
      %783 = vmatprep.subr.mxu0 0.0
      %784 = vmatpush2.xpose.msra.mxu0 0.0
      %785 = vmatprep.subr.mxu0 0.0
      %786 = vmatpush2.xpose.msra.mxu0 0.0
      %787 = vmatprep.subr.mxu0 0.0
      %788 = vmatpush2.xpose.msra.mxu0 0.0
      %789 = vmatprep.subr.mxu0 0.0
      %790 = vmatpush2.xpose.msra.mxu0 0.0
      %791 = vmatprep.subr.mxu0 0.0
      %792 = vmatpush2.xpose.msra.mxu0 0.0
      %793 = vmatprep.mubr.f32.mxu0 0.0
      %794 = vmatmul.mubr.f32.gmra.mxu0 %v724
      %v795 = vpop.f32.mrf.mxu0
      %v796 = vadd.f32 0.0, %v795
      %v797 = vpop.f32.mrf.mxu0
      %798 = vdwg.mxu0
      %v800 = vsel %vm266, %v225, 0
      %v803 = vsel %vm266, %v241, 0
      %805 = vmatprep.subr.mxu0 0.0
      %806 = vmatpush1.xpose.msra.mxu0 0.0
      %807 = vmatprep.subr.mxu0 0.0
      %808 = vmatpush1.xpose.msra.mxu0 0.0
      %809 = vmatprep.subr.mxu0 0.0
      %810 = vmatpush1.xpose.msra.mxu0 0.0
      %811 = vmatprep.subr.mxu0 0.0
      %812 = vmatpush1.xpose.msra.mxu0 0.0
      %813 = vmatprep.subr.mxu0 0.0
      %814 = vmatpush1.xpose.msra.mxu0 0.0
      %815 = vmatprep.subr.mxu0 0.0
      %816 = vmatpush1.xpose.msra.mxu0 0.0
      %817 = vmatprep.subr.mxu0 0.0
      %818 = vmatpush1.xpose.msra.mxu0 0.0
      %819 = vmatprep.subr.mxu0 0.0
      %820 = vmatpush1.xpose.msra.mxu0 0.0
      %821 = vmatprep.subr.mxu0 0.0
      %822 = vmatpush1.xpose.msra.mxu0 0.0
      %823 = vmatprep.subr.mxu0 0.0
      %824 = vmatpush1.xpose.msra.mxu0 0.0
      %825 = vmatprep.subr.mxu0 0.0
      %826 = vmatpush1.xpose.msra.mxu0 0.0
      %827 = vmatprep.subr.mxu0 0.0
      %828 = vmatpush1.xpose.msra.mxu0 0.0
      %829 = vmatprep.subr.mxu0 0.0
      %830 = vmatpush1.xpose.msra.mxu0 0.0
      %831 = vmatprep.subr.mxu0 0.0
      %832 = vmatpush1.xpose.msra.mxu0 0.0
      %833 = vmatprep.subr.mxu0 0.0
      %834 = vmatpush1.xpose.msra.mxu0 0.0
      %835 = vmatprep.subr.mxu0 0.0
      %836 = vmatpush1.xpose.msra.mxu0 %v803
      %837 = vmatprep.subr.mxu0 0.0
      %838 = vmatpush2.xpose.msra.mxu0 0.0
      %839 = vmatprep.subr.mxu0 0.0
      %840 = vmatpush2.xpose.msra.mxu0 0.0
      %841 = vmatprep.subr.mxu0 0.0
      %842 = vmatpush2.xpose.msra.mxu0 0.0
      %843 = vmatprep.subr.mxu0 0.0
      %844 = vmatpush2.xpose.msra.mxu0 0.0
      %845 = vmatprep.subr.mxu0 0.0
      %846 = vmatpush2.xpose.msra.mxu0 0.0
      %847 = vmatprep.subr.mxu0 0.0
      %848 = vmatpush2.xpose.msra.mxu0 0.0
      %849 = vmatprep.subr.mxu0 0.0
      %850 = vmatpush2.xpose.msra.mxu0 0.0
      %851 = vmatprep.subr.mxu0 0.0
      %852 = vmatpush2.xpose.msra.mxu0 0.0
      %853 = vmatprep.subr.mxu0 0.0
      %854 = vmatpush2.xpose.msra.mxu0 0.0
      %855 = vmatprep.subr.mxu0 0.0
      %856 = vmatpush2.xpose.msra.mxu0 0.0
      %857 = vmatprep.subr.mxu0 0.0
      %858 = vmatpush2.xpose.msra.mxu0 0.0
      %859 = vmatprep.subr.mxu0 0.0
      %860 = vmatpush2.xpose.msra.mxu0 0.0
      %861 = vmatprep.subr.mxu0 0.0
      %862 = vmatpush2.xpose.msra.mxu0 0.0
      %863 = vmatprep.subr.mxu0 0.0
      %864 = vmatpush2.xpose.msra.mxu0 0.0
      %865 = vmatprep.subr.mxu0 0.0
      %866 = vmatpush2.xpose.msra.mxu0 0.0
      %867 = vmatprep.subr.mxu0 0.0
      %868 = vmatpush2.xpose.msra.mxu0 0.0
      %869 = vmatprep.mubr.f32.mxu0 0.0
      %870 = vmatmul.mubr.f32.gmra.mxu0 %v800
      %v871 = vpop.f32.mrf.mxu0
      %v872 = vadd.f32 0.0, %v871
      %v873 = vpop.f32.mrf.mxu0
      %874 = vdwg.mxu0
      %v876 = vsel %vm266, %v226, 0
      %v879 = vsel %vm266, %v242, 0
      %881 = vmatprep.subr.mxu0 0.0
      %882 = vmatpush1.xpose.msra.mxu0 0.0
      %883 = vmatprep.subr.mxu0 0.0
      %884 = vmatpush1.xpose.msra.mxu0 0.0
      %885 = vmatprep.subr.mxu0 0.0
      %886 = vmatpush1.xpose.msra.mxu0 0.0
      %887 = vmatprep.subr.mxu0 0.0
      %888 = vmatpush1.xpose.msra.mxu0 0.0
      %889 = vmatprep.subr.mxu0 0.0
      %890 = vmatpush1.xpose.msra.mxu0 0.0
      %891 = vmatprep.subr.mxu0 0.0
      %892 = vmatpush1.xpose.msra.mxu0 0.0
      %893 = vmatprep.subr.mxu0 0.0
      %894 = vmatpush1.xpose.msra.mxu0 0.0
      %895 = vmatprep.subr.mxu0 0.0
      %896 = vmatpush1.xpose.msra.mxu0 0.0
      %897 = vmatprep.subr.mxu0 0.0
      %898 = vmatpush1.xpose.msra.mxu0 0.0
      %899 = vmatprep.subr.mxu0 0.0
      %900 = vmatpush1.xpose.msra.mxu0 0.0
      %901 = vmatprep.subr.mxu0 0.0
      %902 = vmatpush1.xpose.msra.mxu0 0.0
      %903 = vmatprep.subr.mxu0 0.0
      %904 = vmatpush1.xpose.msra.mxu0 0.0
      %905 = vmatprep.subr.mxu0 0.0
      %906 = vmatpush1.xpose.msra.mxu0 0.0
      %907 = vmatprep.subr.mxu0 0.0
      %908 = vmatpush1.xpose.msra.mxu0 0.0
      %909 = vmatprep.subr.mxu0 0.0
      %910 = vmatpush1.xpose.msra.mxu0 0.0
      %911 = vmatprep.subr.mxu0 0.0
      %912 = vmatpush1.xpose.msra.mxu0 %v879
      %913 = vmatprep.subr.mxu0 0.0
      %914 = vmatpush2.xpose.msra.mxu0 0.0
      %915 = vmatprep.subr.mxu0 0.0
      %916 = vmatpush2.xpose.msra.mxu0 0.0
      %917 = vmatprep.subr.mxu0 0.0
      %918 = vmatpush2.xpose.msra.mxu0 0.0
      %919 = vmatprep.subr.mxu0 0.0
      %920 = vmatpush2.xpose.msra.mxu0 0.0
      %921 = vmatprep.subr.mxu0 0.0
      %922 = vmatpush2.xpose.msra.mxu0 0.0
      %923 = vmatprep.subr.mxu0 0.0
      %924 = vmatpush2.xpose.msra.mxu0 0.0
      %925 = vmatprep.subr.mxu0 0.0
      %926 = vmatpush2.xpose.msra.mxu0 0.0
      %927 = vmatprep.subr.mxu0 0.0
      %928 = vmatpush2.xpose.msra.mxu0 0.0
      %929 = vmatprep.subr.mxu0 0.0
      %930 = vmatpush2.xpose.msra.mxu0 0.0
      %931 = vmatprep.subr.mxu0 0.0
      %932 = vmatpush2.xpose.msra.mxu0 0.0
      %933 = vmatprep.subr.mxu0 0.0
      %934 = vmatpush2.xpose.msra.mxu0 0.0
      %935 = vmatprep.subr.mxu0 0.0
      %936 = vmatpush2.xpose.msra.mxu0 0.0
      %937 = vmatprep.subr.mxu0 0.0
      %938 = vmatpush2.xpose.msra.mxu0 0.0
      %939 = vmatprep.subr.mxu0 0.0
      %940 = vmatpush2.xpose.msra.mxu0 0.0
      %941 = vmatprep.subr.mxu0 0.0
      %942 = vmatpush2.xpose.msra.mxu0 0.0
      %943 = vmatprep.subr.mxu0 0.0
      %944 = vmatpush2.xpose.msra.mxu0 0.0
      %945 = vmatprep.mubr.f32.mxu0 0.0
      %946 = vmatmul.mubr.f32.gmra.mxu0 %v876
      %v947 = vpop.f32.mrf.mxu0
      %v948 = vadd.f32 0.0, %v947
      %v949 = vpop.f32.mrf.mxu0
      %950 = vdwg.mxu0
      %v952 = vsel %vm266, %v227, 0
      %v955 = vsel %vm266, %v243, 0
      %957 = vmatprep.subr.mxu0 0.0
      %958 = vmatpush1.xpose.msra.mxu0 0.0
      %959 = vmatprep.subr.mxu0 0.0
      %960 = vmatpush1.xpose.msra.mxu0 0.0
      %961 = vmatprep.subr.mxu0 0.0
      %962 = vmatpush1.xpose.msra.mxu0 0.0
      %963 = vmatprep.subr.mxu0 0.0
      %964 = vmatpush1.xpose.msra.mxu0 0.0
      %965 = vmatprep.subr.mxu0 0.0
      %966 = vmatpush1.xpose.msra.mxu0 0.0
      %967 = vmatprep.subr.mxu0 0.0
      %968 = vmatpush1.xpose.msra.mxu0 0.0
      %969 = vmatprep.subr.mxu0 0.0
      %970 = vmatpush1.xpose.msra.mxu0 0.0
      %971 = vmatprep.subr.mxu0 0.0
      %972 = vmatpush1.xpose.msra.mxu0 0.0
      %973 = vmatprep.subr.mxu0 0.0
      %974 = vmatpush1.xpose.msra.mxu0 0.0
      %975 = vmatprep.subr.mxu0 0.0
      %976 = vmatpush1.xpose.msra.mxu0 0.0
      %977 = vmatprep.subr.mxu0 0.0
      %978 = vmatpush1.xpose.msra.mxu0 0.0
      %979 = vmatprep.subr.mxu0 0.0
      %980 = vmatpush1.xpose.msra.mxu0 0.0
      %981 = vmatprep.subr.mxu0 0.0
      %982 = vmatpush1.xpose.msra.mxu0 0.0
      %983 = vmatprep.subr.mxu0 0.0
      %984 = vmatpush1.xpose.msra.mxu0 0.0
      %985 = vmatprep.subr.mxu0 0.0
      %986 = vmatpush1.xpose.msra.mxu0 0.0
      %987 = vmatprep.subr.mxu0 0.0
      %988 = vmatpush1.xpose.msra.mxu0 %v955
      %989 = vmatprep.subr.mxu0 0.0
      %990 = vmatpush2.xpose.msra.mxu0 0.0
      %991 = vmatprep.subr.mxu0 0.0
      %992 = vmatpush2.xpose.msra.mxu0 0.0
      %993 = vmatprep.subr.mxu0 0.0
      %994 = vmatpush2.xpose.msra.mxu0 0.0
      %995 = vmatprep.subr.mxu0 0.0
      %996 = vmatpush2.xpose.msra.mxu0 0.0
      %997 = vmatprep.subr.mxu0 0.0
      %998 = vmatpush2.xpose.msra.mxu0 0.0
      %999 = vmatprep.subr.mxu0 0.0
      %1000 = vmatpush2.xpose.msra.mxu0 0.0
      %1001 = vmatprep.subr.mxu0 0.0
      %1002 = vmatpush2.xpose.msra.mxu0 0.0
      %1003 = vmatprep.subr.mxu0 0.0
      %1004 = vmatpush2.xpose.msra.mxu0 0.0
      %1005 = vmatprep.subr.mxu0 0.0
      %1006 = vmatpush2.xpose.msra.mxu0 0.0
      %1007 = vmatprep.subr.mxu0 0.0
      %1008 = vmatpush2.xpose.msra.mxu0 0.0
      %1009 = vmatprep.subr.mxu0 0.0
      %1010 = vmatpush2.xpose.msra.mxu0 0.0
      %1011 = vmatprep.subr.mxu0 0.0
      %1012 = vmatpush2.xpose.msra.mxu0 0.0
      %1013 = vmatprep.subr.mxu0 0.0
      %1014 = vmatpush2.xpose.msra.mxu0 0.0
      %1015 = vmatprep.subr.mxu0 0.0
      %1016 = vmatpush2.xpose.msra.mxu0 0.0
      %1017 = vmatprep.subr.mxu0 0.0
      %1018 = vmatpush2.xpose.msra.mxu0 0.0
      %1019 = vmatprep.subr.mxu0 0.0
      %1020 = vmatpush2.xpose.msra.mxu0 0.0
      %1021 = vmatprep.mubr.f32.mxu0 0.0
      %1022 = vmatmul.mubr.f32.gmra.mxu0 %v952
      %v1023 = vpop.f32.mrf.mxu0
      %v1024 = vadd.f32 0.0, %v1023
      %v1025 = vpop.f32.mrf.mxu0
      %1026 = vdwg.mxu0
      %v1028 = vsel %vm266, %v228, 0
      %v1031 = vsel %vm266, %v244, 0
      %1033 = vmatprep.subr.mxu0 0.0
      %1034 = vmatpush1.xpose.msra.mxu0 0.0
      %1035 = vmatprep.subr.mxu0 0.0
      %1036 = vmatpush1.xpose.msra.mxu0 0.0
      %1037 = vmatprep.subr.mxu0 0.0
      %1038 = vmatpush1.xpose.msra.mxu0 0.0
      %1039 = vmatprep.subr.mxu0 0.0
      %1040 = vmatpush1.xpose.msra.mxu0 0.0
      %1041 = vmatprep.subr.mxu0 0.0
      %1042 = vmatpush1.xpose.msra.mxu0 0.0
      %1043 = vmatprep.subr.mxu0 0.0
      %1044 = vmatpush1.xpose.msra.mxu0 0.0
      %1045 = vmatprep.subr.mxu0 0.0
      %1046 = vmatpush1.xpose.msra.mxu0 0.0
      %1047 = vmatprep.subr.mxu0 0.0
      %1048 = vmatpush1.xpose.msra.mxu0 0.0
      %1049 = vmatprep.subr.mxu0 0.0
      %1050 = vmatpush1.xpose.msra.mxu0 0.0
      %1051 = vmatprep.subr.mxu0 0.0
      %1052 = vmatpush1.xpose.msra.mxu0 0.0
      %1053 = vmatprep.subr.mxu0 0.0
      %1054 = vmatpush1.xpose.msra.mxu0 0.0
      %1055 = vmatprep.subr.mxu0 0.0
      %1056 = vmatpush1.xpose.msra.mxu0 0.0
      %1057 = vmatprep.subr.mxu0 0.0
      %1058 = vmatpush1.xpose.msra.mxu0 0.0
      %1059 = vmatprep.subr.mxu0 0.0
      %1060 = vmatpush1.xpose.msra.mxu0 0.0
      %1061 = vmatprep.subr.mxu0 0.0
      %1062 = vmatpush1.xpose.msra.mxu0 0.0
      %1063 = vmatprep.subr.mxu0 0.0
      %1064 = vmatpush1.xpose.msra.mxu0 %v1031
      %1065 = vmatprep.subr.mxu0 0.0
      %1066 = vmatpush2.xpose.msra.mxu0 0.0
      %1067 = vmatprep.subr.mxu0 0.0
      %1068 = vmatpush2.xpose.msra.mxu0 0.0
      %1069 = vmatprep.subr.mxu0 0.0
      %1070 = vmatpush2.xpose.msra.mxu0 0.0
      %1071 = vmatprep.subr.mxu0 0.0
      %1072 = vmatpush2.xpose.msra.mxu0 0.0
      %1073 = vmatprep.subr.mxu0 0.0
      %1074 = vmatpush2.xpose.msra.mxu0 0.0
      %1075 = vmatprep.subr.mxu0 0.0
      %1076 = vmatpush2.xpose.msra.mxu0 0.0
      %1077 = vmatprep.subr.mxu0 0.0
      %1078 = vmatpush2.xpose.msra.mxu0 0.0
      %1079 = vmatprep.subr.mxu0 0.0
      %1080 = vmatpush2.xpose.msra.mxu0 0.0
      %1081 = vmatprep.subr.mxu0 0.0
      %1082 = vmatpush2.xpose.msra.mxu0 0.0
      %1083 = vmatprep.subr.mxu0 0.0
      %1084 = vmatpush2.xpose.msra.mxu0 0.0
      %1085 = vmatprep.subr.mxu0 0.0
      %1086 = vmatpush2.xpose.msra.mxu0 0.0
      %1087 = vmatprep.subr.mxu0 0.0
      %1088 = vmatpush2.xpose.msra.mxu0 0.0
      %1089 = vmatprep.subr.mxu0 0.0
      %1090 = vmatpush2.xpose.msra.mxu0 0.0
      %1091 = vmatprep.subr.mxu0 0.0
      %1092 = vmatpush2.xpose.msra.mxu0 0.0
      %1093 = vmatprep.subr.mxu0 0.0
      %1094 = vmatpush2.xpose.msra.mxu0 0.0
      %1095 = vmatprep.subr.mxu0 0.0
      %1096 = vmatpush2.xpose.msra.mxu0 0.0
      %1097 = vmatprep.mubr.f32.mxu0 0.0
      %1098 = vmatmul.mubr.f32.gmra.mxu0 %v1028
      %v1099 = vpop.f32.mrf.mxu0
      %v1100 = vadd.f32 0.0, %v1099
      %v1101 = vpop.f32.mrf.mxu0
      %1102 = vdwg.mxu0
      %v1104 = vsel %vm266, %v229, 0
      %v1107 = vsel %vm266, %v245, 0
      %1109 = vmatprep.subr.mxu0 0.0
      %1110 = vmatpush1.xpose.msra.mxu0 0.0
      %1111 = vmatprep.subr.mxu0 0.0
      %1112 = vmatpush1.xpose.msra.mxu0 0.0
      %1113 = vmatprep.subr.mxu0 0.0
      %1114 = vmatpush1.xpose.msra.mxu0 0.0
      %1115 = vmatprep.subr.mxu0 0.0
      %1116 = vmatpush1.xpose.msra.mxu0 0.0
      %1117 = vmatprep.subr.mxu0 0.0
      %1118 = vmatpush1.xpose.msra.mxu0 0.0
      %1119 = vmatprep.subr.mxu0 0.0
      %1120 = vmatpush1.xpose.msra.mxu0 0.0
      %1121 = vmatprep.subr.mxu0 0.0
      %1122 = vmatpush1.xpose.msra.mxu0 0.0
      %1123 = vmatprep.subr.mxu0 0.0
      %1124 = vmatpush1.xpose.msra.mxu0 0.0
      %1125 = vmatprep.subr.mxu0 0.0
      %1126 = vmatpush1.xpose.msra.mxu0 0.0
      %1127 = vmatprep.subr.mxu0 0.0
      %1128 = vmatpush1.xpose.msra.mxu0 0.0
      %1129 = vmatprep.subr.mxu0 0.0
      %1130 = vmatpush1.xpose.msra.mxu0 0.0
      %1131 = vmatprep.subr.mxu0 0.0
      %1132 = vmatpush1.xpose.msra.mxu0 0.0
      %1133 = vmatprep.subr.mxu0 0.0
      %1134 = vmatpush1.xpose.msra.mxu0 0.0
      %1135 = vmatprep.subr.mxu0 0.0
      %1136 = vmatpush1.xpose.msra.mxu0 0.0
      %1137 = vmatprep.subr.mxu0 0.0
      %1138 = vmatpush1.xpose.msra.mxu0 0.0
      %1139 = vmatprep.subr.mxu0 0.0
      %1140 = vmatpush1.xpose.msra.mxu0 %v1107
      %1141 = vmatprep.subr.mxu0 0.0
      %1142 = vmatpush2.xpose.msra.mxu0 0.0
      %1143 = vmatprep.subr.mxu0 0.0
      %1144 = vmatpush2.xpose.msra.mxu0 0.0
      %1145 = vmatprep.subr.mxu0 0.0
      %1146 = vmatpush2.xpose.msra.mxu0 0.0
      %1147 = vmatprep.subr.mxu0 0.0
      %1148 = vmatpush2.xpose.msra.mxu0 0.0
      %1149 = vmatprep.subr.mxu0 0.0
      %1150 = vmatpush2.xpose.msra.mxu0 0.0
      %1151 = vmatprep.subr.mxu0 0.0
      %1152 = vmatpush2.xpose.msra.mxu0 0.0
      %1153 = vmatprep.subr.mxu0 0.0
      %1154 = vmatpush2.xpose.msra.mxu0 0.0
      %1155 = vmatprep.subr.mxu0 0.0
      %1156 = vmatpush2.xpose.msra.mxu0 0.0
      %1157 = vmatprep.subr.mxu0 0.0
      %1158 = vmatpush2.xpose.msra.mxu0 0.0
      %1159 = vmatprep.subr.mxu0 0.0
      %1160 = vmatpush2.xpose.msra.mxu0 0.0
      %1161 = vmatprep.subr.mxu0 0.0
      %1162 = vmatpush2.xpose.msra.mxu0 0.0
      %1163 = vmatprep.subr.mxu0 0.0
      %1164 = vmatpush2.xpose.msra.mxu0 0.0
      %1165 = vmatprep.subr.mxu0 0.0
      %1166 = vmatpush2.xpose.msra.mxu0 0.0
      %1167 = vmatprep.subr.mxu0 0.0
      %1168 = vmatpush2.xpose.msra.mxu0 0.0
      %1169 = vmatprep.subr.mxu0 0.0
      %1170 = vmatpush2.xpose.msra.mxu0 0.0
      %1171 = vmatprep.subr.mxu0 0.0
      %1172 = vmatpush2.xpose.msra.mxu0 0.0
      %1173 = vmatprep.mubr.f32.mxu0 0.0
      %1174 = vmatmul.mubr.f32.gmra.mxu0 %v1104
      %v1175 = vpop.f32.mrf.mxu0
      %v1176 = vadd.f32 0.0, %v1175
      %v1177 = vpop.f32.mrf.mxu0
      %1178 = vdwg.mxu0
      %v1180 = vsel %vm266, %v230, 0
      %v1183 = vsel %vm266, %v246, 0
      %1185 = vmatprep.subr.mxu0 0.0
      %1186 = vmatpush1.xpose.msra.mxu0 0.0
      %1187 = vmatprep.subr.mxu0 0.0
      %1188 = vmatpush1.xpose.msra.mxu0 0.0
      %1189 = vmatprep.subr.mxu0 0.0
      %1190 = vmatpush1.xpose.msra.mxu0 0.0
      %1191 = vmatprep.subr.mxu0 0.0
      %1192 = vmatpush1.xpose.msra.mxu0 0.0
      %1193 = vmatprep.subr.mxu0 0.0
      %1194 = vmatpush1.xpose.msra.mxu0 0.0
      %1195 = vmatprep.subr.mxu0 0.0
      %1196 = vmatpush1.xpose.msra.mxu0 0.0
      %1197 = vmatprep.subr.mxu0 0.0
      %1198 = vmatpush1.xpose.msra.mxu0 0.0
      %1199 = vmatprep.subr.mxu0 0.0
      %1200 = vmatpush1.xpose.msra.mxu0 0.0
      %1201 = vmatprep.subr.mxu0 0.0
      %1202 = vmatpush1.xpose.msra.mxu0 0.0
      %1203 = vmatprep.subr.mxu0 0.0
      %1204 = vmatpush1.xpose.msra.mxu0 0.0
      %1205 = vmatprep.subr.mxu0 0.0
      %1206 = vmatpush1.xpose.msra.mxu0 0.0
      %1207 = vmatprep.subr.mxu0 0.0
      %1208 = vmatpush1.xpose.msra.mxu0 0.0
      %1209 = vmatprep.subr.mxu0 0.0
      %1210 = vmatpush1.xpose.msra.mxu0 0.0
      %1211 = vmatprep.subr.mxu0 0.0
      %1212 = vmatpush1.xpose.msra.mxu0 0.0
      %1213 = vmatprep.subr.mxu0 0.0
      %1214 = vmatpush1.xpose.msra.mxu0 0.0
      %1215 = vmatprep.subr.mxu0 0.0
      %1216 = vmatpush1.xpose.msra.mxu0 %v1183
      %1217 = vmatprep.subr.mxu0 0.0
      %1218 = vmatpush2.xpose.msra.mxu0 0.0
      %1219 = vmatprep.subr.mxu0 0.0
      %1220 = vmatpush2.xpose.msra.mxu0 0.0
      %1221 = vmatprep.subr.mxu0 0.0
      %1222 = vmatpush2.xpose.msra.mxu0 0.0
      %1223 = vmatprep.subr.mxu0 0.0
      %1224 = vmatpush2.xpose.msra.mxu0 0.0
      %1225 = vmatprep.subr.mxu0 0.0
      %1226 = vmatpush2.xpose.msra.mxu0 0.0
      %1227 = vmatprep.subr.mxu0 0.0
      %1228 = vmatpush2.xpose.msra.mxu0 0.0
      %1229 = vmatprep.subr.mxu0 0.0
      %1230 = vmatpush2.xpose.msra.mxu0 0.0
      %1231 = vmatprep.subr.mxu0 0.0
      %1232 = vmatpush2.xpose.msra.mxu0 0.0
      %1233 = vmatprep.subr.mxu0 0.0
      %1234 = vmatpush2.xpose.msra.mxu0 0.0
      %1235 = vmatprep.subr.mxu0 0.0
      %1236 = vmatpush2.xpose.msra.mxu0 0.0
      %1237 = vmatprep.subr.mxu0 0.0
      %1238 = vmatpush2.xpose.msra.mxu0 0.0
      %1239 = vmatprep.subr.mxu0 0.0
      %1240 = vmatpush2.xpose.msra.mxu0 0.0
      %1241 = vmatprep.subr.mxu0 0.0
      %1242 = vmatpush2.xpose.msra.mxu0 0.0
      %1243 = vmatprep.subr.mxu0 0.0
      %1244 = vmatpush2.xpose.msra.mxu0 0.0
      %1245 = vmatprep.subr.mxu0 0.0
      %1246 = vmatpush2.xpose.msra.mxu0 0.0
      %1247 = vmatprep.subr.mxu0 0.0
      %1248 = vmatpush2.xpose.msra.mxu0 0.0
      %1249 = vmatprep.mubr.f32.mxu0 0.0
      %1250 = vmatmul.mubr.f32.gmra.mxu0 %v1180
      %v1251 = vpop.f32.mrf.mxu0
      %v1252 = vadd.f32 0.0, %v1251
      %v1253 = vpop.f32.mrf.mxu0
      %1254 = vdwg.mxu0
      %v1256 = vsel %vm266, %v231, 0
      %v1259 = vsel %vm266, %v247, 0
      %1261 = vmatprep.subr.mxu0 0.0
      %1262 = vmatpush1.xpose.msra.mxu0 0.0
      %1263 = vmatprep.subr.mxu0 0.0
      %1264 = vmatpush1.xpose.msra.mxu0 0.0
      %1265 = vmatprep.subr.mxu0 0.0
      %1266 = vmatpush1.xpose.msra.mxu0 0.0
      %1267 = vmatprep.subr.mxu0 0.0
      %1268 = vmatpush1.xpose.msra.mxu0 0.0
      %1269 = vmatprep.subr.mxu0 0.0
      %1270 = vmatpush1.xpose.msra.mxu0 0.0
      %1271 = vmatprep.subr.mxu0 0.0
      %1272 = vmatpush1.xpose.msra.mxu0 0.0
      %1273 = vmatprep.subr.mxu0 0.0
      %1274 = vmatpush1.xpose.msra.mxu0 0.0
      %1275 = vmatprep.subr.mxu0 0.0
      %1276 = vmatpush1.xpose.msra.mxu0 0.0
      %1277 = vmatprep.subr.mxu0 0.0
      %1278 = vmatpush1.xpose.msra.mxu0 0.0
      %1279 = vmatprep.subr.mxu0 0.0
      %1280 = vmatpush1.xpose.msra.mxu0 0.0
      %1281 = vmatprep.subr.mxu0 0.0
      %1282 = vmatpush1.xpose.msra.mxu0 0.0
      %1283 = vmatprep.subr.mxu0 0.0
      %1284 = vmatpush1.xpose.msra.mxu0 0.0
      %1285 = vmatprep.subr.mxu0 0.0
      %1286 = vmatpush1.xpose.msra.mxu0 0.0
      %1287 = vmatprep.subr.mxu0 0.0
      %1288 = vmatpush1.xpose.msra.mxu0 0.0
      %1289 = vmatprep.subr.mxu0 0.0
      %1290 = vmatpush1.xpose.msra.mxu0 0.0
      %1291 = vmatprep.subr.mxu0 0.0
      %1292 = vmatpush1.xpose.msra.mxu0 %v1259
      %1293 = vmatprep.subr.mxu0 0.0
      %1294 = vmatpush2.xpose.msra.mxu0 0.0
      %1295 = vmatprep.subr.mxu0 0.0
      %1296 = vmatpush2.xpose.msra.mxu0 0.0
      %1297 = vmatprep.subr.mxu0 0.0
      %1298 = vmatpush2.xpose.msra.mxu0 0.0
      %1299 = vmatprep.subr.mxu0 0.0
      %1300 = vmatpush2.xpose.msra.mxu0 0.0
      %1301 = vmatprep.subr.mxu0 0.0
      %1302 = vmatpush2.xpose.msra.mxu0 0.0
      %1303 = vmatprep.subr.mxu0 0.0
      %1304 = vmatpush2.xpose.msra.mxu0 0.0
      %1305 = vmatprep.subr.mxu0 0.0
      %1306 = vmatpush2.xpose.msra.mxu0 0.0
      %1307 = vmatprep.subr.mxu0 0.0
      %1308 = vmatpush2.xpose.msra.mxu0 0.0
      %1309 = vmatprep.subr.mxu0 0.0
      %1310 = vmatpush2.xpose.msra.mxu0 0.0
      %1311 = vmatprep.subr.mxu0 0.0
      %1312 = vmatpush2.xpose.msra.mxu0 0.0
      %1313 = vmatprep.subr.mxu0 0.0
      %1314 = vmatpush2.xpose.msra.mxu0 0.0
      %1315 = vmatprep.subr.mxu0 0.0
      %1316 = vmatpush2.xpose.msra.mxu0 0.0
      %1317 = vmatprep.subr.mxu0 0.0
      %1318 = vmatpush2.xpose.msra.mxu0 0.0
      %1319 = vmatprep.subr.mxu0 0.0
      %1320 = vmatpush2.xpose.msra.mxu0 0.0
      %1321 = vmatprep.subr.mxu0 0.0
      %1322 = vmatpush2.xpose.msra.mxu0 0.0
      %1323 = vmatprep.subr.mxu0 0.0
      %1324 = vmatpush2.xpose.msra.mxu0 0.0
      %1325 = vmatprep.mubr.f32.mxu0 0.0
      %1326 = vmatmul.mubr.f32.gmra.mxu0 %v1256
      %v1327 = vpop.f32.mrf.mxu0
      %v1328 = vadd.f32 0.0, %v1327
      %v1329 = vpop.f32.mrf.mxu0
      %1330 = vdwg.mxu0
      %v1332 = vsel %vm266, %v232, 0
      %v1335 = vsel %vm266, %v248, 0
      %1337 = vmatprep.subr.mxu0 0.0
      %1338 = vmatpush1.xpose.msra.mxu0 0.0
      %1339 = vmatprep.subr.mxu0 0.0
      %1340 = vmatpush1.xpose.msra.mxu0 0.0
      %1341 = vmatprep.subr.mxu0 0.0
      %1342 = vmatpush1.xpose.msra.mxu0 0.0
      %1343 = vmatprep.subr.mxu0 0.0
      %1344 = vmatpush1.xpose.msra.mxu0 0.0
      %1345 = vmatprep.subr.mxu0 0.0
      %1346 = vmatpush1.xpose.msra.mxu0 0.0
      %1347 = vmatprep.subr.mxu0 0.0
      %1348 = vmatpush1.xpose.msra.mxu0 0.0
      %1349 = vmatprep.subr.mxu0 0.0
      %1350 = vmatpush1.xpose.msra.mxu0 0.0
      %1351 = vmatprep.subr.mxu0 0.0
      %1352 = vmatpush1.xpose.msra.mxu0 0.0
      %1353 = vmatprep.subr.mxu0 0.0
      %1354 = vmatpush1.xpose.msra.mxu0 0.0
      %1355 = vmatprep.subr.mxu0 0.0
      %1356 = vmatpush1.xpose.msra.mxu0 0.0
      %1357 = vmatprep.subr.mxu0 0.0
      %1358 = vmatpush1.xpose.msra.mxu0 0.0
      %1359 = vmatprep.subr.mxu0 0.0
      %1360 = vmatpush1.xpose.msra.mxu0 0.0
      %1361 = vmatprep.subr.mxu0 0.0
      %1362 = vmatpush1.xpose.msra.mxu0 0.0
      %1363 = vmatprep.subr.mxu0 0.0
      %1364 = vmatpush1.xpose.msra.mxu0 0.0
      %1365 = vmatprep.subr.mxu0 0.0
      %1366 = vmatpush1.xpose.msra.mxu0 0.0
      %1367 = vmatprep.subr.mxu0 0.0
      %1368 = vmatpush1.xpose.msra.mxu0 %v1335
      %1369 = vmatprep.subr.mxu0 0.0
      %1370 = vmatpush2.xpose.msra.mxu0 0.0
      %1371 = vmatprep.subr.mxu0 0.0
      %1372 = vmatpush2.xpose.msra.mxu0 0.0
      %1373 = vmatprep.subr.mxu0 0.0
      %1374 = vmatpush2.xpose.msra.mxu0 0.0
      %1375 = vmatprep.subr.mxu0 0.0
      %1376 = vmatpush2.xpose.msra.mxu0 0.0
      %1377 = vmatprep.subr.mxu0 0.0
      %1378 = vmatpush2.xpose.msra.mxu0 0.0
      %1379 = vmatprep.subr.mxu0 0.0
      %1380 = vmatpush2.xpose.msra.mxu0 0.0
      %1381 = vmatprep.subr.mxu0 0.0
      %1382 = vmatpush2.xpose.msra.mxu0 0.0
      %1383 = vmatprep.subr.mxu0 0.0
      %1384 = vmatpush2.xpose.msra.mxu0 0.0
      %1385 = vmatprep.subr.mxu0 0.0
      %1386 = vmatpush2.xpose.msra.mxu0 0.0
      %1387 = vmatprep.subr.mxu0 0.0
      %1388 = vmatpush2.xpose.msra.mxu0 0.0
      %1389 = vmatprep.subr.mxu0 0.0
      %1390 = vmatpush2.xpose.msra.mxu0 0.0
      %1391 = vmatprep.subr.mxu0 0.0
      %1392 = vmatpush2.xpose.msra.mxu0 0.0
      %1393 = vmatprep.subr.mxu0 0.0
      %1394 = vmatpush2.xpose.msra.mxu0 0.0
      %1395 = vmatprep.subr.mxu0 0.0
      %1396 = vmatpush2.xpose.msra.mxu0 0.0
      %1397 = vmatprep.subr.mxu0 0.0
      %1398 = vmatpush2.xpose.msra.mxu0 0.0
      %1399 = vmatprep.subr.mxu0 0.0
      %1400 = vmatpush2.xpose.msra.mxu0 0.0
      %1401 = vmatprep.mubr.f32.mxu0 0.0
      %1402 = vmatmul.mubr.f32.gmra.mxu0 %v1332
      %v1403 = vpop.f32.mrf.mxu0
      %v1404 = vadd.f32 0.0, %v1403
      %v1405 = vpop.f32.mrf.mxu0
      %1406 = vdwg.mxu0
      %v1408 = vsel %vm266, %v233, 0
      %v1411 = vsel %vm266, %v249, 0
      %1413 = vmatprep.subr.mxu0 0.0
      %1414 = vmatpush1.xpose.msra.mxu0 0.0
      %1415 = vmatprep.subr.mxu0 0.0
      %1416 = vmatpush1.xpose.msra.mxu0 0.0
      %1417 = vmatprep.subr.mxu0 0.0
      %1418 = vmatpush1.xpose.msra.mxu0 0.0
      %1419 = vmatprep.subr.mxu0 0.0
      %1420 = vmatpush1.xpose.msra.mxu0 0.0
      %1421 = vmatprep.subr.mxu0 0.0
      %1422 = vmatpush1.xpose.msra.mxu0 0.0
      %1423 = vmatprep.subr.mxu0 0.0
      %1424 = vmatpush1.xpose.msra.mxu0 0.0
      %1425 = vmatprep.subr.mxu0 0.0
      %1426 = vmatpush1.xpose.msra.mxu0 0.0
      %1427 = vmatprep.subr.mxu0 0.0
      %1428 = vmatpush1.xpose.msra.mxu0 0.0
      %1429 = vmatprep.subr.mxu0 0.0
      %1430 = vmatpush1.xpose.msra.mxu0 0.0
      %1431 = vmatprep.subr.mxu0 0.0
      %1432 = vmatpush1.xpose.msra.mxu0 0.0
      %1433 = vmatprep.subr.mxu0 0.0
      %1434 = vmatpush1.xpose.msra.mxu0 0.0
      %1435 = vmatprep.subr.mxu0 0.0
      %1436 = vmatpush1.xpose.msra.mxu0 0.0
      %1437 = vmatprep.subr.mxu0 0.0
      %1438 = vmatpush1.xpose.msra.mxu0 0.0
      %1439 = vmatprep.subr.mxu0 0.0
      %1440 = vmatpush1.xpose.msra.mxu0 0.0
      %1441 = vmatprep.subr.mxu0 0.0
      %1442 = vmatpush1.xpose.msra.mxu0 0.0
      %1443 = vmatprep.subr.mxu0 0.0
      %1444 = vmatpush1.xpose.msra.mxu0 %v1411
      %1445 = vmatprep.subr.mxu0 0.0
      %1446 = vmatpush2.xpose.msra.mxu0 0.0
      %1447 = vmatprep.subr.mxu0 0.0
      %1448 = vmatpush2.xpose.msra.mxu0 0.0
      %1449 = vmatprep.subr.mxu0 0.0
      %1450 = vmatpush2.xpose.msra.mxu0 0.0
      %1451 = vmatprep.subr.mxu0 0.0
      %1452 = vmatpush2.xpose.msra.mxu0 0.0
      %1453 = vmatprep.subr.mxu0 0.0
      %1454 = vmatpush2.xpose.msra.mxu0 0.0
      %1455 = vmatprep.subr.mxu0 0.0
      %1456 = vmatpush2.xpose.msra.mxu0 0.0
      %1457 = vmatprep.subr.mxu0 0.0
      %1458 = vmatpush2.xpose.msra.mxu0 0.0
      %1459 = vmatprep.subr.mxu0 0.0
      %1460 = vmatpush2.xpose.msra.mxu0 0.0
      %1461 = vmatprep.subr.mxu0 0.0
      %1462 = vmatpush2.xpose.msra.mxu0 0.0
      %1463 = vmatprep.subr.mxu0 0.0
      %1464 = vmatpush2.xpose.msra.mxu0 0.0
      %1465 = vmatprep.subr.mxu0 0.0
      %1466 = vmatpush2.xpose.msra.mxu0 0.0
      %1467 = vmatprep.subr.mxu0 0.0
      %1468 = vmatpush2.xpose.msra.mxu0 0.0
      %1469 = vmatprep.subr.mxu0 0.0
      %1470 = vmatpush2.xpose.msra.mxu0 0.0
      %1471 = vmatprep.subr.mxu0 0.0
      %1472 = vmatpush2.xpose.msra.mxu0 0.0
      %1473 = vmatprep.subr.mxu0 0.0
      %1474 = vmatpush2.xpose.msra.mxu0 0.0
      %1475 = vmatprep.subr.mxu0 0.0
      %1476 = vmatpush2.xpose.msra.mxu0 0.0
      %1477 = vmatprep.mubr.f32.mxu0 0.0
      %1478 = vmatmul.mubr.f32.gmra.mxu0 %v1408
      %v1479 = vpop.f32.mrf.mxu0
      %v1480 = vadd.f32 0.0, %v1479
      %v1481 = vpop.f32.mrf.mxu0
      %1482 = vdwg.mxu0
      %v1483 = vmul.f32 %v340, 0.35355338
      %v1484 = vmul.f32 %v416, 0.35355338
      %v1485 = vmul.f32 %v492, 0.35355338
      %v1486 = vmul.f32 %v568, 0.35355338
      %v1487 = vmul.f32 %v644, 0.35355338
      %v1488 = vmul.f32 %v720, 0.35355338
      %v1489 = vmul.f32 %v796, 0.35355338
      %v1490 = vmul.f32 %v872, 0.35355338
      %v1491 = vmul.f32 %v948, 0.35355338
      %v1492 = vmul.f32 %v1024, 0.35355338
      %v1493 = vmul.f32 %v1100, 0.35355338
      %v1494 = vmul.f32 %v1176, 0.35355338
      %v1495 = vmul.f32 %v1252, 0.35355338
      %v1496 = vmul.f32 %v1328, 0.35355338
      %v1497 = vmul.f32 %v1404, 0.35355338
      %v1498 = vmul.f32 %v1480, 0.35355338
      %vm1499 = vcmask 9216
      %v1500 = vsel %vm1499, %v1483, -inf
      %1501 = vmax.xlane.f32.xlu0 %v1500
      %v1502 = vpop.xlane.xlu0 %1501
      %v1503 = vsel %vm1499, %v1484, -inf
      %1504 = vmax.xlane.f32.xlu0 %v1503
      %v1505 = vpop.xlane.xlu0 %1504
      %v1506 = vsel %vm1499, %v1485, -inf
      %1507 = vmax.xlane.f32.xlu0 %v1506
      %v1508 = vpop.xlane.xlu0 %1507
      %v1509 = vsel %vm1499, %v1486, -inf
      %1510 = vmax.xlane.f32.xlu0 %v1509
      %v1511 = vpop.xlane.xlu0 %1510
      %v1512 = vsel %vm1499, %v1487, -inf
      %1513 = vmax.xlane.f32.xlu0 %v1512
      %v1514 = vpop.xlane.xlu0 %1513
      %v1515 = vsel %vm1499, %v1488, -inf
      %1516 = vmax.xlane.f32.xlu0 %v1515
      %v1517 = vpop.xlane.xlu0 %1516
      %v1518 = vsel %vm1499, %v1489, -inf
      %1519 = vmax.xlane.f32.xlu0 %v1518
      %v1520 = vpop.xlane.xlu0 %1519
      %v1521 = vsel %vm1499, %v1490, -inf
      %1522 = vmax.xlane.f32.xlu0 %v1521
      %v1523 = vpop.xlane.xlu0 %1522
      %v1524 = vsel %vm1499, %v1491, -inf
      %1525 = vmax.xlane.f32.xlu0 %v1524
      %v1526 = vpop.xlane.xlu0 %1525
      %v1527 = vsel %vm1499, %v1492, -inf
      %1528 = vmax.xlane.f32.xlu0 %v1527
      %v1529 = vpop.xlane.xlu0 %1528
      %v1530 = vsel %vm1499, %v1493, -inf
      %1531 = vmax.xlane.f32.xlu0 %v1530
      %v1532 = vpop.xlane.xlu0 %1531
      %v1533 = vsel %vm1499, %v1494, -inf
      %1534 = vmax.xlane.f32.xlu0 %v1533
      %v1535 = vpop.xlane.xlu0 %1534
      %v1536 = vsel %vm1499, %v1495, -inf
      %1537 = vmax.xlane.f32.xlu0 %v1536
      %v1538 = vpop.xlane.xlu0 %1537
      %v1539 = vsel %vm1499, %v1496, -inf
      %1540 = vmax.xlane.f32.xlu0 %v1539
      %v1541 = vpop.xlane.xlu0 %1540
      %v1542 = vsel %vm1499, %v1497, -inf
      %1543 = vmax.xlane.f32.xlu0 %v1542
      %v1544 = vpop.xlane.xlu0 %1543
      %v1545 = vsel %vm1499, %v1498, -inf
      %1546 = vmax.xlane.f32.xlu0 %v1545
      %v1547 = vpop.xlane.xlu0 %1546
      %v1548 = vsub.f32 %v1483, %v1502
      %v1549 = vsub.f32 %v1484, %v1505
      %v1550 = vsub.f32 %v1485, %v1508
      %v1551 = vsub.f32 %v1486, %v1511
      %v1552 = vsub.f32 %v1487, %v1514
      %v1553 = vsub.f32 %v1488, %v1517
      %v1554 = vsub.f32 %v1489, %v1520
      %v1555 = vsub.f32 %v1490, %v1523
      %v1556 = vsub.f32 %v1491, %v1526
      %v1557 = vsub.f32 %v1492, %v1529
      %v1558 = vsub.f32 %v1493, %v1532
      %v1559 = vsub.f32 %v1494, %v1535
      %v1560 = vsub.f32 %v1495, %v1538
      %v1561 = vsub.f32 %v1496, %v1541
      %v1562 = vsub.f32 %v1497, %v1544
      %v1563 = vsub.f32 %v1498, %v1547
      %v1564 = vmul.f32 %v1548, 1.442695
      %v1565 = vpow.pop %v1564
      %v1566 = vmul.f32 %v1549, 1.442695
      %v1567 = vpow.pop %v1566
      %v1568 = vmul.f32 %v1550, 1.442695
      %v1569 = vpow.pop %v1568
      %v1570 = vmul.f32 %v1551, 1.442695
      %v1571 = vpow.pop %v1570
      %v1572 = vmul.f32 %v1552, 1.442695
      %v1573 = vpow.pop %v1572
      %v1574 = vmul.f32 %v1553, 1.442695
      %v1575 = vpow.pop %v1574
      %v1576 = vmul.f32 %v1554, 1.442695
      %v1577 = vpow.pop %v1576
      %v1578 = vmul.f32 %v1555, 1.442695
      %v1579 = vpow.pop %v1578
      %v1580 = vmul.f32 %v1556, 1.442695
      %v1581 = vpow.pop %v1580
      %v1582 = vmul.f32 %v1557, 1.442695
      %v1583 = vpow.pop %v1582
      %v1584 = vmul.f32 %v1558, 1.442695
      %v1585 = vpow.pop %v1584
      %v1586 = vmul.f32 %v1559, 1.442695
      %v1587 = vpow.pop %v1586
      %v1588 = vmul.f32 %v1560, 1.442695
      %v1589 = vpow.pop %v1588
      %v1590 = vmul.f32 %v1561, 1.442695
      %v1591 = vpow.pop %v1590
      %v1592 = vmul.f32 %v1562, 1.442695
      %v1593 = vpow.pop %v1592
      %v1594 = vmul.f32 %v1563, 1.442695
      %v1595 = vpow.pop %v1594
      %v1596 = vsel %vm1499, %v1565, 0.0
      %1597 = vadd.xlane.f32.xlu0 %v1596
      %v1598 = vpop.xlane.xlu0 %1597
      %v1599 = vsel %vm1499, %v1567, 0.0
      %1600 = vadd.xlane.f32.xlu0 %v1599
      %v1601 = vpop.xlane.xlu0 %1600
      %v1602 = vsel %vm1499, %v1569, 0.0
      %1603 = vadd.xlane.f32.xlu0 %v1602
      %v1604 = vpop.xlane.xlu0 %1603
      %v1605 = vsel %vm1499, %v1571, 0.0
      %1606 = vadd.xlane.f32.xlu0 %v1605
      %v1607 = vpop.xlane.xlu0 %1606
      %v1608 = vsel %vm1499, %v1573, 0.0
      %1609 = vadd.xlane.f32.xlu0 %v1608
      %v1610 = vpop.xlane.xlu0 %1609
      %v1611 = vsel %vm1499, %v1575, 0.0
      %1612 = vadd.xlane.f32.xlu0 %v1611
      %v1613 = vpop.xlane.xlu0 %1612
      %v1614 = vsel %vm1499, %v1577, 0.0
      %1615 = vadd.xlane.f32.xlu0 %v1614
      %v1616 = vpop.xlane.xlu0 %1615
      %v1617 = vsel %vm1499, %v1579, 0.0
      %1618 = vadd.xlane.f32.xlu0 %v1617
      %v1619 = vpop.xlane.xlu0 %1618
      %v1620 = vsel %vm1499, %v1581, 0.0
      %1621 = vadd.xlane.f32.xlu0 %v1620
      %v1622 = vpop.xlane.xlu0 %1621
      %v1623 = vsel %vm1499, %v1583, 0.0
      %1624 = vadd.xlane.f32.xlu0 %v1623
      %v1625 = vpop.xlane.xlu0 %1624
      %v1626 = vsel %vm1499, %v1585, 0.0
      %1627 = vadd.xlane.f32.xlu0 %v1626
      %v1628 = vpop.xlane.xlu0 %1627
      %v1629 = vsel %vm1499, %v1587, 0.0
      %1630 = vadd.xlane.f32.xlu0 %v1629
      %v1631 = vpop.xlane.xlu0 %1630
      %v1632 = vsel %vm1499, %v1589, 0.0
      %1633 = vadd.xlane.f32.xlu0 %v1632
      %v1634 = vpop.xlane.xlu0 %1633
      %v1635 = vsel %vm1499, %v1591, 0.0
      %1636 = vadd.xlane.f32.xlu0 %v1635
      %v1637 = vpop.xlane.xlu0 %1636
      %v1638 = vsel %vm1499, %v1593, 0.0
      %1639 = vadd.xlane.f32.xlu0 %v1638
      %v1640 = vpop.xlane.xlu0 %1639
      %v1641 = vsel %vm1499, %v1595, 0.0
      %1642 = vadd.xlane.f32.xlu0 %v1641
      %v1643 = vpop.xlane.xlu0 %1642
      %vm1644 = vcmask 15360
      %v1646 = vsel %vm1644, %v1565, 0
      %vm1648 = vcmask 1041408
      %v1650 = vsel %vm1648, %v250, 0
      %1652 = vmatprep.subr.mxu0 0.0
      %1653 = vmatpush1.msra.mxu0 0.0
      %1654 = vmatprep.subr.mxu0 0.0
      %1655 = vmatpush1.msra.mxu0 0.0
      %1656 = vmatprep.subr.mxu0 0.0
      %1657 = vmatpush1.msra.mxu0 0.0
      %1658 = vmatprep.subr.mxu0 0.0
      %1659 = vmatpush1.msra.mxu0 0.0
      %1660 = vmatprep.subr.mxu0 0.0
      %1661 = vmatpush1.msra.mxu0 0.0
      %1662 = vmatprep.subr.mxu0 0.0
      %1663 = vmatpush1.msra.mxu0 0.0
      %1664 = vmatprep.subr.mxu0 0.0
      %1665 = vmatpush1.msra.mxu0 0.0
      %1666 = vmatprep.subr.mxu0 0.0
      %1667 = vmatpush1.msra.mxu0 0.0
      %1668 = vmatprep.subr.mxu0 0.0
      %1669 = vmatpush1.msra.mxu0 0.0
      %1670 = vmatprep.subr.mxu0 0.0
      %1671 = vmatpush1.msra.mxu0 0.0
      %1672 = vmatprep.subr.mxu0 0.0
      %1673 = vmatpush1.msra.mxu0 0.0
      %1674 = vmatprep.subr.mxu0 0.0
      %1675 = vmatpush1.msra.mxu0 0.0
      %1676 = vmatprep.subr.mxu0 0.0
      %1677 = vmatpush1.msra.mxu0 0.0
      %1678 = vmatprep.subr.mxu0 0.0
      %1679 = vmatpush1.msra.mxu0 0.0
      %1680 = vmatprep.subr.mxu0 0.0
      %1681 = vmatpush1.msra.mxu0 0.0
      %1682 = vmatprep.subr.mxu0 0.0
      %1683 = vmatpush1.msra.mxu0 %v1650
      %1684 = vmatprep.subr.mxu0 0.0
      %1685 = vmatpush2.msra.mxu0 0.0
      %1686 = vmatprep.subr.mxu0 0.0
      %1687 = vmatpush2.msra.mxu0 0.0
      %1688 = vmatprep.subr.mxu0 0.0
      %1689 = vmatpush2.msra.mxu0 0.0
      %1690 = vmatprep.subr.mxu0 0.0
      %1691 = vmatpush2.msra.mxu0 0.0
      %1692 = vmatprep.subr.mxu0 0.0
      %1693 = vmatpush2.msra.mxu0 0.0
      %1694 = vmatprep.subr.mxu0 0.0
      %1695 = vmatpush2.msra.mxu0 0.0
      %1696 = vmatprep.subr.mxu0 0.0
      %1697 = vmatpush2.msra.mxu0 0.0
      %1698 = vmatprep.subr.mxu0 0.0
      %1699 = vmatpush2.msra.mxu0 0.0
      %1700 = vmatprep.subr.mxu0 0.0
      %1701 = vmatpush2.msra.mxu0 0.0
      %1702 = vmatprep.subr.mxu0 0.0
      %1703 = vmatpush2.msra.mxu0 0.0
      %1704 = vmatprep.subr.mxu0 0.0
      %1705 = vmatpush2.msra.mxu0 0.0
      %1706 = vmatprep.subr.mxu0 0.0
      %1707 = vmatpush2.msra.mxu0 0.0
      %1708 = vmatprep.subr.mxu0 0.0
      %1709 = vmatpush2.msra.mxu0 0.0
      %1710 = vmatprep.subr.mxu0 0.0
      %1711 = vmatpush2.msra.mxu0 0.0
      %1712 = vmatprep.subr.mxu0 0.0
      %1713 = vmatpush2.msra.mxu0 0.0
      %1714 = vmatprep.subr.mxu0 0.0
      %1715 = vmatpush2.msra.mxu0 0.0
      %1716 = vmatprep.mubr.f32.mxu0 0.0
      %1717 = vmatmul.mubr.f32.gmra.mxu0 %v1646
      %v1718 = vpop.f32.mrf.mxu0
      %v1719 = vadd.f32 0.0, %v1718
      %v1720 = vpop.f32.mrf.mxu0
      %1721 = vdwg.mxu0
      %v1723 = vsel %vm1644, %v1567, 0
      %v1726 = vsel %vm1648, %v251, 0
      %1728 = vmatprep.subr.mxu0 0.0
      %1729 = vmatpush1.msra.mxu0 0.0
      %1730 = vmatprep.subr.mxu0 0.0
      %1731 = vmatpush1.msra.mxu0 0.0
      %1732 = vmatprep.subr.mxu0 0.0
      %1733 = vmatpush1.msra.mxu0 0.0
      %1734 = vmatprep.subr.mxu0 0.0
      %1735 = vmatpush1.msra.mxu0 0.0
      %1736 = vmatprep.subr.mxu0 0.0
      %1737 = vmatpush1.msra.mxu0 0.0
      %1738 = vmatprep.subr.mxu0 0.0
      %1739 = vmatpush1.msra.mxu0 0.0
      %1740 = vmatprep.subr.mxu0 0.0
      %1741 = vmatpush1.msra.mxu0 0.0
      %1742 = vmatprep.subr.mxu0 0.0
      %1743 = vmatpush1.msra.mxu0 0.0
      %1744 = vmatprep.subr.mxu0 0.0
      %1745 = vmatpush1.msra.mxu0 0.0
      %1746 = vmatprep.subr.mxu0 0.0
      %1747 = vmatpush1.msra.mxu0 0.0
      %1748 = vmatprep.subr.mxu0 0.0
      %1749 = vmatpush1.msra.mxu0 0.0
      %1750 = vmatprep.subr.mxu0 0.0
      %1751 = vmatpush1.msra.mxu0 0.0
      %1752 = vmatprep.subr.mxu0 0.0
      %1753 = vmatpush1.msra.mxu0 0.0
      %1754 = vmatprep.subr.mxu0 0.0
      %1755 = vmatpush1.msra.mxu0 0.0
      %1756 = vmatprep.subr.mxu0 0.0
      %1757 = vmatpush1.msra.mxu0 0.0
      %1758 = vmatprep.subr.mxu0 0.0
      %1759 = vmatpush1.msra.mxu0 %v1726
      %1760 = vmatprep.subr.mxu0 0.0
      %1761 = vmatpush2.msra.mxu0 0.0
      %1762 = vmatprep.subr.mxu0 0.0
      %1763 = vmatpush2.msra.mxu0 0.0
      %1764 = vmatprep.subr.mxu0 0.0
      %1765 = vmatpush2.msra.mxu0 0.0
      %1766 = vmatprep.subr.mxu0 0.0
      %1767 = vmatpush2.msra.mxu0 0.0
      %1768 = vmatprep.subr.mxu0 0.0
      %1769 = vmatpush2.msra.mxu0 0.0
      %1770 = vmatprep.subr.mxu0 0.0
      %1771 = vmatpush2.msra.mxu0 0.0
      %1772 = vmatprep.subr.mxu0 0.0
      %1773 = vmatpush2.msra.mxu0 0.0
      %1774 = vmatprep.subr.mxu0 0.0
      %1775 = vmatpush2.msra.mxu0 0.0
      %1776 = vmatprep.subr.mxu0 0.0
      %1777 = vmatpush2.msra.mxu0 0.0
      %1778 = vmatprep.subr.mxu0 0.0
      %1779 = vmatpush2.msra.mxu0 0.0
      %1780 = vmatprep.subr.mxu0 0.0
      %1781 = vmatpush2.msra.mxu0 0.0
      %1782 = vmatprep.subr.mxu0 0.0
      %1783 = vmatpush2.msra.mxu0 0.0
      %1784 = vmatprep.subr.mxu0 0.0
      %1785 = vmatpush2.msra.mxu0 0.0
      %1786 = vmatprep.subr.mxu0 0.0
      %1787 = vmatpush2.msra.mxu0 0.0
      %1788 = vmatprep.subr.mxu0 0.0
      %1789 = vmatpush2.msra.mxu0 0.0
      %1790 = vmatprep.subr.mxu0 0.0
      %1791 = vmatpush2.msra.mxu0 0.0
      %1792 = vmatprep.mubr.f32.mxu0 0.0
      %1793 = vmatmul.mubr.f32.gmra.mxu0 %v1723
      %v1794 = vpop.f32.mrf.mxu0
      %v1795 = vadd.f32 0.0, %v1794
      %v1796 = vpop.f32.mrf.mxu0
      %1797 = vdwg.mxu0
      %v1799 = vsel %vm1644, %v1569, 0
      %v1802 = vsel %vm1648, %v252, 0
      %1804 = vmatprep.subr.mxu0 0.0
      %1805 = vmatpush1.msra.mxu0 0.0
      %1806 = vmatprep.subr.mxu0 0.0
      %1807 = vmatpush1.msra.mxu0 0.0
      %1808 = vmatprep.subr.mxu0 0.0
      %1809 = vmatpush1.msra.mxu0 0.0
      %1810 = vmatprep.subr.mxu0 0.0
      %1811 = vmatpush1.msra.mxu0 0.0
      %1812 = vmatprep.subr.mxu0 0.0
      %1813 = vmatpush1.msra.mxu0 0.0
      %1814 = vmatprep.subr.mxu0 0.0
      %1815 = vmatpush1.msra.mxu0 0.0
      %1816 = vmatprep.subr.mxu0 0.0
      %1817 = vmatpush1.msra.mxu0 0.0
      %1818 = vmatprep.subr.mxu0 0.0
      %1819 = vmatpush1.msra.mxu0 0.0
      %1820 = vmatprep.subr.mxu0 0.0
      %1821 = vmatpush1.msra.mxu0 0.0
      %1822 = vmatprep.subr.mxu0 0.0
      %1823 = vmatpush1.msra.mxu0 0.0
      %1824 = vmatprep.subr.mxu0 0.0
      %1825 = vmatpush1.msra.mxu0 0.0
      %1826 = vmatprep.subr.mxu0 0.0
      %1827 = vmatpush1.msra.mxu0 0.0
      %1828 = vmatprep.subr.mxu0 0.0
      %1829 = vmatpush1.msra.mxu0 0.0
      %1830 = vmatprep.subr.mxu0 0.0
      %1831 = vmatpush1.msra.mxu0 0.0
      %1832 = vmatprep.subr.mxu0 0.0
      %1833 = vmatpush1.msra.mxu0 0.0
      %1834 = vmatprep.subr.mxu0 0.0
      %1835 = vmatpush1.msra.mxu0 %v1802
      %1836 = vmatprep.subr.mxu0 0.0
      %1837 = vmatpush2.msra.mxu0 0.0
      %1838 = vmatprep.subr.mxu0 0.0
      %1839 = vmatpush2.msra.mxu0 0.0
      %1840 = vmatprep.subr.mxu0 0.0
      %1841 = vmatpush2.msra.mxu0 0.0
      %1842 = vmatprep.subr.mxu0 0.0
      %1843 = vmatpush2.msra.mxu0 0.0
      %1844 = vmatprep.subr.mxu0 0.0
      %1845 = vmatpush2.msra.mxu0 0.0
      %1846 = vmatprep.subr.mxu0 0.0
      %1847 = vmatpush2.msra.mxu0 0.0
      %1848 = vmatprep.subr.mxu0 0.0
      %1849 = vmatpush2.msra.mxu0 0.0
      %1850 = vmatprep.subr.mxu0 0.0
      %1851 = vmatpush2.msra.mxu0 0.0
      %1852 = vmatprep.subr.mxu0 0.0
      %1853 = vmatpush2.msra.mxu0 0.0
      %1854 = vmatprep.subr.mxu0 0.0
      %1855 = vmatpush2.msra.mxu0 0.0
      %1856 = vmatprep.subr.mxu0 0.0
      %1857 = vmatpush2.msra.mxu0 0.0
      %1858 = vmatprep.subr.mxu0 0.0
      %1859 = vmatpush2.msra.mxu0 0.0
      %1860 = vmatprep.subr.mxu0 0.0
      %1861 = vmatpush2.msra.mxu0 0.0
      %1862 = vmatprep.subr.mxu0 0.0
      %1863 = vmatpush2.msra.mxu0 0.0
      %1864 = vmatprep.subr.mxu0 0.0
      %1865 = vmatpush2.msra.mxu0 0.0
      %1866 = vmatprep.subr.mxu0 0.0
      %1867 = vmatpush2.msra.mxu0 0.0
      %1868 = vmatprep.mubr.f32.mxu0 0.0
      %1869 = vmatmul.mubr.f32.gmra.mxu0 %v1799
      %v1870 = vpop.f32.mrf.mxu0
      %v1871 = vadd.f32 0.0, %v1870
      %v1872 = vpop.f32.mrf.mxu0
      %1873 = vdwg.mxu0
      %v1875 = vsel %vm1644, %v1571, 0
      %v1878 = vsel %vm1648, %v253, 0
      %1880 = vmatprep.subr.mxu0 0.0
      %1881 = vmatpush1.msra.mxu0 0.0
      %1882 = vmatprep.subr.mxu0 0.0
      %1883 = vmatpush1.msra.mxu0 0.0
      %1884 = vmatprep.subr.mxu0 0.0
      %1885 = vmatpush1.msra.mxu0 0.0
      %1886 = vmatprep.subr.mxu0 0.0
      %1887 = vmatpush1.msra.mxu0 0.0
      %1888 = vmatprep.subr.mxu0 0.0
      %1889 = vmatpush1.msra.mxu0 0.0
      %1890 = vmatprep.subr.mxu0 0.0
      %1891 = vmatpush1.msra.mxu0 0.0
      %1892 = vmatprep.subr.mxu0 0.0
      %1893 = vmatpush1.msra.mxu0 0.0
      %1894 = vmatprep.subr.mxu0 0.0
      %1895 = vmatpush1.msra.mxu0 0.0
      %1896 = vmatprep.subr.mxu0 0.0
      %1897 = vmatpush1.msra.mxu0 0.0
      %1898 = vmatprep.subr.mxu0 0.0
      %1899 = vmatpush1.msra.mxu0 0.0
      %1900 = vmatprep.subr.mxu0 0.0
      %1901 = vmatpush1.msra.mxu0 0.0
      %1902 = vmatprep.subr.mxu0 0.0
      %1903 = vmatpush1.msra.mxu0 0.0
      %1904 = vmatprep.subr.mxu0 0.0
      %1905 = vmatpush1.msra.mxu0 0.0
      %1906 = vmatprep.subr.mxu0 0.0
      %1907 = vmatpush1.msra.mxu0 0.0
      %1908 = vmatprep.subr.mxu0 0.0
      %1909 = vmatpush1.msra.mxu0 0.0
      %1910 = vmatprep.subr.mxu0 0.0
      %1911 = vmatpush1.msra.mxu0 %v1878
      %1912 = vmatprep.subr.mxu0 0.0
      %1913 = vmatpush2.msra.mxu0 0.0
      %1914 = vmatprep.subr.mxu0 0.0
      %1915 = vmatpush2.msra.mxu0 0.0
      %1916 = vmatprep.subr.mxu0 0.0
      %1917 = vmatpush2.msra.mxu0 0.0
      %1918 = vmatprep.subr.mxu0 0.0
      %1919 = vmatpush2.msra.mxu0 0.0
      %1920 = vmatprep.subr.mxu0 0.0
      %1921 = vmatpush2.msra.mxu0 0.0
      %1922 = vmatprep.subr.mxu0 0.0
      %1923 = vmatpush2.msra.mxu0 0.0
      %1924 = vmatprep.subr.mxu0 0.0
      %1925 = vmatpush2.msra.mxu0 0.0
      %1926 = vmatprep.subr.mxu0 0.0
      %1927 = vmatpush2.msra.mxu0 0.0
      %1928 = vmatprep.subr.mxu0 0.0
      %1929 = vmatpush2.msra.mxu0 0.0
      %1930 = vmatprep.subr.mxu0 0.0
      %1931 = vmatpush2.msra.mxu0 0.0
      %1932 = vmatprep.subr.mxu0 0.0
      %1933 = vmatpush2.msra.mxu0 0.0
      %1934 = vmatprep.subr.mxu0 0.0
      %1935 = vmatpush2.msra.mxu0 0.0
      %1936 = vmatprep.subr.mxu0 0.0
      %1937 = vmatpush2.msra.mxu0 0.0
      %1938 = vmatprep.subr.mxu0 0.0
      %1939 = vmatpush2.msra.mxu0 0.0
      %1940 = vmatprep.subr.mxu0 0.0
      %1941 = vmatpush2.msra.mxu0 0.0
      %1942 = vmatprep.subr.mxu0 0.0
      %1943 = vmatpush2.msra.mxu0 0.0
      %1944 = vmatprep.mubr.f32.mxu0 0.0
      %1945 = vmatmul.mubr.f32.gmra.mxu0 %v1875
      %v1946 = vpop.f32.mrf.mxu0
      %v1947 = vadd.f32 0.0, %v1946
      %v1948 = vpop.f32.mrf.mxu0
      %1949 = vdwg.mxu0
      %v1951 = vsel %vm1644, %v1573, 0
      %v1954 = vsel %vm1648, %v254, 0
      %1956 = vmatprep.subr.mxu0 0.0
      %1957 = vmatpush1.msra.mxu0 0.0
      %1958 = vmatprep.subr.mxu0 0.0
      %1959 = vmatpush1.msra.mxu0 0.0
      %1960 = vmatprep.subr.mxu0 0.0
      %1961 = vmatpush1.msra.mxu0 0.0
      %1962 = vmatprep.subr.mxu0 0.0
      %1963 = vmatpush1.msra.mxu0 0.0
      %1964 = vmatprep.subr.mxu0 0.0
      %1965 = vmatpush1.msra.mxu0 0.0
      %1966 = vmatprep.subr.mxu0 0.0
      %1967 = vmatpush1.msra.mxu0 0.0
      %1968 = vmatprep.subr.mxu0 0.0
      %1969 = vmatpush1.msra.mxu0 0.0
      %1970 = vmatprep.subr.mxu0 0.0
      %1971 = vmatpush1.msra.mxu0 0.0
      %1972 = vmatprep.subr.mxu0 0.0
      %1973 = vmatpush1.msra.mxu0 0.0
      %1974 = vmatprep.subr.mxu0 0.0
      %1975 = vmatpush1.msra.mxu0 0.0
      %1976 = vmatprep.subr.mxu0 0.0
      %1977 = vmatpush1.msra.mxu0 0.0
      %1978 = vmatprep.subr.mxu0 0.0
      %1979 = vmatpush1.msra.mxu0 0.0
      %1980 = vmatprep.subr.mxu0 0.0
      %1981 = vmatpush1.msra.mxu0 0.0
      %1982 = vmatprep.subr.mxu0 0.0
      %1983 = vmatpush1.msra.mxu0 0.0
      %1984 = vmatprep.subr.mxu0 0.0
      %1985 = vmatpush1.msra.mxu0 0.0
      %1986 = vmatprep.subr.mxu0 0.0
      %1987 = vmatpush1.msra.mxu0 %v1954
      %1988 = vmatprep.subr.mxu0 0.0
      %1989 = vmatpush2.msra.mxu0 0.0
      %1990 = vmatprep.subr.mxu0 0.0
      %1991 = vmatpush2.msra.mxu0 0.0
      %1992 = vmatprep.subr.mxu0 0.0
      %1993 = vmatpush2.msra.mxu0 0.0
      %1994 = vmatprep.subr.mxu0 0.0
      %1995 = vmatpush2.msra.mxu0 0.0
      %1996 = vmatprep.subr.mxu0 0.0
      %1997 = vmatpush2.msra.mxu0 0.0
      %1998 = vmatprep.subr.mxu0 0.0
      %1999 = vmatpush2.msra.mxu0 0.0
      %2000 = vmatprep.subr.mxu0 0.0
      %2001 = vmatpush2.msra.mxu0 0.0
      %2002 = vmatprep.subr.mxu0 0.0
      %2003 = vmatpush2.msra.mxu0 0.0
      %2004 = vmatprep.subr.mxu0 0.0
      %2005 = vmatpush2.msra.mxu0 0.0
      %2006 = vmatprep.subr.mxu0 0.0
      %2007 = vmatpush2.msra.mxu0 0.0
      %2008 = vmatprep.subr.mxu0 0.0
      %2009 = vmatpush2.msra.mxu0 0.0
      %2010 = vmatprep.subr.mxu0 0.0
      %2011 = vmatpush2.msra.mxu0 0.0
      %2012 = vmatprep.subr.mxu0 0.0
      %2013 = vmatpush2.msra.mxu0 0.0
      %2014 = vmatprep.subr.mxu0 0.0
      %2015 = vmatpush2.msra.mxu0 0.0
      %2016 = vmatprep.subr.mxu0 0.0
      %2017 = vmatpush2.msra.mxu0 0.0
      %2018 = vmatprep.subr.mxu0 0.0
      %2019 = vmatpush2.msra.mxu0 0.0
      %2020 = vmatprep.mubr.f32.mxu0 0.0
      %2021 = vmatmul.mubr.f32.gmra.mxu0 %v1951
      %v2022 = vpop.f32.mrf.mxu0
      %v2023 = vadd.f32 0.0, %v2022
      %v2024 = vpop.f32.mrf.mxu0
      %2025 = vdwg.mxu0
      %v2027 = vsel %vm1644, %v1575, 0
      %v2030 = vsel %vm1648, %v255, 0
      %2032 = vmatprep.subr.mxu0 0.0
      %2033 = vmatpush1.msra.mxu0 0.0
      %2034 = vmatprep.subr.mxu0 0.0
      %2035 = vmatpush1.msra.mxu0 0.0
      %2036 = vmatprep.subr.mxu0 0.0
      %2037 = vmatpush1.msra.mxu0 0.0
      %2038 = vmatprep.subr.mxu0 0.0
      %2039 = vmatpush1.msra.mxu0 0.0
      %2040 = vmatprep.subr.mxu0 0.0
      %2041 = vmatpush1.msra.mxu0 0.0
      %2042 = vmatprep.subr.mxu0 0.0
      %2043 = vmatpush1.msra.mxu0 0.0
      %2044 = vmatprep.subr.mxu0 0.0
      %2045 = vmatpush1.msra.mxu0 0.0
      %2046 = vmatprep.subr.mxu0 0.0
      %2047 = vmatpush1.msra.mxu0 0.0
      %2048 = vmatprep.subr.mxu0 0.0
      %2049 = vmatpush1.msra.mxu0 0.0
      %2050 = vmatprep.subr.mxu0 0.0
      %2051 = vmatpush1.msra.mxu0 0.0
      %2052 = vmatprep.subr.mxu0 0.0
      %2053 = vmatpush1.msra.mxu0 0.0
      %2054 = vmatprep.subr.mxu0 0.0
      %2055 = vmatpush1.msra.mxu0 0.0
      %2056 = vmatprep.subr.mxu0 0.0
      %2057 = vmatpush1.msra.mxu0 0.0
      %2058 = vmatprep.subr.mxu0 0.0
      %2059 = vmatpush1.msra.mxu0 0.0
      %2060 = vmatprep.subr.mxu0 0.0
      %2061 = vmatpush1.msra.mxu0 0.0
      %2062 = vmatprep.subr.mxu0 0.0
      %2063 = vmatpush1.msra.mxu0 %v2030
      %2064 = vmatprep.subr.mxu0 0.0
      %2065 = vmatpush2.msra.mxu0 0.0
      %2066 = vmatprep.subr.mxu0 0.0
      %2067 = vmatpush2.msra.mxu0 0.0
      %2068 = vmatprep.subr.mxu0 0.0
      %2069 = vmatpush2.msra.mxu0 0.0
      %2070 = vmatprep.subr.mxu0 0.0
      %2071 = vmatpush2.msra.mxu0 0.0
      %2072 = vmatprep.subr.mxu0 0.0
      %2073 = vmatpush2.msra.mxu0 0.0
      %2074 = vmatprep.subr.mxu0 0.0
      %2075 = vmatpush2.msra.mxu0 0.0
      %2076 = vmatprep.subr.mxu0 0.0
      %2077 = vmatpush2.msra.mxu0 0.0
      %2078 = vmatprep.subr.mxu0 0.0
      %2079 = vmatpush2.msra.mxu0 0.0
      %2080 = vmatprep.subr.mxu0 0.0
      %2081 = vmatpush2.msra.mxu0 0.0
      %2082 = vmatprep.subr.mxu0 0.0
      %2083 = vmatpush2.msra.mxu0 0.0
      %2084 = vmatprep.subr.mxu0 0.0
      %2085 = vmatpush2.msra.mxu0 0.0
      %2086 = vmatprep.subr.mxu0 0.0
      %2087 = vmatpush2.msra.mxu0 0.0
      %2088 = vmatprep.subr.mxu0 0.0
      %2089 = vmatpush2.msra.mxu0 0.0
      %2090 = vmatprep.subr.mxu0 0.0
      %2091 = vmatpush2.msra.mxu0 0.0
      %2092 = vmatprep.subr.mxu0 0.0
      %2093 = vmatpush2.msra.mxu0 0.0
      %2094 = vmatprep.subr.mxu0 0.0
      %2095 = vmatpush2.msra.mxu0 0.0
      %2096 = vmatprep.mubr.f32.mxu0 0.0
      %2097 = vmatmul.mubr.f32.gmra.mxu0 %v2027
      %v2098 = vpop.f32.mrf.mxu0
      %v2099 = vadd.f32 0.0, %v2098
      %v2100 = vpop.f32.mrf.mxu0
      %2101 = vdwg.mxu0
      %v2103 = vsel %vm1644, %v1577, 0
      %v2106 = vsel %vm1648, %v256, 0
      %2108 = vmatprep.subr.mxu0 0.0
      %2109 = vmatpush1.msra.mxu0 0.0
      %2110 = vmatprep.subr.mxu0 0.0
      %2111 = vmatpush1.msra.mxu0 0.0
      %2112 = vmatprep.subr.mxu0 0.0
      %2113 = vmatpush1.msra.mxu0 0.0
      %2114 = vmatprep.subr.mxu0 0.0
      %2115 = vmatpush1.msra.mxu0 0.0
      %2116 = vmatprep.subr.mxu0 0.0
      %2117 = vmatpush1.msra.mxu0 0.0
      %2118 = vmatprep.subr.mxu0 0.0
      %2119 = vmatpush1.msra.mxu0 0.0
      %2120 = vmatprep.subr.mxu0 0.0
      %2121 = vmatpush1.msra.mxu0 0.0
      %2122 = vmatprep.subr.mxu0 0.0
      %2123 = vmatpush1.msra.mxu0 0.0
      %2124 = vmatprep.subr.mxu0 0.0
      %2125 = vmatpush1.msra.mxu0 0.0
      %2126 = vmatprep.subr.mxu0 0.0
      %2127 = vmatpush1.msra.mxu0 0.0
      %2128 = vmatprep.subr.mxu0 0.0
      %2129 = vmatpush1.msra.mxu0 0.0
      %2130 = vmatprep.subr.mxu0 0.0
      %2131 = vmatpush1.msra.mxu0 0.0
      %2132 = vmatprep.subr.mxu0 0.0
      %2133 = vmatpush1.msra.mxu0 0.0
      %2134 = vmatprep.subr.mxu0 0.0
      %2135 = vmatpush1.msra.mxu0 0.0
      %2136 = vmatprep.subr.mxu0 0.0
      %2137 = vmatpush1.msra.mxu0 0.0
      %2138 = vmatprep.subr.mxu0 0.0
      %2139 = vmatpush1.msra.mxu0 %v2106
      %2140 = vmatprep.subr.mxu0 0.0
      %2141 = vmatpush2.msra.mxu0 0.0
      %2142 = vmatprep.subr.mxu0 0.0
      %2143 = vmatpush2.msra.mxu0 0.0
      %2144 = vmatprep.subr.mxu0 0.0
      %2145 = vmatpush2.msra.mxu0 0.0
      %2146 = vmatprep.subr.mxu0 0.0
      %2147 = vmatpush2.msra.mxu0 0.0
      %2148 = vmatprep.subr.mxu0 0.0
      %2149 = vmatpush2.msra.mxu0 0.0
      %2150 = vmatprep.subr.mxu0 0.0
      %2151 = vmatpush2.msra.mxu0 0.0
      %2152 = vmatprep.subr.mxu0 0.0
      %2153 = vmatpush2.msra.mxu0 0.0
      %2154 = vmatprep.subr.mxu0 0.0
      %2155 = vmatpush2.msra.mxu0 0.0
      %2156 = vmatprep.subr.mxu0 0.0
      %2157 = vmatpush2.msra.mxu0 0.0
      %2158 = vmatprep.subr.mxu0 0.0
      %2159 = vmatpush2.msra.mxu0 0.0
      %2160 = vmatprep.subr.mxu0 0.0
      %2161 = vmatpush2.msra.mxu0 0.0
      %2162 = vmatprep.subr.mxu0 0.0
      %2163 = vmatpush2.msra.mxu0 0.0
      %2164 = vmatprep.subr.mxu0 0.0
      %2165 = vmatpush2.msra.mxu0 0.0
      %2166 = vmatprep.subr.mxu0 0.0
      %2167 = vmatpush2.msra.mxu0 0.0
      %2168 = vmatprep.subr.mxu0 0.0
      %2169 = vmatpush2.msra.mxu0 0.0
      %2170 = vmatprep.subr.mxu0 0.0
      %2171 = vmatpush2.msra.mxu0 0.0
      %2172 = vmatprep.mubr.f32.mxu0 0.0
      %2173 = vmatmul.mubr.f32.gmra.mxu0 %v2103
      %v2174 = vpop.f32.mrf.mxu0
      %v2175 = vadd.f32 0.0, %v2174
      %v2176 = vpop.f32.mrf.mxu0
      %2177 = vdwg.mxu0
      %v2179 = vsel %vm1644, %v1579, 0
      %v2182 = vsel %vm1648, %v257, 0
      %2184 = vmatprep.subr.mxu0 0.0
      %2185 = vmatpush1.msra.mxu0 0.0
      %2186 = vmatprep.subr.mxu0 0.0
      %2187 = vmatpush1.msra.mxu0 0.0
      %2188 = vmatprep.subr.mxu0 0.0
      %2189 = vmatpush1.msra.mxu0 0.0
      %2190 = vmatprep.subr.mxu0 0.0
      %2191 = vmatpush1.msra.mxu0 0.0
      %2192 = vmatprep.subr.mxu0 0.0
      %2193 = vmatpush1.msra.mxu0 0.0
      %2194 = vmatprep.subr.mxu0 0.0
      %2195 = vmatpush1.msra.mxu0 0.0
      %2196 = vmatprep.subr.mxu0 0.0
      %2197 = vmatpush1.msra.mxu0 0.0
      %2198 = vmatprep.subr.mxu0 0.0
      %2199 = vmatpush1.msra.mxu0 0.0
      %2200 = vmatprep.subr.mxu0 0.0
      %2201 = vmatpush1.msra.mxu0 0.0
      %2202 = vmatprep.subr.mxu0 0.0
      %2203 = vmatpush1.msra.mxu0 0.0
      %2204 = vmatprep.subr.mxu0 0.0
      %2205 = vmatpush1.msra.mxu0 0.0
      %2206 = vmatprep.subr.mxu0 0.0
      %2207 = vmatpush1.msra.mxu0 0.0
      %2208 = vmatprep.subr.mxu0 0.0
      %2209 = vmatpush1.msra.mxu0 0.0
      %2210 = vmatprep.subr.mxu0 0.0
      %2211 = vmatpush1.msra.mxu0 0.0
      %2212 = vmatprep.subr.mxu0 0.0
      %2213 = vmatpush1.msra.mxu0 0.0
      %2214 = vmatprep.subr.mxu0 0.0
      %2215 = vmatpush1.msra.mxu0 %v2182
      %2216 = vmatprep.subr.mxu0 0.0
      %2217 = vmatpush2.msra.mxu0 0.0
      %2218 = vmatprep.subr.mxu0 0.0
      %2219 = vmatpush2.msra.mxu0 0.0
      %2220 = vmatprep.subr.mxu0 0.0
      %2221 = vmatpush2.msra.mxu0 0.0
      %2222 = vmatprep.subr.mxu0 0.0
      %2223 = vmatpush2.msra.mxu0 0.0
      %2224 = vmatprep.subr.mxu0 0.0
      %2225 = vmatpush2.msra.mxu0 0.0
      %2226 = vmatprep.subr.mxu0 0.0
      %2227 = vmatpush2.msra.mxu0 0.0
      %2228 = vmatprep.subr.mxu0 0.0
      %2229 = vmatpush2.msra.mxu0 0.0
      %2230 = vmatprep.subr.mxu0 0.0
      %2231 = vmatpush2.msra.mxu0 0.0
      %2232 = vmatprep.subr.mxu0 0.0
      %2233 = vmatpush2.msra.mxu0 0.0
      %2234 = vmatprep.subr.mxu0 0.0
      %2235 = vmatpush2.msra.mxu0 0.0
      %2236 = vmatprep.subr.mxu0 0.0
      %2237 = vmatpush2.msra.mxu0 0.0
      %2238 = vmatprep.subr.mxu0 0.0
      %2239 = vmatpush2.msra.mxu0 0.0
      %2240 = vmatprep.subr.mxu0 0.0
      %2241 = vmatpush2.msra.mxu0 0.0
      %2242 = vmatprep.subr.mxu0 0.0
      %2243 = vmatpush2.msra.mxu0 0.0
      %2244 = vmatprep.subr.mxu0 0.0
      %2245 = vmatpush2.msra.mxu0 0.0
      %2246 = vmatprep.subr.mxu0 0.0
      %2247 = vmatpush2.msra.mxu0 0.0
      %2248 = vmatprep.mubr.f32.mxu0 0.0
      %2249 = vmatmul.mubr.f32.gmra.mxu0 %v2179
      %v2250 = vpop.f32.mrf.mxu0
      %v2251 = vadd.f32 0.0, %v2250
      %v2252 = vpop.f32.mrf.mxu0
      %2253 = vdwg.mxu0
      %v2255 = vsel %vm1644, %v1581, 0
      %v2258 = vsel %vm1648, %v258, 0
      %2260 = vmatprep.subr.mxu0 0.0
      %2261 = vmatpush1.msra.mxu0 0.0
      %2262 = vmatprep.subr.mxu0 0.0
      %2263 = vmatpush1.msra.mxu0 0.0
      %2264 = vmatprep.subr.mxu0 0.0
      %2265 = vmatpush1.msra.mxu0 0.0
      %2266 = vmatprep.subr.mxu0 0.0
      %2267 = vmatpush1.msra.mxu0 0.0
      %2268 = vmatprep.subr.mxu0 0.0
      %2269 = vmatpush1.msra.mxu0 0.0
      %2270 = vmatprep.subr.mxu0 0.0
      %2271 = vmatpush1.msra.mxu0 0.0
      %2272 = vmatprep.subr.mxu0 0.0
      %2273 = vmatpush1.msra.mxu0 0.0
      %2274 = vmatprep.subr.mxu0 0.0
      %2275 = vmatpush1.msra.mxu0 0.0
      %2276 = vmatprep.subr.mxu0 0.0
      %2277 = vmatpush1.msra.mxu0 0.0
      %2278 = vmatprep.subr.mxu0 0.0
      %2279 = vmatpush1.msra.mxu0 0.0
      %2280 = vmatprep.subr.mxu0 0.0
      %2281 = vmatpush1.msra.mxu0 0.0
      %2282 = vmatprep.subr.mxu0 0.0
      %2283 = vmatpush1.msra.mxu0 0.0
      %2284 = vmatprep.subr.mxu0 0.0
      %2285 = vmatpush1.msra.mxu0 0.0
      %2286 = vmatprep.subr.mxu0 0.0
      %2287 = vmatpush1.msra.mxu0 0.0
      %2288 = vmatprep.subr.mxu0 0.0
      %2289 = vmatpush1.msra.mxu0 0.0
      %2290 = vmatprep.subr.mxu0 0.0
      %2291 = vmatpush1.msra.mxu0 %v2258
      %2292 = vmatprep.subr.mxu0 0.0
      %2293 = vmatpush2.msra.mxu0 0.0
      %2294 = vmatprep.subr.mxu0 0.0
      %2295 = vmatpush2.msra.mxu0 0.0
      %2296 = vmatprep.subr.mxu0 0.0
      %2297 = vmatpush2.msra.mxu0 0.0
      %2298 = vmatprep.subr.mxu0 0.0
      %2299 = vmatpush2.msra.mxu0 0.0
      %2300 = vmatprep.subr.mxu0 0.0
      %2301 = vmatpush2.msra.mxu0 0.0
      %2302 = vmatprep.subr.mxu0 0.0
      %2303 = vmatpush2.msra.mxu0 0.0
      %2304 = vmatprep.subr.mxu0 0.0
      %2305 = vmatpush2.msra.mxu0 0.0
      %2306 = vmatprep.subr.mxu0 0.0
      %2307 = vmatpush2.msra.mxu0 0.0
      %2308 = vmatprep.subr.mxu0 0.0
      %2309 = vmatpush2.msra.mxu0 0.0
      %2310 = vmatprep.subr.mxu0 0.0
      %2311 = vmatpush2.msra.mxu0 0.0
      %2312 = vmatprep.subr.mxu0 0.0
      %2313 = vmatpush2.msra.mxu0 0.0
      %2314 = vmatprep.subr.mxu0 0.0
      %2315 = vmatpush2.msra.mxu0 0.0
      %2316 = vmatprep.subr.mxu0 0.0
      %2317 = vmatpush2.msra.mxu0 0.0
      %2318 = vmatprep.subr.mxu0 0.0
      %2319 = vmatpush2.msra.mxu0 0.0
      %2320 = vmatprep.subr.mxu0 0.0
      %2321 = vmatpush2.msra.mxu0 0.0
      %2322 = vmatprep.subr.mxu0 0.0
      %2323 = vmatpush2.msra.mxu0 0.0
      %2324 = vmatprep.mubr.f32.mxu0 0.0
      %2325 = vmatmul.mubr.f32.gmra.mxu0 %v2255
      %v2326 = vpop.f32.mrf.mxu0
      %v2327 = vadd.f32 0.0, %v2326
      %v2328 = vpop.f32.mrf.mxu0
      %2329 = vdwg.mxu0
      %v2331 = vsel %vm1644, %v1583, 0
      %v2334 = vsel %vm1648, %v259, 0
      %2336 = vmatprep.subr.mxu0 0.0
      %2337 = vmatpush1.msra.mxu0 0.0
      %2338 = vmatprep.subr.mxu0 0.0
      %2339 = vmatpush1.msra.mxu0 0.0
      %2340 = vmatprep.subr.mxu0 0.0
      %2341 = vmatpush1.msra.mxu0 0.0
      %2342 = vmatprep.subr.mxu0 0.0
      %2343 = vmatpush1.msra.mxu0 0.0
      %2344 = vmatprep.subr.mxu0 0.0
      %2345 = vmatpush1.msra.mxu0 0.0
      %2346 = vmatprep.subr.mxu0 0.0
      %2347 = vmatpush1.msra.mxu0 0.0
      %2348 = vmatprep.subr.mxu0 0.0
      %2349 = vmatpush1.msra.mxu0 0.0
      %2350 = vmatprep.subr.mxu0 0.0
      %2351 = vmatpush1.msra.mxu0 0.0
      %2352 = vmatprep.subr.mxu0 0.0
      %2353 = vmatpush1.msra.mxu0 0.0
      %2354 = vmatprep.subr.mxu0 0.0
      %2355 = vmatpush1.msra.mxu0 0.0
      %2356 = vmatprep.subr.mxu0 0.0
      %2357 = vmatpush1.msra.mxu0 0.0
      %2358 = vmatprep.subr.mxu0 0.0
      %2359 = vmatpush1.msra.mxu0 0.0
      %2360 = vmatprep.subr.mxu0 0.0
      %2361 = vmatpush1.msra.mxu0 0.0
      %2362 = vmatprep.subr.mxu0 0.0
      %2363 = vmatpush1.msra.mxu0 0.0
      %2364 = vmatprep.subr.mxu0 0.0
      %2365 = vmatpush1.msra.mxu0 0.0
      %2366 = vmatprep.subr.mxu0 0.0
      %2367 = vmatpush1.msra.mxu0 %v2334
      %2368 = vmatprep.subr.mxu0 0.0
      %2369 = vmatpush2.msra.mxu0 0.0
      %2370 = vmatprep.subr.mxu0 0.0
      %2371 = vmatpush2.msra.mxu0 0.0
      %2372 = vmatprep.subr.mxu0 0.0
      %2373 = vmatpush2.msra.mxu0 0.0
      %2374 = vmatprep.subr.mxu0 0.0
      %2375 = vmatpush2.msra.mxu0 0.0
      %2376 = vmatprep.subr.mxu0 0.0
      %2377 = vmatpush2.msra.mxu0 0.0
      %2378 = vmatprep.subr.mxu0 0.0
      %2379 = vmatpush2.msra.mxu0 0.0
      %2380 = vmatprep.subr.mxu0 0.0
      %2381 = vmatpush2.msra.mxu0 0.0
      %2382 = vmatprep.subr.mxu0 0.0
      %2383 = vmatpush2.msra.mxu0 0.0
      %2384 = vmatprep.subr.mxu0 0.0
      %2385 = vmatpush2.msra.mxu0 0.0
      %2386 = vmatprep.subr.mxu0 0.0
      %2387 = vmatpush2.msra.mxu0 0.0
      %2388 = vmatprep.subr.mxu0 0.0
      %2389 = vmatpush2.msra.mxu0 0.0
      %2390 = vmatprep.subr.mxu0 0.0
      %2391 = vmatpush2.msra.mxu0 0.0
      %2392 = vmatprep.subr.mxu0 0.0
      %2393 = vmatpush2.msra.mxu0 0.0
      %2394 = vmatprep.subr.mxu0 0.0
      %2395 = vmatpush2.msra.mxu0 0.0
      %2396 = vmatprep.subr.mxu0 0.0
      %2397 = vmatpush2.msra.mxu0 0.0
      %2398 = vmatprep.subr.mxu0 0.0
      %2399 = vmatpush2.msra.mxu0 0.0
      %2400 = vmatprep.mubr.f32.mxu0 0.0
      %2401 = vmatmul.mubr.f32.gmra.mxu0 %v2331
      %v2402 = vpop.f32.mrf.mxu0
      %v2403 = vadd.f32 0.0, %v2402
      %v2404 = vpop.f32.mrf.mxu0
      %2405 = vdwg.mxu0
      %v2407 = vsel %vm1644, %v1585, 0
      %v2410 = vsel %vm1648, %v260, 0
      %2412 = vmatprep.subr.mxu0 0.0
      %2413 = vmatpush1.msra.mxu0 0.0
      %2414 = vmatprep.subr.mxu0 0.0
      %2415 = vmatpush1.msra.mxu0 0.0
      %2416 = vmatprep.subr.mxu0 0.0
      %2417 = vmatpush1.msra.mxu0 0.0
      %2418 = vmatprep.subr.mxu0 0.0
      %2419 = vmatpush1.msra.mxu0 0.0
      %2420 = vmatprep.subr.mxu0 0.0
      %2421 = vmatpush1.msra.mxu0 0.0
      %2422 = vmatprep.subr.mxu0 0.0
      %2423 = vmatpush1.msra.mxu0 0.0
      %2424 = vmatprep.subr.mxu0 0.0
      %2425 = vmatpush1.msra.mxu0 0.0
      %2426 = vmatprep.subr.mxu0 0.0
      %2427 = vmatpush1.msra.mxu0 0.0
      %2428 = vmatprep.subr.mxu0 0.0
      %2429 = vmatpush1.msra.mxu0 0.0
      %2430 = vmatprep.subr.mxu0 0.0
      %2431 = vmatpush1.msra.mxu0 0.0
      %2432 = vmatprep.subr.mxu0 0.0
      %2433 = vmatpush1.msra.mxu0 0.0
      %2434 = vmatprep.subr.mxu0 0.0
      %2435 = vmatpush1.msra.mxu0 0.0
      %2436 = vmatprep.subr.mxu0 0.0
      %2437 = vmatpush1.msra.mxu0 0.0
      %2438 = vmatprep.subr.mxu0 0.0
      %2439 = vmatpush1.msra.mxu0 0.0
      %2440 = vmatprep.subr.mxu0 0.0
      %2441 = vmatpush1.msra.mxu0 0.0
      %2442 = vmatprep.subr.mxu0 0.0
      %2443 = vmatpush1.msra.mxu0 %v2410
      %2444 = vmatprep.subr.mxu0 0.0
      %2445 = vmatpush2.msra.mxu0 0.0
      %2446 = vmatprep.subr.mxu0 0.0
      %2447 = vmatpush2.msra.mxu0 0.0
      %2448 = vmatprep.subr.mxu0 0.0
      %2449 = vmatpush2.msra.mxu0 0.0
      %2450 = vmatprep.subr.mxu0 0.0
      %2451 = vmatpush2.msra.mxu0 0.0
      %2452 = vmatprep.subr.mxu0 0.0
      %2453 = vmatpush2.msra.mxu0 0.0
      %2454 = vmatprep.subr.mxu0 0.0
      %2455 = vmatpush2.msra.mxu0 0.0
      %2456 = vmatprep.subr.mxu0 0.0
      %2457 = vmatpush2.msra.mxu0 0.0
      %2458 = vmatprep.subr.mxu0 0.0
      %2459 = vmatpush2.msra.mxu0 0.0
      %2460 = vmatprep.subr.mxu0 0.0
      %2461 = vmatpush2.msra.mxu0 0.0
      %2462 = vmatprep.subr.mxu0 0.0
      %2463 = vmatpush2.msra.mxu0 0.0
      %2464 = vmatprep.subr.mxu0 0.0
      %2465 = vmatpush2.msra.mxu0 0.0
      %2466 = vmatprep.subr.mxu0 0.0
      %2467 = vmatpush2.msra.mxu0 0.0
      %2468 = vmatprep.subr.mxu0 0.0
      %2469 = vmatpush2.msra.mxu0 0.0
      %2470 = vmatprep.subr.mxu0 0.0
      %2471 = vmatpush2.msra.mxu0 0.0
      %2472 = vmatprep.subr.mxu0 0.0
      %2473 = vmatpush2.msra.mxu0 0.0
      %2474 = vmatprep.subr.mxu0 0.0
      %2475 = vmatpush2.msra.mxu0 0.0
      %2476 = vmatprep.mubr.f32.mxu0 0.0
      %2477 = vmatmul.mubr.f32.gmra.mxu0 %v2407
      %v2478 = vpop.f32.mrf.mxu0
      %v2479 = vadd.f32 0.0, %v2478
      %v2480 = vpop.f32.mrf.mxu0
      %2481 = vdwg.mxu0
      %v2483 = vsel %vm1644, %v1587, 0
      %v2486 = vsel %vm1648, %v261, 0
      %2488 = vmatprep.subr.mxu0 0.0
      %2489 = vmatpush1.msra.mxu0 0.0
      %2490 = vmatprep.subr.mxu0 0.0
      %2491 = vmatpush1.msra.mxu0 0.0
      %2492 = vmatprep.subr.mxu0 0.0
      %2493 = vmatpush1.msra.mxu0 0.0
      %2494 = vmatprep.subr.mxu0 0.0
      %2495 = vmatpush1.msra.mxu0 0.0
      %2496 = vmatprep.subr.mxu0 0.0
      %2497 = vmatpush1.msra.mxu0 0.0
      %2498 = vmatprep.subr.mxu0 0.0
      %2499 = vmatpush1.msra.mxu0 0.0
      %2500 = vmatprep.subr.mxu0 0.0
      %2501 = vmatpush1.msra.mxu0 0.0
      %2502 = vmatprep.subr.mxu0 0.0
      %2503 = vmatpush1.msra.mxu0 0.0
      %2504 = vmatprep.subr.mxu0 0.0
      %2505 = vmatpush1.msra.mxu0 0.0
      %2506 = vmatprep.subr.mxu0 0.0
      %2507 = vmatpush1.msra.mxu0 0.0
      %2508 = vmatprep.subr.mxu0 0.0
      %2509 = vmatpush1.msra.mxu0 0.0
      %2510 = vmatprep.subr.mxu0 0.0
      %2511 = vmatpush1.msra.mxu0 0.0
      %2512 = vmatprep.subr.mxu0 0.0
      %2513 = vmatpush1.msra.mxu0 0.0
      %2514 = vmatprep.subr.mxu0 0.0
      %2515 = vmatpush1.msra.mxu0 0.0
      %2516 = vmatprep.subr.mxu0 0.0
      %2517 = vmatpush1.msra.mxu0 0.0
      %2518 = vmatprep.subr.mxu0 0.0
      %2519 = vmatpush1.msra.mxu0 %v2486
      %2520 = vmatprep.subr.mxu0 0.0
      %2521 = vmatpush2.msra.mxu0 0.0
      %2522 = vmatprep.subr.mxu0 0.0
      %2523 = vmatpush2.msra.mxu0 0.0
      %2524 = vmatprep.subr.mxu0 0.0
      %2525 = vmatpush2.msra.mxu0 0.0
      %2526 = vmatprep.subr.mxu0 0.0
      %2527 = vmatpush2.msra.mxu0 0.0
      %2528 = vmatprep.subr.mxu0 0.0
      %2529 = vmatpush2.msra.mxu0 0.0
      %2530 = vmatprep.subr.mxu0 0.0
      %2531 = vmatpush2.msra.mxu0 0.0
      %2532 = vmatprep.subr.mxu0 0.0
      %2533 = vmatpush2.msra.mxu0 0.0
      %2534 = vmatprep.subr.mxu0 0.0
      %2535 = vmatpush2.msra.mxu0 0.0
      %2536 = vmatprep.subr.mxu0 0.0
      %2537 = vmatpush2.msra.mxu0 0.0
      %2538 = vmatprep.subr.mxu0 0.0
      %2539 = vmatpush2.msra.mxu0 0.0
      %2540 = vmatprep.subr.mxu0 0.0
      %2541 = vmatpush2.msra.mxu0 0.0
      %2542 = vmatprep.subr.mxu0 0.0
      %2543 = vmatpush2.msra.mxu0 0.0
      %2544 = vmatprep.subr.mxu0 0.0
      %2545 = vmatpush2.msra.mxu0 0.0
      %2546 = vmatprep.subr.mxu0 0.0
      %2547 = vmatpush2.msra.mxu0 0.0
      %2548 = vmatprep.subr.mxu0 0.0
      %2549 = vmatpush2.msra.mxu0 0.0
      %2550 = vmatprep.subr.mxu0 0.0
      %2551 = vmatpush2.msra.mxu0 0.0
      %2552 = vmatprep.mubr.f32.mxu0 0.0
      %2553 = vmatmul.mubr.f32.gmra.mxu0 %v2483
      %v2554 = vpop.f32.mrf.mxu0
      %v2555 = vadd.f32 0.0, %v2554
      %v2556 = vpop.f32.mrf.mxu0
      %2557 = vdwg.mxu0
      %v2559 = vsel %vm1644, %v1589, 0
      %v2562 = vsel %vm1648, %v262, 0
      %2564 = vmatprep.subr.mxu0 0.0
      %2565 = vmatpush1.msra.mxu0 0.0
      %2566 = vmatprep.subr.mxu0 0.0
      %2567 = vmatpush1.msra.mxu0 0.0
      %2568 = vmatprep.subr.mxu0 0.0
      %2569 = vmatpush1.msra.mxu0 0.0
      %2570 = vmatprep.subr.mxu0 0.0
      %2571 = vmatpush1.msra.mxu0 0.0
      %2572 = vmatprep.subr.mxu0 0.0
      %2573 = vmatpush1.msra.mxu0 0.0
      %2574 = vmatprep.subr.mxu0 0.0
      %2575 = vmatpush1.msra.mxu0 0.0
      %2576 = vmatprep.subr.mxu0 0.0
      %2577 = vmatpush1.msra.mxu0 0.0
      %2578 = vmatprep.subr.mxu0 0.0
      %2579 = vmatpush1.msra.mxu0 0.0
      %2580 = vmatprep.subr.mxu0 0.0
      %2581 = vmatpush1.msra.mxu0 0.0
      %2582 = vmatprep.subr.mxu0 0.0
      %2583 = vmatpush1.msra.mxu0 0.0
      %2584 = vmatprep.subr.mxu0 0.0
      %2585 = vmatpush1.msra.mxu0 0.0
      %2586 = vmatprep.subr.mxu0 0.0
      %2587 = vmatpush1.msra.mxu0 0.0
      %2588 = vmatprep.subr.mxu0 0.0
      %2589 = vmatpush1.msra.mxu0 0.0
      %2590 = vmatprep.subr.mxu0 0.0
      %2591 = vmatpush1.msra.mxu0 0.0
      %2592 = vmatprep.subr.mxu0 0.0
      %2593 = vmatpush1.msra.mxu0 0.0
      %2594 = vmatprep.subr.mxu0 0.0
      %2595 = vmatpush1.msra.mxu0 %v2562
      %2596 = vmatprep.subr.mxu0 0.0
      %2597 = vmatpush2.msra.mxu0 0.0
      %2598 = vmatprep.subr.mxu0 0.0
      %2599 = vmatpush2.msra.mxu0 0.0
      %2600 = vmatprep.subr.mxu0 0.0
      %2601 = vmatpush2.msra.mxu0 0.0
      %2602 = vmatprep.subr.mxu0 0.0
      %2603 = vmatpush2.msra.mxu0 0.0
      %2604 = vmatprep.subr.mxu0 0.0
      %2605 = vmatpush2.msra.mxu0 0.0
      %2606 = vmatprep.subr.mxu0 0.0
      %2607 = vmatpush2.msra.mxu0 0.0
      %2608 = vmatprep.subr.mxu0 0.0
      %2609 = vmatpush2.msra.mxu0 0.0
      %2610 = vmatprep.subr.mxu0 0.0
      %2611 = vmatpush2.msra.mxu0 0.0
      %2612 = vmatprep.subr.mxu0 0.0
      %2613 = vmatpush2.msra.mxu0 0.0
      %2614 = vmatprep.subr.mxu0 0.0
      %2615 = vmatpush2.msra.mxu0 0.0
      %2616 = vmatprep.subr.mxu0 0.0
      %2617 = vmatpush2.msra.mxu0 0.0
      %2618 = vmatprep.subr.mxu0 0.0
      %2619 = vmatpush2.msra.mxu0 0.0
      %2620 = vmatprep.subr.mxu0 0.0
      %2621 = vmatpush2.msra.mxu0 0.0
      %2622 = vmatprep.subr.mxu0 0.0
      %2623 = vmatpush2.msra.mxu0 0.0
      %2624 = vmatprep.subr.mxu0 0.0
      %2625 = vmatpush2.msra.mxu0 0.0
      %2626 = vmatprep.subr.mxu0 0.0
      %2627 = vmatpush2.msra.mxu0 0.0
      %2628 = vmatprep.mubr.f32.mxu0 0.0
      %2629 = vmatmul.mubr.f32.gmra.mxu0 %v2559
      %v2630 = vpop.f32.mrf.mxu0
      %v2631 = vadd.f32 0.0, %v2630
      %v2632 = vpop.f32.mrf.mxu0
      %2633 = vdwg.mxu0
      %v2635 = vsel %vm1644, %v1591, 0
      %v2638 = vsel %vm1648, %v263, 0
      %2640 = vmatprep.subr.mxu0 0.0
      %2641 = vmatpush1.msra.mxu0 0.0
      %2642 = vmatprep.subr.mxu0 0.0
      %2643 = vmatpush1.msra.mxu0 0.0
      %2644 = vmatprep.subr.mxu0 0.0
      %2645 = vmatpush1.msra.mxu0 0.0
      %2646 = vmatprep.subr.mxu0 0.0
      %2647 = vmatpush1.msra.mxu0 0.0
      %2648 = vmatprep.subr.mxu0 0.0
      %2649 = vmatpush1.msra.mxu0 0.0
      %2650 = vmatprep.subr.mxu0 0.0
      %2651 = vmatpush1.msra.mxu0 0.0
      %2652 = vmatprep.subr.mxu0 0.0
      %2653 = vmatpush1.msra.mxu0 0.0
      %2654 = vmatprep.subr.mxu0 0.0
      %2655 = vmatpush1.msra.mxu0 0.0
      %2656 = vmatprep.subr.mxu0 0.0
      %2657 = vmatpush1.msra.mxu0 0.0
      %2658 = vmatprep.subr.mxu0 0.0
      %2659 = vmatpush1.msra.mxu0 0.0
      %2660 = vmatprep.subr.mxu0 0.0
      %2661 = vmatpush1.msra.mxu0 0.0
      %2662 = vmatprep.subr.mxu0 0.0
      %2663 = vmatpush1.msra.mxu0 0.0
      %2664 = vmatprep.subr.mxu0 0.0
      %2665 = vmatpush1.msra.mxu0 0.0
      %2666 = vmatprep.subr.mxu0 0.0
      %2667 = vmatpush1.msra.mxu0 0.0
      %2668 = vmatprep.subr.mxu0 0.0
      %2669 = vmatpush1.msra.mxu0 0.0
      %2670 = vmatprep.subr.mxu0 0.0
      %2671 = vmatpush1.msra.mxu0 %v2638
      %2672 = vmatprep.subr.mxu0 0.0
      %2673 = vmatpush2.msra.mxu0 0.0
      %2674 = vmatprep.subr.mxu0 0.0
      %2675 = vmatpush2.msra.mxu0 0.0
      %2676 = vmatprep.subr.mxu0 0.0
      %2677 = vmatpush2.msra.mxu0 0.0
      %2678 = vmatprep.subr.mxu0 0.0
      %2679 = vmatpush2.msra.mxu0 0.0
      %2680 = vmatprep.subr.mxu0 0.0
      %2681 = vmatpush2.msra.mxu0 0.0
      %2682 = vmatprep.subr.mxu0 0.0
      %2683 = vmatpush2.msra.mxu0 0.0
      %2684 = vmatprep.subr.mxu0 0.0
      %2685 = vmatpush2.msra.mxu0 0.0
      %2686 = vmatprep.subr.mxu0 0.0
      %2687 = vmatpush2.msra.mxu0 0.0
      %2688 = vmatprep.subr.mxu0 0.0
      %2689 = vmatpush2.msra.mxu0 0.0
      %2690 = vmatprep.subr.mxu0 0.0
      %2691 = vmatpush2.msra.mxu0 0.0
      %2692 = vmatprep.subr.mxu0 0.0
      %2693 = vmatpush2.msra.mxu0 0.0
      %2694 = vmatprep.subr.mxu0 0.0
      %2695 = vmatpush2.msra.mxu0 0.0
      %2696 = vmatprep.subr.mxu0 0.0
      %2697 = vmatpush2.msra.mxu0 0.0
      %2698 = vmatprep.subr.mxu0 0.0
      %2699 = vmatpush2.msra.mxu0 0.0
      %2700 = vmatprep.subr.mxu0 0.0
      %2701 = vmatpush2.msra.mxu0 0.0
      %2702 = vmatprep.subr.mxu0 0.0
      %2703 = vmatpush2.msra.mxu0 0.0
      %2704 = vmatprep.mubr.f32.mxu0 0.0
      %2705 = vmatmul.mubr.f32.gmra.mxu0 %v2635
      %v2706 = vpop.f32.mrf.mxu0
      %v2707 = vadd.f32 0.0, %v2706
      %v2708 = vpop.f32.mrf.mxu0
      %2709 = vdwg.mxu0
      %v2711 = vsel %vm1644, %v1593, 0
      %v2714 = vsel %vm1648, %v264, 0
      %2716 = vmatprep.subr.mxu0 0.0
      %2717 = vmatpush1.msra.mxu0 0.0
      %2718 = vmatprep.subr.mxu0 0.0
      %2719 = vmatpush1.msra.mxu0 0.0
      %2720 = vmatprep.subr.mxu0 0.0
      %2721 = vmatpush1.msra.mxu0 0.0
      %2722 = vmatprep.subr.mxu0 0.0
      %2723 = vmatpush1.msra.mxu0 0.0
      %2724 = vmatprep.subr.mxu0 0.0
      %2725 = vmatpush1.msra.mxu0 0.0
      %2726 = vmatprep.subr.mxu0 0.0
      %2727 = vmatpush1.msra.mxu0 0.0
      %2728 = vmatprep.subr.mxu0 0.0
      %2729 = vmatpush1.msra.mxu0 0.0
      %2730 = vmatprep.subr.mxu0 0.0
      %2731 = vmatpush1.msra.mxu0 0.0
      %2732 = vmatprep.subr.mxu0 0.0
      %2733 = vmatpush1.msra.mxu0 0.0
      %2734 = vmatprep.subr.mxu0 0.0
      %2735 = vmatpush1.msra.mxu0 0.0
      %2736 = vmatprep.subr.mxu0 0.0
      %2737 = vmatpush1.msra.mxu0 0.0
      %2738 = vmatprep.subr.mxu0 0.0
      %2739 = vmatpush1.msra.mxu0 0.0
      %2740 = vmatprep.subr.mxu0 0.0
      %2741 = vmatpush1.msra.mxu0 0.0
      %2742 = vmatprep.subr.mxu0 0.0
      %2743 = vmatpush1.msra.mxu0 0.0
      %2744 = vmatprep.subr.mxu0 0.0
      %2745 = vmatpush1.msra.mxu0 0.0
      %2746 = vmatprep.subr.mxu0 0.0
      %2747 = vmatpush1.msra.mxu0 %v2714
      %2748 = vmatprep.subr.mxu0 0.0
      %2749 = vmatpush2.msra.mxu0 0.0
      %2750 = vmatprep.subr.mxu0 0.0
      %2751 = vmatpush2.msra.mxu0 0.0
      %2752 = vmatprep.subr.mxu0 0.0
      %2753 = vmatpush2.msra.mxu0 0.0
      %2754 = vmatprep.subr.mxu0 0.0
      %2755 = vmatpush2.msra.mxu0 0.0
      %2756 = vmatprep.subr.mxu0 0.0
      %2757 = vmatpush2.msra.mxu0 0.0
      %2758 = vmatprep.subr.mxu0 0.0
      %2759 = vmatpush2.msra.mxu0 0.0
      %2760 = vmatprep.subr.mxu0 0.0
      %2761 = vmatpush2.msra.mxu0 0.0
      %2762 = vmatprep.subr.mxu0 0.0
      %2763 = vmatpush2.msra.mxu0 0.0
      %2764 = vmatprep.subr.mxu0 0.0
      %2765 = vmatpush2.msra.mxu0 0.0
      %2766 = vmatprep.subr.mxu0 0.0
      %2767 = vmatpush2.msra.mxu0 0.0
      %2768 = vmatprep.subr.mxu0 0.0
      %2769 = vmatpush2.msra.mxu0 0.0
      %2770 = vmatprep.subr.mxu0 0.0
      %2771 = vmatpush2.msra.mxu0 0.0
      %2772 = vmatprep.subr.mxu0 0.0
      %2773 = vmatpush2.msra.mxu0 0.0
      %2774 = vmatprep.subr.mxu0 0.0
      %2775 = vmatpush2.msra.mxu0 0.0
      %2776 = vmatprep.subr.mxu0 0.0
      %2777 = vmatpush2.msra.mxu0 0.0
      %2778 = vmatprep.subr.mxu0 0.0
      %2779 = vmatpush2.msra.mxu0 0.0
      %2780 = vmatprep.mubr.f32.mxu0 0.0
      %2781 = vmatmul.mubr.f32.gmra.mxu0 %v2711
      %v2782 = vpop.f32.mrf.mxu0
      %v2783 = vadd.f32 0.0, %v2782
      %v2784 = vpop.f32.mrf.mxu0
      %2785 = vdwg.mxu0
      %v2787 = vsel %vm1644, %v1595, 0
      %v2790 = vsel %vm1648, %v265, 0
      %2792 = vmatprep.subr.mxu0 0.0
      %2793 = vmatpush1.msra.mxu0 0.0
      %2794 = vmatprep.subr.mxu0 0.0
      %2795 = vmatpush1.msra.mxu0 0.0
      %2796 = vmatprep.subr.mxu0 0.0
      %2797 = vmatpush1.msra.mxu0 0.0
      %2798 = vmatprep.subr.mxu0 0.0
      %2799 = vmatpush1.msra.mxu0 0.0
      %2800 = vmatprep.subr.mxu0 0.0
      %2801 = vmatpush1.msra.mxu0 0.0
      %2802 = vmatprep.subr.mxu0 0.0
      %2803 = vmatpush1.msra.mxu0 0.0
      %2804 = vmatprep.subr.mxu0 0.0
      %2805 = vmatpush1.msra.mxu0 0.0
      %2806 = vmatprep.subr.mxu0 0.0
      %2807 = vmatpush1.msra.mxu0 0.0
      %2808 = vmatprep.subr.mxu0 0.0
      %2809 = vmatpush1.msra.mxu0 0.0
      %2810 = vmatprep.subr.mxu0 0.0
      %2811 = vmatpush1.msra.mxu0 0.0
      %2812 = vmatprep.subr.mxu0 0.0
      %2813 = vmatpush1.msra.mxu0 0.0
      %2814 = vmatprep.subr.mxu0 0.0
      %2815 = vmatpush1.msra.mxu0 0.0
      %2816 = vmatprep.subr.mxu0 0.0
      %2817 = vmatpush1.msra.mxu0 0.0
      %2818 = vmatprep.subr.mxu0 0.0
      %2819 = vmatpush1.msra.mxu0 0.0
      %2820 = vmatprep.subr.mxu0 0.0
      %2821 = vmatpush1.msra.mxu0 0.0
      %2822 = vmatprep.subr.mxu0 0.0
      %2823 = vmatpush1.msra.mxu0 %v2790
      %2824 = vmatprep.subr.mxu0 0.0
      %2825 = vmatpush2.msra.mxu0 0.0
      %2826 = vmatprep.subr.mxu0 0.0
      %2827 = vmatpush2.msra.mxu0 0.0
      %2828 = vmatprep.subr.mxu0 0.0
      %2829 = vmatpush2.msra.mxu0 0.0
      %2830 = vmatprep.subr.mxu0 0.0
      %2831 = vmatpush2.msra.mxu0 0.0
      %2832 = vmatprep.subr.mxu0 0.0
      %2833 = vmatpush2.msra.mxu0 0.0
      %2834 = vmatprep.subr.mxu0 0.0
      %2835 = vmatpush2.msra.mxu0 0.0
      %2836 = vmatprep.subr.mxu0 0.0
      %2837 = vmatpush2.msra.mxu0 0.0
      %2838 = vmatprep.subr.mxu0 0.0
      %2839 = vmatpush2.msra.mxu0 0.0
      %2840 = vmatprep.subr.mxu0 0.0
      %2841 = vmatpush2.msra.mxu0 0.0
      %2842 = vmatprep.subr.mxu0 0.0
      %2843 = vmatpush2.msra.mxu0 0.0
      %2844 = vmatprep.subr.mxu0 0.0
      %2845 = vmatpush2.msra.mxu0 0.0
      %2846 = vmatprep.subr.mxu0 0.0
      %2847 = vmatpush2.msra.mxu0 0.0
      %2848 = vmatprep.subr.mxu0 0.0
      %2849 = vmatpush2.msra.mxu0 0.0
      %2850 = vmatprep.subr.mxu0 0.0
      %2851 = vmatpush2.msra.mxu0 0.0
      %2852 = vmatprep.subr.mxu0 0.0
      %2853 = vmatpush2.msra.mxu0 0.0
      %2854 = vmatprep.subr.mxu0 0.0
      %2855 = vmatpush2.msra.mxu0 0.0
      %2856 = vmatprep.mubr.f32.mxu0 0.0
      %2857 = vmatmul.mubr.f32.gmra.mxu0 %v2787
      %v2858 = vpop.f32.mrf.mxu0
      %v2859 = vadd.f32 0.0, %v2858
      %v2860 = vpop.f32.mrf.mxu0
      %2861 = vdwg.mxu0
      %v2862 = vrcp.pop %v1598
      %v2863 = vrcp.pop %v1601
      %v2864 = vrcp.pop %v1604
      %v2865 = vrcp.pop %v1607
      %v2866 = vrcp.pop %v1610
      %v2867 = vrcp.pop %v1613
      %v2868 = vrcp.pop %v1616
      %v2869 = vrcp.pop %v1619
      %v2870 = vrcp.pop %v1622
      %v2871 = vrcp.pop %v1625
      %v2872 = vrcp.pop %v1628
      %v2873 = vrcp.pop %v1631
      %v2874 = vrcp.pop %v1634
      %v2875 = vrcp.pop %v1637
      %v2876 = vrcp.pop %v1640
      %v2877 = vrcp.pop %v1643
      %v2878 = vmul.f32 %v1719, %v2862
      %v2879 = vmul.f32 %v1795, %v2863
      %v2880 = vmul.f32 %v1871, %v2864
      %v2881 = vmul.f32 %v1947, %v2865
      %v2882 = vmul.f32 %v2023, %v2866
      %v2883 = vmul.f32 %v2099, %v2867
      %v2884 = vmul.f32 %v2175, %v2868
      %v2885 = vmul.f32 %v2251, %v2869
      %v2886 = vmul.f32 %v2327, %v2870
      %v2887 = vmul.f32 %v2403, %v2871
      %v2888 = vmul.f32 %v2479, %v2872
      %v2889 = vmul.f32 %v2555, %v2873
      %v2890 = vmul.f32 %v2631, %v2874
      %v2891 = vmul.f32 %v2707, %v2875
      %v2892 = vmul.f32 %v2783, %v2876
      %v2893 = vmul.f32 %v2859, %v2877
      %vm2894 = vcmask 58368
      %2895 = vst.msk [vmem:[%s216] sm:$0x3] %vm2894, %v2878
      %2896 = vst.msk [vmem:[%s216 + $0x2] sm:$0x3] %vm2894, %v2879
      %2897 = vst.msk [vmem:[%s216 + $0x4] sm:$0x3] %vm2894, %v2880
      %2898 = vst.msk [vmem:[%s216 + $0x6] sm:$0x3] %vm2894, %v2881
      %2899 = vst.msk [vmem:[%s216 + $0x8] sm:$0x3] %vm2894, %v2882
      %2900 = vst.msk [vmem:[%s216 + $0xa] sm:$0x3] %vm2894, %v2883
      %2901 = vst.msk [vmem:[%s216 + $0xc] sm:$0x3] %vm2894, %v2884
      %2902 = vst.msk [vmem:[%s216 + $0xe] sm:$0x3] %vm2894, %v2885
      %2903 = vst.msk [vmem:[%s216 + $0x10] sm:$0x3] %vm2894, %v2886
      %2904 = vst.msk [vmem:[%s216 + $0x12] sm:$0x3] %vm2894, %v2887
      %2905 = vst.msk [vmem:[%s216 + $0x14] sm:$0x3] %vm2894, %v2888
      %2906 = vst.msk [vmem:[%s216 + $0x16] sm:$0x3] %vm2894, %v2889
      %2907 = vst.msk [vmem:[%s216 + $0x18] sm:$0x3] %vm2894, %v2890
      %2908 = vst.msk [vmem:[%s216 + $0x1a] sm:$0x3] %vm2894, %v2891
      %2909 = vst.msk [vmem:[%s216 + $0x1c] sm:$0x3] %vm2894, %v2892
      %2910 = vst.msk [vmem:[%s216 + $0x1e] sm:$0x3] %vm2894, %v2893
      %s2911 = smul.u32 16, %s14
      %p2912 = scmp.lt.s32.totalorder %s2911, 31
      %s2913 = scalar_select %p2912, %s2911, 31
      %s2914 = smul.addr %s2913, 2
      %s2915 = scalar_lea.vmem %s3, %s2914
      // Predicated region
      $region33: #{mha_block_forward.8} parent=31 // pred_check
        %p2916 = pneg %p110
      $region34: #{mha_block_forward.8} parent=31 // pred_check_branch
        %2918 = sbr.rel (%p2916) target = $region36
      $region35: #{mha_block_forward.8} parent=31 // pred_region
        %s2919 = smul.u32 16, %s14
      $region36: #{mha_block_forward.8} parent=31 // pred_fallthru
        _
    $region32: #{mha_block_forward.8} parent=5 // pred_fallthru
      _
    %p2920 = scmp.le.s32.totalorder 2, %s9
    // Predicated region
    $region37: #{mha_block_forward.8} parent=5 // pred_check
      %p2921 = pneg %p2920
    $region38: #{mha_block_forward.8} parent=5 // pred_check_branch
      %2923 = sbr.rel (%p2921) target = $region40
    $region39: #{mha_block_forward.8} parent=5 // pred_region
      %s2924 = ssub.s32 %s9, 2
      // Predicated region
      $region41: #{mha_block_forward.8} parent=39 // pred_check
        %p2925 = pneg %p116
      $region42: #{mha_block_forward.8} parent=39 // pred_check_branch
        %2927 = sbr.rel (%p2925) target = $region44
      $region43: #{mha_block_forward.8} parent=39 // pred_region
        %s2928 = smul.u32 16, %s15
        %p2929 = scmp.lt.s32.totalorder %s2928, 31
        %s2930 = scalar_select %p2929, %s2928, 31
        %s2931 = smul.addr %s2930, 2
        %s2932 = scalar_lea.vmem %s3, %s2931
      $region44: #{mha_block_forward.8} parent=39 // pred_fallthru
        _
    $region40: #{mha_block_forward.8} parent=5 // pred_fallthru
      _
  $region6: #{mha_block_forward.8} parent=0 // loop_footer
    %s13 = sadd.s32 1, %s9
  $region7: #{mha_block_forward.8} parent=0 // loop_footer_branch
    %8 = sbr.rel target = $region3
  $region8: #{mha_block_forward.8} parent=0 // loop_exit
    _

</llo_original>
